<compile_context>
chip_gen: v7x
topology: tpu7x:2x2x1
jax: 0.10.0
libtpu: 0.0.40
codegen_flags: <defaults>
</compile_context>

<pallas_src>
import functools

import jax
import jax.numpy as jnp
from jax import lax
from jax.experimental import pallas as pl
from jax.experimental.pallas import tpu as pltpu

HIDDEN = 1000          # "number_of_neurons" in the PyTorch module
HIDDEN_PAD = 1024      # padded to a multiple of 128 for TPU lane friendliness


def _max_batch_tile():
    """Generation-aware cap on the batch tile."""
    try:
        kind = jax.devices()[0].device_kind.lower()
    except Exception:
        return 256
    # Older generations (<= v5): 128x128-granularity MXU, 16 MiB scoped-VMEM
    # default -> keep the tile at <= 256 rows.  v6e/v7x: allow 512.
    for tag in ("v2", "v3", "v4", "v5"):
        if tag in kind:
            return 256
    return 512


_MAX_TN = _max_batch_tile()


def _pick_tile(n, max_tn):
    """Largest batch tile (multiple of 8, <= max_tn) that keeps >= 2 grid
    steps when possible."""
    for t in (512, 256, 128, 64, 32, 16, 8):
        if t <= max_tn and n >= 2 * t:
            return t
    return 8


def _mlp_kernel(x_ref, c_ref, w2_ref, o_ref):
    x = x_ref[...]                                  # (TN, 1) f32
    c = c_ref[...]                                  # (8, HIDDEN_PAD) f32
    w1_base = c[0:1, :]                             # W1[0] + b1
    w1_delta = c[1:2, :]                            # W1[1] - W1[0]
    b2 = c[2:3, :]
    w3_0 = c[3:4, :]                                # w3[:, 0] (transposed row)
    w3_1 = c[4:5, :]                                # w3[:, 1]
    b3_0 = c[5:6, 0:1]
    b3_1 = c[5:6, 1:2]

    # fc1 + relu folded onto the VPU (exact):
    #   relu(cat(1-x, x) @ W1 + b1) == relu(w1_base + x * w1_delta)
    h1 = jnp.maximum(w1_base + x * w1_delta, 0.0)   # (TN, HIDDEN_PAD) f32

    # fc2 + relu: bf16 inputs on the MXU, f32 accumulation.
    h2 = jnp.dot(h1.astype(jnp.bfloat16), w2_ref[...],
                 preferred_element_type=jnp.float32)
    h2 = jnp.maximum(h2 + b2, 0.0)                  # (TN, HIDDEN_PAD) f32

    # fc3 on VPU + XLU (width-2 output -> MXU would be ~all waste), then
    # residual add of cat(1-x, x) per column and clamp to [0, 1].
    y0 = jnp.sum(h2 * w3_0, axis=-1, keepdims=True) + b3_0 + (1.0 - x)
    y1 = jnp.sum(h2 * w3_1, axis=-1, keepdims=True) + b3_1 + x
    y = jnp.concatenate([y0, y1], axis=1)           # (TN, 2)
    o_ref[...] = jnp.clip(y, 0.0, 1.0)


@jax.jit
def correction_forward(x, consts, w2_bf16):
    """x: (N, 1) f32.  consts: (8, HIDDEN_PAD) f32 stacked constants.
    w2_bf16: (HIDDEN_PAD, HIDDEN_PAD) bf16."""
    n = x.shape[0]
    tn = _pick_tile(n, _MAX_TN)
    n_pad = -(-n // tn) * tn
    x_p = jnp.pad(x, ((0, n_pad - n), (0, 0)))
    steps = n_pad // tn
    # Only shard the batch axis across TensorCores when there is enough work
    # to amortize the duplicated per-core w2 fetch (v7x megacore).
    sem = "parallel" if steps >= 4 else "arbitrary"

    out = pl.pallas_call(
        _mlp_kernel,
        out_shape=jax.ShapeDtypeStruct((n_pad, 2), jnp.float32),
        grid=(steps,),
        in_specs=[
            pl.BlockSpec((tn, 1), lambda i: (i, 0)),                  # x
            pl.BlockSpec((8, HIDDEN_PAD), lambda i: (0, 0)),          # consts
            pl.BlockSpec((HIDDEN_PAD, HIDDEN_PAD), lambda i: (0, 0)), # w2 bf16
        ],
        out_specs=pl.BlockSpec((tn, 2), lambda i: (i, 0)),
        compiler_params=pltpu.CompilerParams(
            dimension_semantics=(sem,),
            vmem_limit_bytes=24 << 20,   # sized estimate + headroom (< v7x 64 MiB)
        ),
    )(x_p, consts, w2_bf16)
    return out[:n]


def init_params(key):
    """Deterministic init mimicking torch.nn.Linear (uniform +-1/sqrt(fan_in))."""
    k1, k2, k3, k4, k5, k6 = jax.random.split(key, 6)

    def unif(k, shape, fan_in):
        bound = 1.0 / jnp.sqrt(jnp.float32(fan_in))
        return jax.random.uniform(k, shape, jnp.float32, -bound, bound)

    # stored as (in_features, out_features)
    w1 = unif(k1, (2, HIDDEN), 2)
    b1 = unif(k2, (1, HIDDEN), 2)
    w2 = unif(k3, (HIDDEN, HIDDEN), HIDDEN)
    b2 = unif(k4, (1, HIDDEN), HIDDEN)
    w3 = unif(k5, (HIDDEN, 2), HIDDEN)
    b3 = unif(k6, (1, 2), HIDDEN)
    return w1, b1, w2, b2, w3, b3


def prepare_params(w1, b1, w2, b2, w3, b3):
    """Zero-pad HIDDEN -> HIDDEN_PAD (exact: zero rows/cols contribute 0),
    fold fc1 into an affine in x, stack the small constants into one
    (8, HIDDEN_PAD) array, and cast w2 to bf16."""
    pad_h = HIDDEN_PAD - HIDDEN
    w1p = jnp.pad(w1, ((0, 0), (0, pad_h)))
    b1p = jnp.pad(b1, ((0, 0), (0, pad_h)))
    w2p = jnp.pad(w2, ((0, pad_h), (0, pad_h)))
    b2p = jnp.pad(b2, ((0, 0), (0, pad_h)))
    w3p = jnp.pad(w3, ((0, pad_h), (0, 0)))

    w1_base = w1p[0:1, :] + b1p                       # (1, HIDDEN_PAD)
    w1_delta = w1p[1:2, :] - w1p[0:1, :]              # (1, HIDDEN_PAD)
    w3t = w3p.T                                       # (2, HIDDEN_PAD)
    b3_row = jnp.zeros((1, HIDDEN_PAD), jnp.float32).at[0, 0:2].set(b3[0])
    pad_rows = jnp.zeros((2, HIDDEN_PAD), jnp.float32)
    consts = jnp.concatenate(
        [w1_base, w1_delta, b2p, w3t, b3_row, pad_rows], axis=0)   # (8, HIDDEN_PAD)
    return consts, w2p.astype(jnp.bfloat16)


def reference_forward(x, params):
    """Unfused reference matching the original PyTorch module, with
    HIGHEST-precision f32 matmuls."""
    w1, b1, w2, b2, w3, b3 = params
    xc = jnp.concatenate([1.0 - x, x], axis=1)
    h1 = jnp.maximum(
        jnp.dot(xc, w1, precision=lax.Precision.HIGHEST) + b1, 0.0)
    h2 = jnp.maximum(
        jnp.dot(h1, w2, precision=lax.Precision.HIGHEST) + b2, 0.0)
    y = jnp.dot(h2, w3, precision=lax.Precision.HIGHEST) + b3 + xc
    return jnp.clip(y, 0.0, 1.0)


if __name__ == "__main__":
    key = jax.random.PRNGKey(0)
    kx, kp = jax.random.split(key)

    raw_params = init_params(kp)
    consts, w2_bf16 = prepare_params(*raw_params)

    # Two batch sizes: one tiny/ragged (exercises padding + small tile), one
    # larger (exercises the multi-step, MXU-dense tile path).
    for n in (37, 300):
        x = jax.random.uniform(jax.random.fold_in(kx, n), (n, 1), jnp.float32)
        out = jax.block_until_ready(correction_forward(x, consts, w2_bf16))
        ref = reference_forward(x, raw_params)

        assert out.shape == (n, 2), out.shape
        # Tolerance budgets for the bf16 fc2 weight path vs. the full-f32
        # reference; outputs are clipped to [0, 1].
        assert jnp.allclose(out, ref, atol=3e-3, rtol=3e-3), (
            f"N={n}: max abs diff {jnp.max(jnp.abs(out - ref))}"
        )

    print("KERNEL_OK")
</pallas_src>

<mosaic_0001>
module attributes {stable_mosaic.version = 11 : i64} {
  func.func @_mlp_kernel(%arg0: i32, %arg1: memref<16x1xf32, #tpu.memory_space<vmem>>, %arg2: memref<8x1024xf32, #tpu.memory_space<vmem>>, %arg3: memref<1024x1024xbf16, #tpu.memory_space<vmem>>, %arg4: memref<16x2xf32, #tpu.memory_space<vmem>>) attributes {dimension_semantics = [#tpu.dimension_semantics<arbitrary>], iteration_bounds = array<i64: 3>, scalar_prefetch = 0 : i64, scratch_operands = 0 : i64, tpu.core_type = #tpu.core_type<tc>, window_params = [{transform_indices = @transform_0, window_bounds = array<i64: 16, 1>}, {pipeline_mode = #tpu.pipeline_mode<synchronous>, transform_indices = @transform_1, window_bounds = array<i64: 8, 1024>}, {pipeline_mode = #tpu.pipeline_mode<synchronous>, transform_indices = @transform_2, window_bounds = array<i64: 1024, 1024>}, {transform_indices = @transform_3, window_bounds = array<i64: 16, 2>}]} {
    %c0 = arith.constant 0 : index
    %c0_0 = arith.constant 0 : index
    %0 = vector.load %arg1[%c0, %c0_0] : memref<16x1xf32, #tpu.memory_space<vmem>>, vector<16x1xf32>
    %c0_1 = arith.constant 0 : index
    %c0_2 = arith.constant 0 : index
    %1 = vector.load %arg2[%c0_1, %c0_2] : memref<8x1024xf32, #tpu.memory_space<vmem>>, vector<8x1024xf32>
    %2 = vector.extract_strided_slice %1 {offsets = [0, 0], sizes = [1, 1024], strides = [1, 1]} : vector<8x1024xf32> to vector<1x1024xf32>
    %3 = vector.extract_strided_slice %1 {offsets = [1, 0], sizes = [1, 1024], strides = [1, 1]} : vector<8x1024xf32> to vector<1x1024xf32>
    %4 = vector.extract_strided_slice %1 {offsets = [2, 0], sizes = [1, 1024], strides = [1, 1]} : vector<8x1024xf32> to vector<1x1024xf32>
    %5 = vector.extract_strided_slice %1 {offsets = [3, 0], sizes = [1, 1024], strides = [1, 1]} : vector<8x1024xf32> to vector<1x1024xf32>
    %6 = vector.extract_strided_slice %1 {offsets = [4, 0], sizes = [1, 1024], strides = [1, 1]} : vector<8x1024xf32> to vector<1x1024xf32>
    %7 = vector.extract_strided_slice %1 {offsets = [5, 0], sizes = [1, 1], strides = [1, 1]} : vector<8x1024xf32> to vector<1x1xf32>
    %8 = vector.extract_strided_slice %1 {offsets = [5, 1], sizes = [1, 1], strides = [1, 1]} : vector<8x1024xf32> to vector<1x1xf32>
    %9 = vector.broadcast %0 : vector<16x1xf32> to vector<16x1024xf32>
    %10 = vector.broadcast %3 : vector<1x1024xf32> to vector<16x1024xf32>
    %11 = arith.mulf %9, %10 : vector<16x1024xf32>
    %12 = vector.broadcast %2 : vector<1x1024xf32> to vector<16x1024xf32>
    %13 = arith.addf %12, %11 : vector<16x1024xf32>
    %cst = arith.constant 0.000000e+00 : f32
    %14 = vector.broadcast %cst : f32 to vector<16x1024xf32>
    %15 = arith.maximumf %13, %14 : vector<16x1024xf32>
    %16 = arith.truncf %15 : vector<16x1024xf32> to vector<16x1024xbf16>
    %c0_3 = arith.constant 0 : index
    %c0_4 = arith.constant 0 : index
    %17 = vector.load %arg3[%c0_3, %c0_4] : memref<1024x1024xbf16, #tpu.memory_space<vmem>>, vector<1024x1024xbf16>
    %cst_5 = arith.constant dense<0.000000e+00> : vector<16x1024xf32>
    %18 = tpu.matmul %16, %17, %cst_5 {dimension_numbers = #tpu.dot_dimension_numbers<[1], [0], [0], [1], [0, 0, 1, 1], [], []>} : vector<16x1024xbf16>, vector<1024x1024xbf16>, vector<16x1024xf32> -> vector<16x1024xf32>
    %19 = vector.broadcast %4 : vector<1x1024xf32> to vector<16x1024xf32>
    %20 = arith.addf %18, %19 : vector<16x1024xf32>
    %cst_6 = arith.constant 0.000000e+00 : f32
    %21 = vector.broadcast %cst_6 : f32 to vector<16x1024xf32>
    %22 = arith.maximumf %20, %21 : vector<16x1024xf32>
    %23 = vector.broadcast %5 : vector<1x1024xf32> to vector<16x1024xf32>
    %24 = arith.mulf %22, %23 : vector<16x1024xf32>
    %cst_7 = arith.constant dense<0.000000e+00> : vector<16xf32>
    %25 = vector.multi_reduction <add>, %24, %cst_7 [1] : vector<16x1024xf32> to vector<16xf32>
    %26 = vector.shape_cast %25 : vector<16xf32> to vector<16x1xf32>
    %27 = vector.broadcast %7 : vector<1x1xf32> to vector<16x1xf32>
    %28 = arith.addf %26, %27 : vector<16x1xf32>
    %cst_8 = arith.constant 1.000000e+00 : f32
    %29 = vector.broadcast %cst_8 : f32 to vector<16x1xf32>
    %30 = arith.subf %29, %0 : vector<16x1xf32>
    %31 = arith.addf %28, %30 : vector<16x1xf32>
    %32 = vector.broadcast %6 : vector<1x1024xf32> to vector<16x1024xf32>
    %33 = arith.mulf %22, %32 : vector<16x1024xf32>
    %cst_9 = arith.constant dense<0.000000e+00> : vector<16xf32>
    %34 = vector.multi_reduction <add>, %33, %cst_9 [1] : vector<16x1024xf32> to vector<16xf32>
    %35 = vector.shape_cast %34 : vector<16xf32> to vector<16x1xf32>
    %36 = vector.broadcast %8 : vector<1x1xf32> to vector<16x1xf32>
    %37 = arith.addf %35, %36 : vector<16x1xf32>
    %38 = arith.addf %37, %0 : vector<16x1xf32>
    %39 = tpu.concatenate %31, %38 in 1 : vector<16x1xf32>, vector<16x1xf32> -> vector<16x2xf32>
    %cst_10 = arith.constant 0.000000e+00 : f32
    %cst_11 = arith.constant 1.000000e+00 : f32
    %40 = vector.broadcast %cst_10 : f32 to vector<16x2xf32>
    %41 = arith.maximumf %40, %39 : vector<16x2xf32>
    %42 = vector.broadcast %cst_11 : f32 to vector<16x2xf32>
    %43 = arith.minimumf %42, %41 : vector<16x2xf32>
    %c0_12 = arith.constant 0 : index
    %c0_13 = arith.constant 0 : index
    %44 = vector.load %arg4[%c0_12, %c0_13] : memref<16x2xf32, #tpu.memory_space<vmem>>, vector<16x2xf32>
    tpu.vector_store %arg4[%c0_12, %c0_13], %43 {strides = array<i32>} : memref<16x2xf32, #tpu.memory_space<vmem>>, vector<16x2xf32>,
    return
  }
  func.func @transform_0(%arg0: i32) -> (i32, i32) {
    %c0_i32 = arith.constant 0 : i32
    %c0_i32_0 = arith.constant 0 : i32
    return %arg0, %c0_i32 : i32, i32
  }
  func.func @transform_1(%arg0: i32) -> (i32, i32) {
    %c0_i32 = arith.constant 0 : i32
    %c0_i32_0 = arith.constant 0 : i32
    %c0_i32_1 = arith.constant 0 : i32
    return %c0_i32, %c0_i32_0 : i32, i32
  }
  func.func @transform_2(%arg0: i32) -> (i32, i32) {
    %c0_i32 = arith.constant 0 : i32
    %c0_i32_0 = arith.constant 0 : i32
    %c0_i32_1 = arith.constant 0 : i32
    return %c0_i32, %c0_i32_0 : i32, i32
  }
  func.func @transform_3(%arg0: i32) -> (i32, i32) {
    %c0_i32 = arith.constant 0 : i32
    %c0_i32_0 = arith.constant 0 : i32
    return %arg0, %c0_i32 : i32, i32
  }
}

</mosaic_0001>

<llo_original>
// kernel: correction_forward.1
$region0: #{correction_forward.1}
  #allocation0 [shape = 'u32[]', space=smem, size = 0x4, offset = 0x4, fixed_abs, tag = 'smem constant byte address 0x4 - core index']
  #allocation1 [shape = 'u32[144,128]{1,0:T(1,128)}', space=vmem, size = 0x12000, scoped, tag = 'internal scratch']
  %s0 = inlined_call_operand.vmem [shape: f32[48,1], index: 0, kind: input, shape index: {}]
  %s1 = inlined_call_operand.hbm [shape: f32[8,1024], index: 1, kind: input, shape index: {}]
  %s2 = inlined_call_operand.hbm [shape: bf16[1024,1024], index: 2, kind: input, shape index: {}]
  %s3 = inlined_call_operand.vmem [shape: f32[48,2], index: 3, kind: output, shape index: {}]
  %s4 = sld [smem:[#allocation0]]
  $region53: #{correction_forward.1} parent=0
    _
  %s6 = ssub.s32 1, %s4
  %s7 = scalar_select 0, %s6, %s4
  $region1: #{correction_forward.1} parent=0
    #allocation2 [shape = 'u8[32768]{0}', space=vmem, size = 0x8000, scoped, tag = 'input window, operand 1, single buffered']
    #allocation3 [shape = 's32[2]{0}', space=sflag, size = 0x8, scoped, tag = 'scoped memory for correction_forward.1']
    #allocation4 [shape = 'u8[2097152]{0}', space=vmem, size = 0x200000, scoped, tag = 'input window, operand 2, single buffered']
    #allocation5 [shape = 's32[1]{0}', space=sflag, size = 0x4, scoped, tag = 'scoped memory for correction_forward.1']
    %8 = vsyncpa [#allocation3], 0
    %9 = vsyncpa [#allocation5], 0
    loop: start=0, step=1, limit=5
    $region2: #{correction_forward.1} parent=1 // loop_pre_header
      _
    $region3: #{correction_forward.1} parent=1 // loop_header
      %s11 = sphi 0, %s15
      %p12 = scmp.ge.s32.totalorder %s11, 5
      %s21 = sphi 0, %s23
      %s24 = sphi 0, %s21
      %s25 = sphi 0, %s24
      %s41 = sphi 0, %s25
      %s45 = sphi 0, %s45
      %s47 = sphi 0, %s45
      %s48 = sphi 0, %s47
      %s62 = sphi 0, %s48
      %s66 = sphi 0, %s66
      %s68 = sphi 0, %s66
      %s69 = sphi 0, %s68
      %s83 = sphi 0, %s69
      %s89 = sphi 0, %s91
      %s92 = sphi 0, %s89
      %s93 = sphi 0, %s92
      %s109 = sphi 0, %s93
    $region4: #{correction_forward.1} parent=1 // loop_header_branch
      %14 = sbr.rel (%p12) target = $region8
    $region5: #{correction_forward.1} parent=1 // loop_body
      %s16 = ssub.s32 %s11, 1
      %s17 = ssub.s32 %s11, 2
      %s18 = sadd.s32 %s11, 1
      %s19 = ssub.s32 %s11, %s18
      %p20 = scmp.eq.s32.totalorder %s19, 0
      %s22 = sadd.s32 %s21, 1
      %s23 = scalar_select %p20, %s21, %s22
      %p26 = pneg %p20
      %p27 = scmp.eq.s32.totalorder %s11, 2
      %p28 = por %p26, %p27
      %p29 = scmp.ne.s32.totalorder %s21, %s24
      %p30 = scmp.eq.s32.totalorder %s11, 0
      %p31 = por %p29, %p30
      %p32 = scmp.ne.s32.totalorder %s21, %s24
      %p33 = scmp.eq.s32.totalorder %s16, 2
      %p34 = por %p32, %p33
      %p35 = scmp.ne.s32.totalorder %s24, %s25
      %p36 = scmp.eq.s32.totalorder %s16, 0
      %p37 = por %p35, %p36
      %p38 = scmp.ne.s32.totalorder %s24, %s25
      %p39 = scmp.eq.s32.totalorder %s17, 2
      %p40 = por %p38, %p39
      %p42 = scmp.ne.s32.totalorder %s25, %s41
      %p43 = scmp.eq.s32.totalorder %s17, 0
      %p44 = por %p42, %p43
      %s46 = sadd.s32 %s45, 1
      %p49 = scmp.eq.s32.totalorder %s11, 2
      %p50 = scmp.ne.s32.totalorder %s45, %s47
      %p51 = scmp.eq.s32.totalorder %s11, 0
      %p52 = por %p50, %p51
      %p53 = scmp.ne.s32.totalorder %s45, %s47
      %p54 = scmp.eq.s32.totalorder %s16, 2
      %p55 = por %p53, %p54
      %p56 = scmp.ne.s32.totalorder %s47, %s48
      %p57 = scmp.eq.s32.totalorder %s16, 0
      %p58 = por %p56, %p57
      %p59 = scmp.ne.s32.totalorder %s47, %s48
      %p60 = scmp.eq.s32.totalorder %s17, 2
      %p61 = por %p59, %p60
      %p63 = scmp.ne.s32.totalorder %s48, %s62
      %p64 = scmp.eq.s32.totalorder %s17, 0
      %p65 = por %p63, %p64
      %s67 = sadd.s32 %s66, 1
      %p70 = scmp.eq.s32.totalorder %s11, 2
      %p71 = scmp.ne.s32.totalorder %s66, %s68
      %p72 = scmp.eq.s32.totalorder %s11, 0
      %p73 = por %p71, %p72
      %p74 = scmp.ne.s32.totalorder %s66, %s68
      %p75 = scmp.eq.s32.totalorder %s16, 2
      %p76 = por %p74, %p75
      %p77 = scmp.ne.s32.totalorder %s68, %s69
      %p78 = scmp.eq.s32.totalorder %s16, 0
      %p79 = por %p77, %p78
      %p80 = scmp.ne.s32.totalorder %s68, %s69
      %p81 = scmp.eq.s32.totalorder %s17, 2
      %p82 = por %p80, %p81
      %p84 = scmp.ne.s32.totalorder %s69, %s83
      %p85 = scmp.eq.s32.totalorder %s17, 0
      %p86 = por %p84, %p85
      %s87 = ssub.s32 %s11, %s18
      %p88 = scmp.eq.s32.totalorder %s87, 0
      %s90 = sadd.s32 %s89, 1
      %s91 = scalar_select %p88, %s89, %s90
      %p94 = pneg %p88
      %p95 = scmp.eq.s32.totalorder %s11, 2
      %p96 = por %p94, %p95
      %p97 = scmp.ne.s32.totalorder %s89, %s92
      %p98 = scmp.eq.s32.totalorder %s11, 0
      %p99 = por %p97, %p98
      %p100 = scmp.ne.s32.totalorder %s89, %s92
      %p101 = scmp.eq.s32.totalorder %s16, 2
      %p102 = por %p100, %p101
      %p103 = scmp.ne.s32.totalorder %s92, %s93
      %p104 = scmp.eq.s32.totalorder %s16, 0
      %p105 = por %p103, %p104
      %p106 = scmp.ne.s32.totalorder %s92, %s93
      %p107 = scmp.eq.s32.totalorder %s17, 2
      %p108 = por %p106, %p107
      %p110 = scmp.ne.s32.totalorder %s93, %s109
      %p111 = scmp.eq.s32.totalorder %s17, 0
      %p112 = por %p110, %p111
      %p113 = scmp.le.s32.totalorder 1, %s11
      %p114 = scmp.lt.s32.totalorder %s11, 4
      %p115 = pnand %p113, %p114
      %p116 = pneg %p115
      // Predicated region
      $region9: #{correction_forward.1} parent=5 // pred_check
        _
      $region10: #{correction_forward.1} parent=5 // pred_check_branch
        %118 = sbr.rel (%p115) target = $region12
      $region11: #{correction_forward.1} parent=5 // pred_region
        %s119 = ssub.s32 %s11, 1
        // Predicated region
        $region13: #{correction_forward.1} parent=11 // pred_check
          %p120 = pneg %p58
        $region14: #{correction_forward.1} parent=11 // pred_check_branch
          %122 = sbr.rel (%p120) target = $region16
        $region15: #{correction_forward.1} parent=11 // pred_region
          %s124 = ssub.s32 1024, 1024
          %125 = vsyncadd [#allocation3], %s124
          %s127 = sshll.u32 [#allocation2], 4
          %s128 = int_to_ptr.vmem [resolvable:$true] %s127
          %130 = dma.hbm_to_vmem [thread:$0]  %s1, 1024, %s128, [#allocation3]
        $region16: #{correction_forward.1} parent=11 // pred_fallthru
          _
        // Predicated region
        $region17: #{correction_forward.1} parent=11 // pred_check
          %p131 = pneg %p79
        $region18: #{correction_forward.1} parent=11 // pred_check_branch
          %133 = sbr.rel (%p131) target = $region20
        $region19: #{correction_forward.1} parent=11 // pred_region
          %s135 = ssub.s32 65536, 65536
          %136 = vsyncadd [#allocation5], %s135
          %s137 = sshll.u32 [#allocation4], 4
          %s138 = int_to_ptr.vmem [resolvable:$true] %s137
          %143 = dma.hbm_to_vmem [thread:$0]  %s2, 65536, %s138, [#allocation5], 512, 512, 32
        $region20: #{correction_forward.1} parent=11 // pred_fallthru
          _
      $region12: #{correction_forward.1} parent=5 // pred_fallthru
        _
      %p144 = scmp.lt.s32.totalorder %s11, 3
      // Predicated region
      $region21: #{correction_forward.1} parent=5 // pred_check
        %p145 = pneg %p144
      $region22: #{correction_forward.1} parent=5 // pred_check_branch
        %147 = sbr.rel (%p145) target = $region24
      $region23: #{correction_forward.1} parent=5 // pred_region
        // Predicated region
        $region25: #{correction_forward.1} parent=23 // pred_check
          %p148 = pneg %p31
        $region26: #{correction_forward.1} parent=23 // pred_check_branch
          %150 = sbr.rel (%p148) target = $region28
        $region27: #{correction_forward.1} parent=23 // pred_region
          %s151 = smul.u32 2, %s11
          %p152 = scmp.lt.s32.totalorder %s151, 5
          %s153 = scalar_select %p152, %s151, 5
          %s154 = smul.addr %s153, 8
          %s155 = scalar_lea.vmem %s0, %s154
          %s156 = smul.u32 2, %s11
        $region28: #{correction_forward.1} parent=23 // pred_fallthru
          _
      $region24: #{correction_forward.1} parent=5 // pred_fallthru
        _
      %p157 = scmp.le.s32.totalorder 1, %s11
      %p158 = scmp.lt.s32.totalorder %s11, 4
      %p159 = pnand %p157, %p158
      %p160 = pneg %p159
      // Predicated region
      $region29: #{correction_forward.1} parent=5 // pred_check
        _
      $region30: #{correction_forward.1} parent=5 // pred_check_branch
        %162 = sbr.rel (%p159) target = $region32
      $region31: #{correction_forward.1} parent=5 // pred_region
        %s163 = ssub.s32 %s11, 1
        // Predicated region
        $region33: #{correction_forward.1} parent=31 // pred_check
          %p164 = pneg %p58
        $region34: #{correction_forward.1} parent=31 // pred_check_branch
          %166 = sbr.rel (%p164) target = $region36
        $region35: #{correction_forward.1} parent=31 // pred_region
          %167 = dma.done [#allocation3], 1024
        $region36: #{correction_forward.1} parent=31 // pred_fallthru
          _
        // Predicated region
        $region37: #{correction_forward.1} parent=31 // pred_check
          %p168 = pneg %p79
        $region38: #{correction_forward.1} parent=31 // pred_check_branch
          %170 = sbr.rel (%p168) target = $region40
        $region39: #{correction_forward.1} parent=31 // pred_region
          %171 = dma.done [#allocation5], 65536
        $region40: #{correction_forward.1} parent=31 // pred_fallthru
          _
        %s172 = smul.u32 2, %s16
        %p173 = scmp.lt.s32.totalorder %s172, 5
        %s174 = scalar_select %p173, %s172, 5
        %s175 = smul.addr %s174, 8
        %s176 = scalar_lea.vmem %s0, %s175
        %p177 = pneg %p37
        %p178 = pneg %p34
        %p179 = pneg %p58
        %p180 = pneg %p55
        %p181 = pneg %p79
        %p182 = pneg %p76
        %p183 = pneg %p105
        %p184 = pneg %p102
        %s185 = smul.u32 2, %s16
        %p186 = scmp.lt.s32.totalorder %s185, 5
        %s187 = scalar_select %p186, %s185, 5
        %s188 = smul.addr %s187, 8
        %s189 = scalar_lea.vmem %s3, %s188
        %s190 = smul.u32 2, %s16
        %p191 = scmp.lt.s32.totalorder %s190, 5
        %s192 = scalar_select %p191, %s190, 5
        %s193 = smul.addr %s192, 8
        %s194 = scalar_lea.vmem %s0, %s193
        %s195 = smul.u32 2, %s16
        %s196 = smul.u32 2, %s16
        %p197 = scmp.lt.s32.totalorder %s196, 5
        %s198 = scalar_select %p197, %s196, 5
        %s199 = smul.addr %s198, 8
        %s200 = scalar_lea.vmem %s3, %s199
        %s201 = smul.u32 2, %s16
        %v202 = vld [vmem:[%s194] sm:$0xff]
        %v203 = vld [vmem:[%s194 + $0x8] sm:$0xff]
        %v204 = vld [vmem:[#allocation2] sm:$0xff]
        %v205 = vld [vmem:[#allocation2 + $0x8] sm:$0xff]
        %v206 = vld [vmem:[#allocation2 + $0x10] sm:$0xff]
        %v207 = vld [vmem:[#allocation2 + $0x18] sm:$0xff]
        %v208 = vld [vmem:[#allocation2 + $0x20] sm:$0xff]
        %v209 = vld [vmem:[#allocation2 + $0x28] sm:$0xff]
        %v210 = vld [vmem:[#allocation2 + $0x30] sm:$0xff]
        %v211 = vld [vmem:[#allocation2 + $0x38] sm:$0xff]
        %213 = vset.pattern.permute.xlu0 0
        %214 = vperm.xlu0 %213, %v202
        %v215 = vpop.permute.xlu0 %214
        %218 = vset.pattern.permute.xlu0 0
        %219 = vperm.xlu0 %218, %v203
        %v220 = vpop.permute.xlu0 %219
        %v222 = vlaneseq
        %v223 = vshrl.u32 %v222, 7
        %v224 = vsub.s32 1, %v223
        %v225 = vrot.slane %v204, %v224
        %v226 = vlaneseq
        %v227 = vshrl.u32 %v226, 7
        %v228 = vsub.s32 1, %v227
        %v229 = vrot.slane %v205, %v228
        %v230 = vlaneseq
        %v231 = vshrl.u32 %v230, 7
        %v232 = vsub.s32 1, %v231
        %v233 = vrot.slane %v206, %v232
        %v234 = vlaneseq
        %v235 = vshrl.u32 %v234, 7
        %v236 = vsub.s32 1, %v235
        %v237 = vrot.slane %v207, %v236
        %v238 = vlaneseq
        %v239 = vshrl.u32 %v238, 7
        %v240 = vsub.s32 1, %v239
        %v241 = vrot.slane %v208, %v240
        %v242 = vlaneseq
        %v243 = vshrl.u32 %v242, 7
        %v244 = vsub.s32 1, %v243
        %v245 = vrot.slane %v209, %v244
        %v246 = vlaneseq
        %v247 = vshrl.u32 %v246, 7
        %v248 = vsub.s32 1, %v247
        %v249 = vrot.slane %v210, %v248
        %v250 = vlaneseq
        %v251 = vshrl.u32 %v250, 7
        %v252 = vsub.s32 1, %v251
        %v253 = vrot.slane %v211, %v252
        %v254 = vmul.f32 %v215, %v225
        %v255 = vmul.f32 %v215, %v229
        %v256 = vmul.f32 %v215, %v233
        %v257 = vmul.f32 %v215, %v237
        %v258 = vmul.f32 %v215, %v241
        %v259 = vmul.f32 %v215, %v245
        %v260 = vmul.f32 %v215, %v249
        %v261 = vmul.f32 %v215, %v253
        %v262 = vmul.f32 %v220, %v225
        %v263 = vmul.f32 %v220, %v229
        %v264 = vmul.f32 %v220, %v233
        %v265 = vmul.f32 %v220, %v237
        %v266 = vmul.f32 %v220, %v241
        %v267 = vmul.f32 %v220, %v245
        %v268 = vmul.f32 %v220, %v249
        %v269 = vmul.f32 %v220, %v253
        %v270 = vlaneseq
        %v271 = vshrl.u32 %v270, 7
        %v272 = vsub.s32 0, %v271
        %v273 = vrot.slane %v204, %v272
        %v274 = vlaneseq
        %v275 = vshrl.u32 %v274, 7
        %v276 = vsub.s32 0, %v275
        %v277 = vrot.slane %v205, %v276
        %v278 = vlaneseq
        %v279 = vshrl.u32 %v278, 7
        %v280 = vsub.s32 0, %v279
        %v281 = vrot.slane %v206, %v280
        %v282 = vlaneseq
        %v283 = vshrl.u32 %v282, 7
        %v284 = vsub.s32 0, %v283
        %v285 = vrot.slane %v207, %v284
        %v286 = vlaneseq
        %v287 = vshrl.u32 %v286, 7
        %v288 = vsub.s32 0, %v287
        %v289 = vrot.slane %v208, %v288
        %v290 = vlaneseq
        %v291 = vshrl.u32 %v290, 7
        %v292 = vsub.s32 0, %v291
        %v293 = vrot.slane %v209, %v292
        %v294 = vlaneseq
        %v295 = vshrl.u32 %v294, 7
        %v296 = vsub.s32 0, %v295
        %v297 = vrot.slane %v210, %v296
        %v298 = vlaneseq
        %v299 = vshrl.u32 %v298, 7
        %v300 = vsub.s32 0, %v299
        %v301 = vrot.slane %v211, %v300
        %v302 = vadd.f32 %v273, %v254
        %v303 = vadd.f32 %v277, %v255
        %v304 = vadd.f32 %v281, %v256
        %v305 = vadd.f32 %v285, %v257
        %v306 = vadd.f32 %v289, %v258
        %v307 = vadd.f32 %v293, %v259
        %v308 = vadd.f32 %v297, %v260
        %v309 = vadd.f32 %v301, %v261
        %v310 = vadd.f32 %v273, %v262
        %v311 = vadd.f32 %v277, %v263
        %v312 = vadd.f32 %v281, %v264
        %v313 = vadd.f32 %v285, %v265
        %v314 = vadd.f32 %v289, %v266
        %v315 = vadd.f32 %v293, %v267
        %v316 = vadd.f32 %v297, %v268
        %v317 = vadd.f32 %v301, %v269
        %v318 = vmax.f32 %v302, 0.0
        %v319 = vmax.f32 %v303, 0.0
        %v320 = vmax.f32 %v304, 0.0
        %v321 = vmax.f32 %v305, 0.0
        %v322 = vmax.f32 %v306, 0.0
        %v323 = vmax.f32 %v307, 0.0
        %v324 = vmax.f32 %v308, 0.0
        %v325 = vmax.f32 %v309, 0.0
        %v326 = vmax.f32 %v310, 0.0
        %v327 = vmax.f32 %v311, 0.0
        %v328 = vmax.f32 %v312, 0.0
        %v329 = vmax.f32 %v313, 0.0
        %v330 = vmax.f32 %v314, 0.0
        %v331 = vmax.f32 %v315, 0.0
        %v332 = vmax.f32 %v316, 0.0
        %v333 = vmax.f32 %v317, 0.0
        %v334 = vpack.c.bf16 %v326, %v318
        %v335 = vpack.c.bf16 %v327, %v319
        %v336 = vpack.c.bf16 %v328, %v320
        %v337 = vpack.c.bf16 %v329, %v321
        %v338 = vpack.c.bf16 %v330, %v322
        %v339 = vpack.c.bf16 %v331, %v323
        %v340 = vpack.c.bf16 %v332, %v324
        %v341 = vpack.c.bf16 %v333, %v325
        %v342 = vld [vmem:[#allocation4] sm:$0xff]
        %v343 = vld [vmem:[#allocation4 + $0x8] sm:$0xff]
        %v344 = vld [vmem:[#allocation4 + $0x10] sm:$0xff]
        %v345 = vld [vmem:[#allocation4 + $0x18] sm:$0xff]
        %v346 = vld [vmem:[#allocation4 + $0x20] sm:$0xff]
        %v347 = vld [vmem:[#allocation4 + $0x28] sm:$0xff]
        %v348 = vld [vmem:[#allocation4 + $0x30] sm:$0xff]
        %v349 = vld [vmem:[#allocation4 + $0x38] sm:$0xff]
        %v350 = vld [vmem:[#allocation4 + $0x40] sm:$0xff]
        %v351 = vld [vmem:[#allocation4 + $0x48] sm:$0xff]
        %v352 = vld [vmem:[#allocation4 + $0x50] sm:$0xff]
        %v353 = vld [vmem:[#allocation4 + $0x58] sm:$0xff]
        %v354 = vld [vmem:[#allocation4 + $0x60] sm:$0xff]
        %v355 = vld [vmem:[#allocation4 + $0x68] sm:$0xff]
        %v356 = vld [vmem:[#allocation4 + $0x70] sm:$0xff]
        %v357 = vld [vmem:[#allocation4 + $0x78] sm:$0xff]
        %v358 = vld [vmem:[#allocation4 + $0x80] sm:$0xff]
        %v359 = vld [vmem:[#allocation4 + $0x88] sm:$0xff]
        %v360 = vld [vmem:[#allocation4 + $0x90] sm:$0xff]
        %v361 = vld [vmem:[#allocation4 + $0x98] sm:$0xff]
        %v362 = vld [vmem:[#allocation4 + $0xa0] sm:$0xff]
        %v363 = vld [vmem:[#allocation4 + $0xa8] sm:$0xff]
        %v364 = vld [vmem:[#allocation4 + $0xb0] sm:$0xff]
        %v365 = vld [vmem:[#allocation4 + $0xb8] sm:$0xff]
        %v366 = vld [vmem:[#allocation4 + $0xc0] sm:$0xff]
        %v367 = vld [vmem:[#allocation4 + $0xc8] sm:$0xff]
        %v368 = vld [vmem:[#allocation4 + $0xd0] sm:$0xff]
        %v369 = vld [vmem:[#allocation4 + $0xd8] sm:$0xff]
        %v370 = vld [vmem:[#allocation4 + $0xe0] sm:$0xff]
        %v371 = vld [vmem:[#allocation4 + $0xe8] sm:$0xff]
        %v372 = vld [vmem:[#allocation4 + $0xf0] sm:$0xff]
        %v373 = vld [vmem:[#allocation4 + $0xf8] sm:$0xff]
        %v374 = vld [vmem:[#allocation4 + $0x100] sm:$0xff]
        %v375 = vld [vmem:[#allocation4 + $0x108] sm:$0xff]
        %v376 = vld [vmem:[#allocation4 + $0x110] sm:$0xff]
        %v377 = vld [vmem:[#allocation4 + $0x118] sm:$0xff]
        %v378 = vld [vmem:[#allocation4 + $0x120] sm:$0xff]
        %v379 = vld [vmem:[#allocation4 + $0x128] sm:$0xff]
        %v380 = vld [vmem:[#allocation4 + $0x130] sm:$0xff]
        %v381 = vld [vmem:[#allocation4 + $0x138] sm:$0xff]
        %v382 = vld [vmem:[#allocation4 + $0x140] sm:$0xff]
        %v383 = vld [vmem:[#allocation4 + $0x148] sm:$0xff]
        %v384 = vld [vmem:[#allocation4 + $0x150] sm:$0xff]
        %v385 = vld [vmem:[#allocation4 + $0x158] sm:$0xff]
        %v386 = vld [vmem:[#allocation4 + $0x160] sm:$0xff]
        %v387 = vld [vmem:[#allocation4 + $0x168] sm:$0xff]
        %v388 = vld [vmem:[#allocation4 + $0x170] sm:$0xff]
        %v389 = vld [vmem:[#allocation4 + $0x178] sm:$0xff]
        %v390 = vld [vmem:[#allocation4 + $0x180] sm:$0xff]
        %v391 = vld [vmem:[#allocation4 + $0x188] sm:$0xff]
        %v392 = vld [vmem:[#allocation4 + $0x190] sm:$0xff]
        %v393 = vld [vmem:[#allocation4 + $0x198] sm:$0xff]
        %v394 = vld [vmem:[#allocation4 + $0x1a0] sm:$0xff]
        %v395 = vld [vmem:[#allocation4 + $0x1a8] sm:$0xff]
        %v396 = vld [vmem:[#allocation4 + $0x1b0] sm:$0xff]
        %v397 = vld [vmem:[#allocation4 + $0x1b8] sm:$0xff]
        %v398 = vld [vmem:[#allocation4 + $0x1c0] sm:$0xff]
        %v399 = vld [vmem:[#allocation4 + $0x1c8] sm:$0xff]
        %v400 = vld [vmem:[#allocation4 + $0x1d0] sm:$0xff]
        %v401 = vld [vmem:[#allocation4 + $0x1d8] sm:$0xff]
        %v402 = vld [vmem:[#allocation4 + $0x1e0] sm:$0xff]
        %v403 = vld [vmem:[#allocation4 + $0x1e8] sm:$0xff]
        %v404 = vld [vmem:[#allocation4 + $0x1f0] sm:$0xff]
        %v405 = vld [vmem:[#allocation4 + $0x1f8] sm:$0xff]
        %v406 = vld [vmem:[#allocation4 + $0x200] sm:$0xff]
        %v407 = vld [vmem:[#allocation4 + $0x208] sm:$0xff]
        %v408 = vld [vmem:[#allocation4 + $0x210] sm:$0xff]
        %v409 = vld [vmem:[#allocation4 + $0x218] sm:$0xff]
        %v410 = vld [vmem:[#allocation4 + $0x220] sm:$0xff]
        %v411 = vld [vmem:[#allocation4 + $0x228] sm:$0xff]
        %v412 = vld [vmem:[#allocation4 + $0x230] sm:$0xff]
        %v413 = vld [vmem:[#allocation4 + $0x238] sm:$0xff]
        %v414 = vld [vmem:[#allocation4 + $0x240] sm:$0xff]
        %v415 = vld [vmem:[#allocation4 + $0x248] sm:$0xff]
        %v416 = vld [vmem:[#allocation4 + $0x250] sm:$0xff]
        %v417 = vld [vmem:[#allocation4 + $0x258] sm:$0xff]
        %v418 = vld [vmem:[#allocation4 + $0x260] sm:$0xff]
        %v419 = vld [vmem:[#allocation4 + $0x268] sm:$0xff]
        %v420 = vld [vmem:[#allocation4 + $0x270] sm:$0xff]
        %v421 = vld [vmem:[#allocation4 + $0x278] sm:$0xff]
        %v422 = vld [vmem:[#allocation4 + $0x280] sm:$0xff]
        %v423 = vld [vmem:[#allocation4 + $0x288] sm:$0xff]
        %v424 = vld [vmem:[#allocation4 + $0x290] sm:$0xff]
        %v425 = vld [vmem:[#allocation4 + $0x298] sm:$0xff]
        %v426 = vld [vmem:[#allocation4 + $0x2a0] sm:$0xff]
        %v427 = vld [vmem:[#allocation4 + $0x2a8] sm:$0xff]
        %v428 = vld [vmem:[#allocation4 + $0x2b0] sm:$0xff]
        %v429 = vld [vmem:[#allocation4 + $0x2b8] sm:$0xff]
        %v430 = vld [vmem:[#allocation4 + $0x2c0] sm:$0xff]
        %v431 = vld [vmem:[#allocation4 + $0x2c8] sm:$0xff]
        %v432 = vld [vmem:[#allocation4 + $0x2d0] sm:$0xff]
        %v433 = vld [vmem:[#allocation4 + $0x2d8] sm:$0xff]
        %v434 = vld [vmem:[#allocation4 + $0x2e0] sm:$0xff]
        %v435 = vld [vmem:[#allocation4 + $0x2e8] sm:$0xff]
        %v436 = vld [vmem:[#allocation4 + $0x2f0] sm:$0xff]
        %v437 = vld [vmem:[#allocation4 + $0x2f8] sm:$0xff]
        %v438 = vld [vmem:[#allocation4 + $0x300] sm:$0xff]
        %v439 = vld [vmem:[#allocation4 + $0x308] sm:$0xff]
        %v440 = vld [vmem:[#allocation4 + $0x310] sm:$0xff]
        %v441 = vld [vmem:[#allocation4 + $0x318] sm:$0xff]
        %v442 = vld [vmem:[#allocation4 + $0x320] sm:$0xff]
        %v443 = vld [vmem:[#allocation4 + $0x328] sm:$0xff]
        %v444 = vld [vmem:[#allocation4 + $0x330] sm:$0xff]
        %v445 = vld [vmem:[#allocation4 + $0x338] sm:$0xff]
        %v446 = vld [vmem:[#allocation4 + $0x340] sm:$0xff]
        %v447 = vld [vmem:[#allocation4 + $0x348] sm:$0xff]
        %v448 = vld [vmem:[#allocation4 + $0x350] sm:$0xff]
        %v449 = vld [vmem:[#allocation4 + $0x358] sm:$0xff]
        %v450 = vld [vmem:[#allocation4 + $0x360] sm:$0xff]
        %v451 = vld [vmem:[#allocation4 + $0x368] sm:$0xff]
        %v452 = vld [vmem:[#allocation4 + $0x370] sm:$0xff]
        %v453 = vld [vmem:[#allocation4 + $0x378] sm:$0xff]
        %v454 = vld [vmem:[#allocation4 + $0x380] sm:$0xff]
        %v455 = vld [vmem:[#allocation4 + $0x388] sm:$0xff]
        %v456 = vld [vmem:[#allocation4 + $0x390] sm:$0xff]
        %v457 = vld [vmem:[#allocation4 + $0x398] sm:$0xff]
        %v458 = vld [vmem:[#allocation4 + $0x3a0] sm:$0xff]
        %v459 = vld [vmem:[#allocation4 + $0x3a8] sm:$0xff]
        %v460 = vld [vmem:[#allocation4 + $0x3b0] sm:$0xff]
        %v461 = vld [vmem:[#allocation4 + $0x3b8] sm:$0xff]
        %v462 = vld [vmem:[#allocation4 + $0x3c0] sm:$0xff]
        %v463 = vld [vmem:[#allocation4 + $0x3c8] sm:$0xff]
        %v464 = vld [vmem:[#allocation4 + $0x3d0] sm:$0xff]
        %v465 = vld [vmem:[#allocation4 + $0x3d8] sm:$0xff]
        %v466 = vld [vmem:[#allocation4 + $0x3e0] sm:$0xff]
        %v467 = vld [vmem:[#allocation4 + $0x3e8] sm:$0xff]
        %v468 = vld [vmem:[#allocation4 + $0x3f0] sm:$0xff]
        %v469 = vld [vmem:[#allocation4 + $0x3f8] sm:$0xff]
        %v470 = vld [vmem:[#allocation4 + $0x400] sm:$0xff]
        %v471 = vld [vmem:[#allocation4 + $0x408] sm:$0xff]
        %v472 = vld [vmem:[#allocation4 + $0x410] sm:$0xff]
        %v473 = vld [vmem:[#allocation4 + $0x418] sm:$0xff]
        %v474 = vld [vmem:[#allocation4 + $0x420] sm:$0xff]
        %v475 = vld [vmem:[#allocation4 + $0x428] sm:$0xff]
        %v476 = vld [vmem:[#allocation4 + $0x430] sm:$0xff]
        %v477 = vld [vmem:[#allocation4 + $0x438] sm:$0xff]
        %v478 = vld [vmem:[#allocation4 + $0x440] sm:$0xff]
        %v479 = vld [vmem:[#allocation4 + $0x448] sm:$0xff]
        %v480 = vld [vmem:[#allocation4 + $0x450] sm:$0xff]
        %v481 = vld [vmem:[#allocation4 + $0x458] sm:$0xff]
        %v482 = vld [vmem:[#allocation4 + $0x460] sm:$0xff]
        %v483 = vld [vmem:[#allocation4 + $0x468] sm:$0xff]
        %v484 = vld [vmem:[#allocation4 + $0x470] sm:$0xff]
        %v485 = vld [vmem:[#allocation4 + $0x478] sm:$0xff]
        %v486 = vld [vmem:[#allocation4 + $0x480] sm:$0xff]
        %v487 = vld [vmem:[#allocation4 + $0x488] sm:$0xff]
        %v488 = vld [vmem:[#allocation4 + $0x490] sm:$0xff]
        %v489 = vld [vmem:[#allocation4 + $0x498] sm:$0xff]
        %v490 = vld [vmem:[#allocation4 + $0x4a0] sm:$0xff]
        %v491 = vld [vmem:[#allocation4 + $0x4a8] sm:$0xff]
        %v492 = vld [vmem:[#allocation4 + $0x4b0] sm:$0xff]
        %v493 = vld [vmem:[#allocation4 + $0x4b8] sm:$0xff]
        %v494 = vld [vmem:[#allocation4 + $0x4c0] sm:$0xff]
        %v495 = vld [vmem:[#allocation4 + $0x4c8] sm:$0xff]
        %v496 = vld [vmem:[#allocation4 + $0x4d0] sm:$0xff]
        %v497 = vld [vmem:[#allocation4 + $0x4d8] sm:$0xff]
        %v498 = vld [vmem:[#allocation4 + $0x4e0] sm:$0xff]
        %v499 = vld [vmem:[#allocation4 + $0x4e8] sm:$0xff]
        %v500 = vld [vmem:[#allocation4 + $0x4f0] sm:$0xff]
        %v501 = vld [vmem:[#allocation4 + $0x4f8] sm:$0xff]
        %v502 = vld [vmem:[#allocation4 + $0x500] sm:$0xff]
        %v503 = vld [vmem:[#allocation4 + $0x508] sm:$0xff]
        %v504 = vld [vmem:[#allocation4 + $0x510] sm:$0xff]
        %v505 = vld [vmem:[#allocation4 + $0x518] sm:$0xff]
        %v506 = vld [vmem:[#allocation4 + $0x520] sm:$0xff]
        %v507 = vld [vmem:[#allocation4 + $0x528] sm:$0xff]
        %v508 = vld [vmem:[#allocation4 + $0x530] sm:$0xff]
        %v509 = vld [vmem:[#allocation4 + $0x538] sm:$0xff]
        %v510 = vld [vmem:[#allocation4 + $0x540] sm:$0xff]
        %v511 = vld [vmem:[#allocation4 + $0x548] sm:$0xff]
        %v512 = vld [vmem:[#allocation4 + $0x550] sm:$0xff]
        %v513 = vld [vmem:[#allocation4 + $0x558] sm:$0xff]
        %v514 = vld [vmem:[#allocation4 + $0x560] sm:$0xff]
        %v515 = vld [vmem:[#allocation4 + $0x568] sm:$0xff]
        %v516 = vld [vmem:[#allocation4 + $0x570] sm:$0xff]
        %v517 = vld [vmem:[#allocation4 + $0x578] sm:$0xff]
        %v518 = vld [vmem:[#allocation4 + $0x580] sm:$0xff]
        %v519 = vld [vmem:[#allocation4 + $0x588] sm:$0xff]
        %v520 = vld [vmem:[#allocation4 + $0x590] sm:$0xff]
        %v521 = vld [vmem:[#allocation4 + $0x598] sm:$0xff]
        %v522 = vld [vmem:[#allocation4 + $0x5a0] sm:$0xff]
        %v523 = vld [vmem:[#allocation4 + $0x5a8] sm:$0xff]
        %v524 = vld [vmem:[#allocation4 + $0x5b0] sm:$0xff]
        %v525 = vld [vmem:[#allocation4 + $0x5b8] sm:$0xff]
        %v526 = vld [vmem:[#allocation4 + $0x5c0] sm:$0xff]
        %v527 = vld [vmem:[#allocation4 + $0x5c8] sm:$0xff]
        %v528 = vld [vmem:[#allocation4 + $0x5d0] sm:$0xff]
        %v529 = vld [vmem:[#allocation4 + $0x5d8] sm:$0xff]
        %v530 = vld [vmem:[#allocation4 + $0x5e0] sm:$0xff]
        %v531 = vld [vmem:[#allocation4 + $0x5e8] sm:$0xff]
        %v532 = vld [vmem:[#allocation4 + $0x5f0] sm:$0xff]
        %v533 = vld [vmem:[#allocation4 + $0x5f8] sm:$0xff]
        %v534 = vld [vmem:[#allocation4 + $0x600] sm:$0xff]
        %v535 = vld [vmem:[#allocation4 + $0x608] sm:$0xff]
        %v536 = vld [vmem:[#allocation4 + $0x610] sm:$0xff]
        %v537 = vld [vmem:[#allocation4 + $0x618] sm:$0xff]
        %v538 = vld [vmem:[#allocation4 + $0x620] sm:$0xff]
        %v539 = vld [vmem:[#allocation4 + $0x628] sm:$0xff]
        %v540 = vld [vmem:[#allocation4 + $0x630] sm:$0xff]
        %v541 = vld [vmem:[#allocation4 + $0x638] sm:$0xff]
        %v542 = vld [vmem:[#allocation4 + $0x640] sm:$0xff]
        %v543 = vld [vmem:[#allocation4 + $0x648] sm:$0xff]
        %v544 = vld [vmem:[#allocation4 + $0x650] sm:$0xff]
        %v545 = vld [vmem:[#allocation4 + $0x658] sm:$0xff]
        %v546 = vld [vmem:[#allocation4 + $0x660] sm:$0xff]
        %v547 = vld [vmem:[#allocation4 + $0x668] sm:$0xff]
        %v548 = vld [vmem:[#allocation4 + $0x670] sm:$0xff]
        %v549 = vld [vmem:[#allocation4 + $0x678] sm:$0xff]
        %v550 = vld [vmem:[#allocation4 + $0x680] sm:$0xff]
        %v551 = vld [vmem:[#allocation4 + $0x688] sm:$0xff]
        %v552 = vld [vmem:[#allocation4 + $0x690] sm:$0xff]
        %v553 = vld [vmem:[#allocation4 + $0x698] sm:$0xff]
        %v554 = vld [vmem:[#allocation4 + $0x6a0] sm:$0xff]
        %v555 = vld [vmem:[#allocation4 + $0x6a8] sm:$0xff]
        %v556 = vld [vmem:[#allocation4 + $0x6b0] sm:$0xff]
        %v557 = vld [vmem:[#allocation4 + $0x6b8] sm:$0xff]
        %v558 = vld [vmem:[#allocation4 + $0x6c0] sm:$0xff]
        %v559 = vld [vmem:[#allocation4 + $0x6c8] sm:$0xff]
        %v560 = vld [vmem:[#allocation4 + $0x6d0] sm:$0xff]
        %v561 = vld [vmem:[#allocation4 + $0x6d8] sm:$0xff]
        %v562 = vld [vmem:[#allocation4 + $0x6e0] sm:$0xff]
        %v563 = vld [vmem:[#allocation4 + $0x6e8] sm:$0xff]
        %v564 = vld [vmem:[#allocation4 + $0x6f0] sm:$0xff]
        %v565 = vld [vmem:[#allocation4 + $0x6f8] sm:$0xff]
        %v566 = vld [vmem:[#allocation4 + $0x700] sm:$0xff]
        %v567 = vld [vmem:[#allocation4 + $0x708] sm:$0xff]
        %v568 = vld [vmem:[#allocation4 + $0x710] sm:$0xff]
        %v569 = vld [vmem:[#allocation4 + $0x718] sm:$0xff]
        %v570 = vld [vmem:[#allocation4 + $0x720] sm:$0xff]
        %v571 = vld [vmem:[#allocation4 + $0x728] sm:$0xff]
        %v572 = vld [vmem:[#allocation4 + $0x730] sm:$0xff]
        %v573 = vld [vmem:[#allocation4 + $0x738] sm:$0xff]
        %v574 = vld [vmem:[#allocation4 + $0x740] sm:$0xff]
        %v575 = vld [vmem:[#allocation4 + $0x748] sm:$0xff]
        %v576 = vld [vmem:[#allocation4 + $0x750] sm:$0xff]
        %v577 = vld [vmem:[#allocation4 + $0x758] sm:$0xff]
        %v578 = vld [vmem:[#allocation4 + $0x760] sm:$0xff]
        %v579 = vld [vmem:[#allocation4 + $0x768] sm:$0xff]
        %v580 = vld [vmem:[#allocation4 + $0x770] sm:$0xff]
        %v581 = vld [vmem:[#allocation4 + $0x778] sm:$0xff]
        %v582 = vld [vmem:[#allocation4 + $0x780] sm:$0xff]
        %v583 = vld [vmem:[#allocation4 + $0x788] sm:$0xff]
        %v584 = vld [vmem:[#allocation4 + $0x790] sm:$0xff]
        %v585 = vld [vmem:[#allocation4 + $0x798] sm:$0xff]
        %v586 = vld [vmem:[#allocation4 + $0x7a0] sm:$0xff]
        %v587 = vld [vmem:[#allocation4 + $0x7a8] sm:$0xff]
        %v588 = vld [vmem:[#allocation4 + $0x7b0] sm:$0xff]
        %v589 = vld [vmem:[#allocation4 + $0x7b8] sm:$0xff]
        %v590 = vld [vmem:[#allocation4 + $0x7c0] sm:$0xff]
        %v591 = vld [vmem:[#allocation4 + $0x7c8] sm:$0xff]
        %v592 = vld [vmem:[#allocation4 + $0x7d0] sm:$0xff]
        %v593 = vld [vmem:[#allocation4 + $0x7d8] sm:$0xff]
        %v594 = vld [vmem:[#allocation4 + $0x7e0] sm:$0xff]
        %v595 = vld [vmem:[#allocation4 + $0x7e8] sm:$0xff]
        %v596 = vld [vmem:[#allocation4 + $0x7f0] sm:$0xff]
        %v597 = vld [vmem:[#allocation4 + $0x7f8] sm:$0xff]
        %v598 = vld [vmem:[#allocation4 + $0x800] sm:$0xff]
        %v599 = vld [vmem:[#allocation4 + $0x808] sm:$0xff]
        %v600 = vld [vmem:[#allocation4 + $0x810] sm:$0xff]
        %v601 = vld [vmem:[#allocation4 + $0x818] sm:$0xff]
        %v602 = vld [vmem:[#allocation4 + $0x820] sm:$0xff]
        %v603 = vld [vmem:[#allocation4 + $0x828] sm:$0xff]
        %v604 = vld [vmem:[#allocation4 + $0x830] sm:$0xff]
        %v605 = vld [vmem:[#allocation4 + $0x838] sm:$0xff]
        %v606 = vld [vmem:[#allocation4 + $0x840] sm:$0xff]
        %v607 = vld [vmem:[#allocation4 + $0x848] sm:$0xff]
        %v608 = vld [vmem:[#allocation4 + $0x850] sm:$0xff]
        %v609 = vld [vmem:[#allocation4 + $0x858] sm:$0xff]
        %v610 = vld [vmem:[#allocation4 + $0x860] sm:$0xff]
        %v611 = vld [vmem:[#allocation4 + $0x868] sm:$0xff]
        %v612 = vld [vmem:[#allocation4 + $0x870] sm:$0xff]
        %v613 = vld [vmem:[#allocation4 + $0x878] sm:$0xff]
        %v614 = vld [vmem:[#allocation4 + $0x880] sm:$0xff]
        %v615 = vld [vmem:[#allocation4 + $0x888] sm:$0xff]
        %v616 = vld [vmem:[#allocation4 + $0x890] sm:$0xff]
        %v617 = vld [vmem:[#allocation4 + $0x898] sm:$0xff]
        %v618 = vld [vmem:[#allocation4 + $0x8a0] sm:$0xff]
        %v619 = vld [vmem:[#allocation4 + $0x8a8] sm:$0xff]
        %v620 = vld [vmem:[#allocation4 + $0x8b0] sm:$0xff]
        %v621 = vld [vmem:[#allocation4 + $0x8b8] sm:$0xff]
        %v622 = vld [vmem:[#allocation4 + $0x8c0] sm:$0xff]
        %v623 = vld [vmem:[#allocation4 + $0x8c8] sm:$0xff]
        %v624 = vld [vmem:[#allocation4 + $0x8d0] sm:$0xff]
        %v625 = vld [vmem:[#allocation4 + $0x8d8] sm:$0xff]
        %v626 = vld [vmem:[#allocation4 + $0x8e0] sm:$0xff]
        %v627 = vld [vmem:[#allocation4 + $0x8e8] sm:$0xff]
        %v628 = vld [vmem:[#allocation4 + $0x8f0] sm:$0xff]
        %v629 = vld [vmem:[#allocation4 + $0x8f8] sm:$0xff]
        %v630 = vld [vmem:[#allocation4 + $0x900] sm:$0xff]
        %v631 = vld [vmem:[#allocation4 + $0x908] sm:$0xff]
        %v632 = vld [vmem:[#allocation4 + $0x910] sm:$0xff]
        %v633 = vld [vmem:[#allocation4 + $0x918] sm:$0xff]
        %v634 = vld [vmem:[#allocation4 + $0x920] sm:$0xff]
        %v635 = vld [vmem:[#allocation4 + $0x928] sm:$0xff]
        %v636 = vld [vmem:[#allocation4 + $0x930] sm:$0xff]
        %v637 = vld [vmem:[#allocation4 + $0x938] sm:$0xff]
        %v638 = vld [vmem:[#allocation4 + $0x940] sm:$0xff]
        %v639 = vld [vmem:[#allocation4 + $0x948] sm:$0xff]
        %v640 = vld [vmem:[#allocation4 + $0x950] sm:$0xff]
        %v641 = vld [vmem:[#allocation4 + $0x958] sm:$0xff]
        %v642 = vld [vmem:[#allocation4 + $0x960] sm:$0xff]
        %v643 = vld [vmem:[#allocation4 + $0x968] sm:$0xff]
        %v644 = vld [vmem:[#allocation4 + $0x970] sm:$0xff]
        %v645 = vld [vmem:[#allocation4 + $0x978] sm:$0xff]
        %v646 = vld [vmem:[#allocation4 + $0x980] sm:$0xff]
        %v647 = vld [vmem:[#allocation4 + $0x988] sm:$0xff]
        %v648 = vld [vmem:[#allocation4 + $0x990] sm:$0xff]
        %v649 = vld [vmem:[#allocation4 + $0x998] sm:$0xff]
        %v650 = vld [vmem:[#allocation4 + $0x9a0] sm:$0xff]
        %v651 = vld [vmem:[#allocation4 + $0x9a8] sm:$0xff]
        %v652 = vld [vmem:[#allocation4 + $0x9b0] sm:$0xff]
        %v653 = vld [vmem:[#allocation4 + $0x9b8] sm:$0xff]
        %v654 = vld [vmem:[#allocation4 + $0x9c0] sm:$0xff]
        %v655 = vld [vmem:[#allocation4 + $0x9c8] sm:$0xff]
        %v656 = vld [vmem:[#allocation4 + $0x9d0] sm:$0xff]
        %v657 = vld [vmem:[#allocation4 + $0x9d8] sm:$0xff]
        %v658 = vld [vmem:[#allocation4 + $0x9e0] sm:$0xff]
        %v659 = vld [vmem:[#allocation4 + $0x9e8] sm:$0xff]
        %v660 = vld [vmem:[#allocation4 + $0x9f0] sm:$0xff]
        %v661 = vld [vmem:[#allocation4 + $0x9f8] sm:$0xff]
        %v662 = vld [vmem:[#allocation4 + $0xa00] sm:$0xff]
        %v663 = vld [vmem:[#allocation4 + $0xa08] sm:$0xff]
        %v664 = vld [vmem:[#allocation4 + $0xa10] sm:$0xff]
        %v665 = vld [vmem:[#allocation4 + $0xa18] sm:$0xff]
        %v666 = vld [vmem:[#allocation4 + $0xa20] sm:$0xff]
        %v667 = vld [vmem:[#allocation4 + $0xa28] sm:$0xff]
        %v668 = vld [vmem:[#allocation4 + $0xa30] sm:$0xff]
        %v669 = vld [vmem:[#allocation4 + $0xa38] sm:$0xff]
        %v670 = vld [vmem:[#allocation4 + $0xa40] sm:$0xff]
        %v671 = vld [vmem:[#allocation4 + $0xa48] sm:$0xff]
        %v672 = vld [vmem:[#allocation4 + $0xa50] sm:$0xff]
        %v673 = vld [vmem:[#allocation4 + $0xa58] sm:$0xff]
        %v674 = vld [vmem:[#allocation4 + $0xa60] sm:$0xff]
        %v675 = vld [vmem:[#allocation4 + $0xa68] sm:$0xff]
        %v676 = vld [vmem:[#allocation4 + $0xa70] sm:$0xff]
        %v677 = vld [vmem:[#allocation4 + $0xa78] sm:$0xff]
        %v678 = vld [vmem:[#allocation4 + $0xa80] sm:$0xff]
        %v679 = vld [vmem:[#allocation4 + $0xa88] sm:$0xff]
        %v680 = vld [vmem:[#allocation4 + $0xa90] sm:$0xff]
        %v681 = vld [vmem:[#allocation4 + $0xa98] sm:$0xff]
        %v682 = vld [vmem:[#allocation4 + $0xaa0] sm:$0xff]
        %v683 = vld [vmem:[#allocation4 + $0xaa8] sm:$0xff]
        %v684 = vld [vmem:[#allocation4 + $0xab0] sm:$0xff]
        %v685 = vld [vmem:[#allocation4 + $0xab8] sm:$0xff]
        %v686 = vld [vmem:[#allocation4 + $0xac0] sm:$0xff]
        %v687 = vld [vmem:[#allocation4 + $0xac8] sm:$0xff]
        %v688 = vld [vmem:[#allocation4 + $0xad0] sm:$0xff]
        %v689 = vld [vmem:[#allocation4 + $0xad8] sm:$0xff]
        %v690 = vld [vmem:[#allocation4 + $0xae0] sm:$0xff]
        %v691 = vld [vmem:[#allocation4 + $0xae8] sm:$0xff]
        %v692 = vld [vmem:[#allocation4 + $0xaf0] sm:$0xff]
        %v693 = vld [vmem:[#allocation4 + $0xaf8] sm:$0xff]
        %v694 = vld [vmem:[#allocation4 + $0xb00] sm:$0xff]
        %v695 = vld [vmem:[#allocation4 + $0xb08] sm:$0xff]
        %v696 = vld [vmem:[#allocation4 + $0xb10] sm:$0xff]
        %v697 = vld [vmem:[#allocation4 + $0xb18] sm:$0xff]
        %v698 = vld [vmem:[#allocation4 + $0xb20] sm:$0xff]
        %v699 = vld [vmem:[#allocation4 + $0xb28] sm:$0xff]
        %v700 = vld [vmem:[#allocation4 + $0xb30] sm:$0xff]
        %v701 = vld [vmem:[#allocation4 + $0xb38] sm:$0xff]
        %v702 = vld [vmem:[#allocation4 + $0xb40] sm:$0xff]
        %v703 = vld [vmem:[#allocation4 + $0xb48] sm:$0xff]
        %v704 = vld [vmem:[#allocation4 + $0xb50] sm:$0xff]
        %v705 = vld [vmem:[#allocation4 + $0xb58] sm:$0xff]
        %v706 = vld [vmem:[#allocation4 + $0xb60] sm:$0xff]
        %v707 = vld [vmem:[#allocation4 + $0xb68] sm:$0xff]
        %v708 = vld [vmem:[#allocation4 + $0xb70] sm:$0xff]
        %v709 = vld [vmem:[#allocation4 + $0xb78] sm:$0xff]
        %v710 = vld [vmem:[#allocation4 + $0xb80] sm:$0xff]
        %v711 = vld [vmem:[#allocation4 + $0xb88] sm:$0xff]
        %v712 = vld [vmem:[#allocation4 + $0xb90] sm:$0xff]
        %v713 = vld [vmem:[#allocation4 + $0xb98] sm:$0xff]
        %v714 = vld [vmem:[#allocation4 + $0xba0] sm:$0xff]
        %v715 = vld [vmem:[#allocation4 + $0xba8] sm:$0xff]
        %v716 = vld [vmem:[#allocation4 + $0xbb0] sm:$0xff]
        %v717 = vld [vmem:[#allocation4 + $0xbb8] sm:$0xff]
        %v718 = vld [vmem:[#allocation4 + $0xbc0] sm:$0xff]
        %v719 = vld [vmem:[#allocation4 + $0xbc8] sm:$0xff]
        %v720 = vld [vmem:[#allocation4 + $0xbd0] sm:$0xff]
        %v721 = vld [vmem:[#allocation4 + $0xbd8] sm:$0xff]
        %v722 = vld [vmem:[#allocation4 + $0xbe0] sm:$0xff]
        %v723 = vld [vmem:[#allocation4 + $0xbe8] sm:$0xff]
        %v724 = vld [vmem:[#allocation4 + $0xbf0] sm:$0xff]
        %v725 = vld [vmem:[#allocation4 + $0xbf8] sm:$0xff]
        %v726 = vld [vmem:[#allocation4 + $0xc00] sm:$0xff]
        %v727 = vld [vmem:[#allocation4 + $0xc08] sm:$0xff]
        %v728 = vld [vmem:[#allocation4 + $0xc10] sm:$0xff]
        %v729 = vld [vmem:[#allocation4 + $0xc18] sm:$0xff]
        %v730 = vld [vmem:[#allocation4 + $0xc20] sm:$0xff]
        %v731 = vld [vmem:[#allocation4 + $0xc28] sm:$0xff]
        %v732 = vld [vmem:[#allocation4 + $0xc30] sm:$0xff]
        %v733 = vld [vmem:[#allocation4 + $0xc38] sm:$0xff]
        %v734 = vld [vmem:[#allocation4 + $0xc40] sm:$0xff]
        %v735 = vld [vmem:[#allocation4 + $0xc48] sm:$0xff]
        %v736 = vld [vmem:[#allocation4 + $0xc50] sm:$0xff]
        %v737 = vld [vmem:[#allocation4 + $0xc58] sm:$0xff]
        %v738 = vld [vmem:[#allocation4 + $0xc60] sm:$0xff]
        %v739 = vld [vmem:[#allocation4 + $0xc68] sm:$0xff]
        %v740 = vld [vmem:[#allocation4 + $0xc70] sm:$0xff]
        %v741 = vld [vmem:[#allocation4 + $0xc78] sm:$0xff]
        %v742 = vld [vmem:[#allocation4 + $0xc80] sm:$0xff]
        %v743 = vld [vmem:[#allocation4 + $0xc88] sm:$0xff]
        %v744 = vld [vmem:[#allocation4 + $0xc90] sm:$0xff]
        %v745 = vld [vmem:[#allocation4 + $0xc98] sm:$0xff]
        %v746 = vld [vmem:[#allocation4 + $0xca0] sm:$0xff]
        %v747 = vld [vmem:[#allocation4 + $0xca8] sm:$0xff]
        %v748 = vld [vmem:[#allocation4 + $0xcb0] sm:$0xff]
        %v749 = vld [vmem:[#allocation4 + $0xcb8] sm:$0xff]
        %v750 = vld [vmem:[#allocation4 + $0xcc0] sm:$0xff]
        %v751 = vld [vmem:[#allocation4 + $0xcc8] sm:$0xff]
        %v752 = vld [vmem:[#allocation4 + $0xcd0] sm:$0xff]
        %v753 = vld [vmem:[#allocation4 + $0xcd8] sm:$0xff]
        %v754 = vld [vmem:[#allocation4 + $0xce0] sm:$0xff]
        %v755 = vld [vmem:[#allocation4 + $0xce8] sm:$0xff]
        %v756 = vld [vmem:[#allocation4 + $0xcf0] sm:$0xff]
        %v757 = vld [vmem:[#allocation4 + $0xcf8] sm:$0xff]
        %v758 = vld [vmem:[#allocation4 + $0xd00] sm:$0xff]
        %v759 = vld [vmem:[#allocation4 + $0xd08] sm:$0xff]
        %v760 = vld [vmem:[#allocation4 + $0xd10] sm:$0xff]
        %v761 = vld [vmem:[#allocation4 + $0xd18] sm:$0xff]
        %v762 = vld [vmem:[#allocation4 + $0xd20] sm:$0xff]
        %v763 = vld [vmem:[#allocation4 + $0xd28] sm:$0xff]
        %v764 = vld [vmem:[#allocation4 + $0xd30] sm:$0xff]
        %v765 = vld [vmem:[#allocation4 + $0xd38] sm:$0xff]
        %v766 = vld [vmem:[#allocation4 + $0xd40] sm:$0xff]
        %v767 = vld [vmem:[#allocation4 + $0xd48] sm:$0xff]
        %v768 = vld [vmem:[#allocation4 + $0xd50] sm:$0xff]
        %v769 = vld [vmem:[#allocation4 + $0xd58] sm:$0xff]
        %v770 = vld [vmem:[#allocation4 + $0xd60] sm:$0xff]
        %v771 = vld [vmem:[#allocation4 + $0xd68] sm:$0xff]
        %v772 = vld [vmem:[#allocation4 + $0xd70] sm:$0xff]
        %v773 = vld [vmem:[#allocation4 + $0xd78] sm:$0xff]
        %v774 = vld [vmem:[#allocation4 + $0xd80] sm:$0xff]
        %v775 = vld [vmem:[#allocation4 + $0xd88] sm:$0xff]
        %v776 = vld [vmem:[#allocation4 + $0xd90] sm:$0xff]
        %v777 = vld [vmem:[#allocation4 + $0xd98] sm:$0xff]
        %v778 = vld [vmem:[#allocation4 + $0xda0] sm:$0xff]
        %v779 = vld [vmem:[#allocation4 + $0xda8] sm:$0xff]
        %v780 = vld [vmem:[#allocation4 + $0xdb0] sm:$0xff]
        %v781 = vld [vmem:[#allocation4 + $0xdb8] sm:$0xff]
        %v782 = vld [vmem:[#allocation4 + $0xdc0] sm:$0xff]
        %v783 = vld [vmem:[#allocation4 + $0xdc8] sm:$0xff]
        %v784 = vld [vmem:[#allocation4 + $0xdd0] sm:$0xff]
        %v785 = vld [vmem:[#allocation4 + $0xdd8] sm:$0xff]
        %v786 = vld [vmem:[#allocation4 + $0xde0] sm:$0xff]
        %v787 = vld [vmem:[#allocation4 + $0xde8] sm:$0xff]
        %v788 = vld [vmem:[#allocation4 + $0xdf0] sm:$0xff]
        %v789 = vld [vmem:[#allocation4 + $0xdf8] sm:$0xff]
        %v790 = vld [vmem:[#allocation4 + $0xe00] sm:$0xff]
        %v791 = vld [vmem:[#allocation4 + $0xe08] sm:$0xff]
        %v792 = vld [vmem:[#allocation4 + $0xe10] sm:$0xff]
        %v793 = vld [vmem:[#allocation4 + $0xe18] sm:$0xff]
        %v794 = vld [vmem:[#allocation4 + $0xe20] sm:$0xff]
        %v795 = vld [vmem:[#allocation4 + $0xe28] sm:$0xff]
        %v796 = vld [vmem:[#allocation4 + $0xe30] sm:$0xff]
        %v797 = vld [vmem:[#allocation4 + $0xe38] sm:$0xff]
        %v798 = vld [vmem:[#allocation4 + $0xe40] sm:$0xff]
        %v799 = vld [vmem:[#allocation4 + $0xe48] sm:$0xff]
        %v800 = vld [vmem:[#allocation4 + $0xe50] sm:$0xff]
        %v801 = vld [vmem:[#allocation4 + $0xe58] sm:$0xff]
        %v802 = vld [vmem:[#allocation4 + $0xe60] sm:$0xff]
        %v803 = vld [vmem:[#allocation4 + $0xe68] sm:$0xff]
        %v804 = vld [vmem:[#allocation4 + $0xe70] sm:$0xff]
        %v805 = vld [vmem:[#allocation4 + $0xe78] sm:$0xff]
        %v806 = vld [vmem:[#allocation4 + $0xe80] sm:$0xff]
        %v807 = vld [vmem:[#allocation4 + $0xe88] sm:$0xff]
        %v808 = vld [vmem:[#allocation4 + $0xe90] sm:$0xff]
        %v809 = vld [vmem:[#allocation4 + $0xe98] sm:$0xff]
        %v810 = vld [vmem:[#allocation4 + $0xea0] sm:$0xff]
        %v811 = vld [vmem:[#allocation4 + $0xea8] sm:$0xff]
        %v812 = vld [vmem:[#allocation4 + $0xeb0] sm:$0xff]
        %v813 = vld [vmem:[#allocation4 + $0xeb8] sm:$0xff]
        %v814 = vld [vmem:[#allocation4 + $0xec0] sm:$0xff]
        %v815 = vld [vmem:[#allocation4 + $0xec8] sm:$0xff]
        %v816 = vld [vmem:[#allocation4 + $0xed0] sm:$0xff]
        %v817 = vld [vmem:[#allocation4 + $0xed8] sm:$0xff]
        %v818 = vld [vmem:[#allocation4 + $0xee0] sm:$0xff]
        %v819 = vld [vmem:[#allocation4 + $0xee8] sm:$0xff]
        %v820 = vld [vmem:[#allocation4 + $0xef0] sm:$0xff]
        %v821 = vld [vmem:[#allocation4 + $0xef8] sm:$0xff]
        %v822 = vld [vmem:[#allocation4 + $0xf00] sm:$0xff]
        %v823 = vld [vmem:[#allocation4 + $0xf08] sm:$0xff]
        %v824 = vld [vmem:[#allocation4 + $0xf10] sm:$0xff]
        %v825 = vld [vmem:[#allocation4 + $0xf18] sm:$0xff]
        %v826 = vld [vmem:[#allocation4 + $0xf20] sm:$0xff]
        %v827 = vld [vmem:[#allocation4 + $0xf28] sm:$0xff]
        %v828 = vld [vmem:[#allocation4 + $0xf30] sm:$0xff]
        %v829 = vld [vmem:[#allocation4 + $0xf38] sm:$0xff]
        %v830 = vld [vmem:[#allocation4 + $0xf40] sm:$0xff]
        %v831 = vld [vmem:[#allocation4 + $0xf48] sm:$0xff]
        %v832 = vld [vmem:[#allocation4 + $0xf50] sm:$0xff]
        %v833 = vld [vmem:[#allocation4 + $0xf58] sm:$0xff]
        %v834 = vld [vmem:[#allocation4 + $0xf60] sm:$0xff]
        %v835 = vld [vmem:[#allocation4 + $0xf68] sm:$0xff]
        %v836 = vld [vmem:[#allocation4 + $0xf70] sm:$0xff]
        %v837 = vld [vmem:[#allocation4 + $0xf78] sm:$0xff]
        %v838 = vld [vmem:[#allocation4 + $0xf80] sm:$0xff]
        %v839 = vld [vmem:[#allocation4 + $0xf88] sm:$0xff]
        %v840 = vld [vmem:[#allocation4 + $0xf90] sm:$0xff]
        %v841 = vld [vmem:[#allocation4 + $0xf98] sm:$0xff]
        %v842 = vld [vmem:[#allocation4 + $0xfa0] sm:$0xff]
        %v843 = vld [vmem:[#allocation4 + $0xfa8] sm:$0xff]
        %v844 = vld [vmem:[#allocation4 + $0xfb0] sm:$0xff]
        %v845 = vld [vmem:[#allocation4 + $0xfb8] sm:$0xff]
        %v846 = vld [vmem:[#allocation4 + $0xfc0] sm:$0xff]
        %v847 = vld [vmem:[#allocation4 + $0xfc8] sm:$0xff]
        %v848 = vld [vmem:[#allocation4 + $0xfd0] sm:$0xff]
        %v849 = vld [vmem:[#allocation4 + $0xfd8] sm:$0xff]
        %v850 = vld [vmem:[#allocation4 + $0xfe0] sm:$0xff]
        %v851 = vld [vmem:[#allocation4 + $0xfe8] sm:$0xff]
        %v852 = vld [vmem:[#allocation4 + $0xff0] sm:$0xff]
        %v853 = vld [vmem:[#allocation4 + $0xff8] sm:$0xff]
        %v854 = vlaneseq
        %v855 = vshrl.u32 %v854, 7
        %v856 = vsub.s32 2, %v855
        %v857 = vrot.slane %v204, %v856
        %v858 = vlaneseq
        %v859 = vshrl.u32 %v858, 7
        %v860 = vsub.s32 2, %v859
        %v861 = vrot.slane %v205, %v860
        %v862 = vlaneseq
        %v863 = vshrl.u32 %v862, 7
        %v864 = vsub.s32 2, %v863
        %v865 = vrot.slane %v206, %v864
        %v866 = vlaneseq
        %v867 = vshrl.u32 %v866, 7
        %v868 = vsub.s32 2, %v867
        %v869 = vrot.slane %v207, %v868
        %v870 = vlaneseq
        %v871 = vshrl.u32 %v870, 7
        %v872 = vsub.s32 2, %v871
        %v873 = vrot.slane %v208, %v872
        %v874 = vlaneseq
        %v875 = vshrl.u32 %v874, 7
        %v876 = vsub.s32 2, %v875
        %v877 = vrot.slane %v209, %v876
        %v878 = vlaneseq
        %v879 = vshrl.u32 %v878, 7
        %v880 = vsub.s32 2, %v879
        %v881 = vrot.slane %v210, %v880
        %v882 = vlaneseq
        %v883 = vshrl.u32 %v882, 7
        %v884 = vsub.s32 2, %v883
        %v885 = vrot.slane %v211, %v884
        %v1398 = vunpack.c.l.b16 %v342
        %v1399 = vunpack.c.h.b16 %v342
        %v1400 = vunpack.c.l.b16 %v343
        %v1401 = vunpack.c.h.b16 %v343
        %v1402 = vunpack.c.l.b16 %v344
        %v1403 = vunpack.c.h.b16 %v344
        %v1404 = vunpack.c.l.b16 %v345
        %v1405 = vunpack.c.h.b16 %v345
        %v1406 = vunpack.c.l.b16 %v346
        %v1407 = vunpack.c.h.b16 %v346
        %v1408 = vunpack.c.l.b16 %v347
        %v1409 = vunpack.c.h.b16 %v347
        %v1410 = vunpack.c.l.b16 %v348
        %v1411 = vunpack.c.h.b16 %v348
        %v1412 = vunpack.c.l.b16 %v349
        %v1413 = vunpack.c.h.b16 %v349
        %v1414 = vunpack.c.l.b16 %v350
        %v1415 = vunpack.c.h.b16 %v350
        %v1416 = vunpack.c.l.b16 %v351
        %v1417 = vunpack.c.h.b16 %v351
        %v1418 = vunpack.c.l.b16 %v352
        %v1419 = vunpack.c.h.b16 %v352
        %v1420 = vunpack.c.l.b16 %v353
        %v1421 = vunpack.c.h.b16 %v353
        %v1422 = vunpack.c.l.b16 %v354
        %v1423 = vunpack.c.h.b16 %v354
        %v1424 = vunpack.c.l.b16 %v355
        %v1425 = vunpack.c.h.b16 %v355
        %v1426 = vunpack.c.l.b16 %v356
        %v1427 = vunpack.c.h.b16 %v356
        %v1428 = vunpack.c.l.b16 %v357
        %v1429 = vunpack.c.h.b16 %v357
        %v1430 = vunpack.c.l.b16 %v358
        %v1431 = vunpack.c.h.b16 %v358
        %v1432 = vunpack.c.l.b16 %v359
        %v1433 = vunpack.c.h.b16 %v359
        %v1434 = vunpack.c.l.b16 %v360
        %v1435 = vunpack.c.h.b16 %v360
        %v1436 = vunpack.c.l.b16 %v361
        %v1437 = vunpack.c.h.b16 %v361
        %v1438 = vunpack.c.l.b16 %v362
        %v1439 = vunpack.c.h.b16 %v362
        %v1440 = vunpack.c.l.b16 %v363
        %v1441 = vunpack.c.h.b16 %v363
        %v1442 = vunpack.c.l.b16 %v364
        %v1443 = vunpack.c.h.b16 %v364
        %v1444 = vunpack.c.l.b16 %v365
        %v1445 = vunpack.c.h.b16 %v365
        %v1446 = vunpack.c.l.b16 %v366
        %v1447 = vunpack.c.h.b16 %v366
        %v1448 = vunpack.c.l.b16 %v367
        %v1449 = vunpack.c.h.b16 %v367
        %v1450 = vunpack.c.l.b16 %v368
        %v1451 = vunpack.c.h.b16 %v368
        %v1452 = vunpack.c.l.b16 %v369
        %v1453 = vunpack.c.h.b16 %v369
        %v1454 = vunpack.c.l.b16 %v370
        %v1455 = vunpack.c.h.b16 %v370
        %v1456 = vunpack.c.l.b16 %v371
        %v1457 = vunpack.c.h.b16 %v371
        %v1458 = vunpack.c.l.b16 %v372
        %v1459 = vunpack.c.h.b16 %v372
        %v1460 = vunpack.c.l.b16 %v373
        %v1461 = vunpack.c.h.b16 %v373
        %v1462 = vunpack.c.l.b16 %v374
        %v1463 = vunpack.c.h.b16 %v374
        %v1464 = vunpack.c.l.b16 %v375
        %v1465 = vunpack.c.h.b16 %v375
        %v1466 = vunpack.c.l.b16 %v376
        %v1467 = vunpack.c.h.b16 %v376
        %v1468 = vunpack.c.l.b16 %v377
        %v1469 = vunpack.c.h.b16 %v377
        %v1470 = vunpack.c.l.b16 %v378
        %v1471 = vunpack.c.h.b16 %v378
        %v1472 = vunpack.c.l.b16 %v379
        %v1473 = vunpack.c.h.b16 %v379
        %v1474 = vunpack.c.l.b16 %v380
        %v1475 = vunpack.c.h.b16 %v380
        %v1476 = vunpack.c.l.b16 %v381
        %v1477 = vunpack.c.h.b16 %v381
        %v1478 = vunpack.c.l.b16 %v382
        %v1479 = vunpack.c.h.b16 %v382
        %v1480 = vunpack.c.l.b16 %v383
        %v1481 = vunpack.c.h.b16 %v383
        %v1482 = vunpack.c.l.b16 %v384
        %v1483 = vunpack.c.h.b16 %v384
        %v1484 = vunpack.c.l.b16 %v385
        %v1485 = vunpack.c.h.b16 %v385
        %v1486 = vunpack.c.l.b16 %v386
        %v1487 = vunpack.c.h.b16 %v386
        %v1488 = vunpack.c.l.b16 %v387
        %v1489 = vunpack.c.h.b16 %v387
        %v1490 = vunpack.c.l.b16 %v388
        %v1491 = vunpack.c.h.b16 %v388
        %v1492 = vunpack.c.l.b16 %v389
        %v1493 = vunpack.c.h.b16 %v389
        %v1494 = vunpack.c.l.b16 %v390
        %v1495 = vunpack.c.h.b16 %v390
        %v1496 = vunpack.c.l.b16 %v391
        %v1497 = vunpack.c.h.b16 %v391
        %v1498 = vunpack.c.l.b16 %v392
        %v1499 = vunpack.c.h.b16 %v392
        %v1500 = vunpack.c.l.b16 %v393
        %v1501 = vunpack.c.h.b16 %v393
        %v1502 = vunpack.c.l.b16 %v394
        %v1503 = vunpack.c.h.b16 %v394
        %v1504 = vunpack.c.l.b16 %v395
        %v1505 = vunpack.c.h.b16 %v395
        %v1506 = vunpack.c.l.b16 %v396
        %v1507 = vunpack.c.h.b16 %v396
        %v1508 = vunpack.c.l.b16 %v397
        %v1509 = vunpack.c.h.b16 %v397
        %v1510 = vunpack.c.l.b16 %v398
        %v1511 = vunpack.c.h.b16 %v398
        %v1512 = vunpack.c.l.b16 %v399
        %v1513 = vunpack.c.h.b16 %v399
        %v1514 = vunpack.c.l.b16 %v400
        %v1515 = vunpack.c.h.b16 %v400
        %v1516 = vunpack.c.l.b16 %v401
        %v1517 = vunpack.c.h.b16 %v401
        %v1518 = vunpack.c.l.b16 %v402
        %v1519 = vunpack.c.h.b16 %v402
        %v1520 = vunpack.c.l.b16 %v403
        %v1521 = vunpack.c.h.b16 %v403
        %v1522 = vunpack.c.l.b16 %v404
        %v1523 = vunpack.c.h.b16 %v404
        %v1524 = vunpack.c.l.b16 %v405
        %v1525 = vunpack.c.h.b16 %v405
        %v1526 = vunpack.c.l.b16 %v406
        %v1527 = vunpack.c.h.b16 %v406
        %v1528 = vunpack.c.l.b16 %v407
        %v1529 = vunpack.c.h.b16 %v407
        %v1530 = vunpack.c.l.b16 %v408
        %v1531 = vunpack.c.h.b16 %v408
        %v1532 = vunpack.c.l.b16 %v409
        %v1533 = vunpack.c.h.b16 %v409
        %v1534 = vunpack.c.l.b16 %v410
        %v1535 = vunpack.c.h.b16 %v410
        %v1536 = vunpack.c.l.b16 %v411
        %v1537 = vunpack.c.h.b16 %v411
        %v1538 = vunpack.c.l.b16 %v412
        %v1539 = vunpack.c.h.b16 %v412
        %v1540 = vunpack.c.l.b16 %v413
        %v1541 = vunpack.c.h.b16 %v413
        %v1542 = vunpack.c.l.b16 %v414
        %v1543 = vunpack.c.h.b16 %v414
        %v1544 = vunpack.c.l.b16 %v415
        %v1545 = vunpack.c.h.b16 %v415
        %v1546 = vunpack.c.l.b16 %v416
        %v1547 = vunpack.c.h.b16 %v416
        %v1548 = vunpack.c.l.b16 %v417
        %v1549 = vunpack.c.h.b16 %v417
        %v1550 = vunpack.c.l.b16 %v418
        %v1551 = vunpack.c.h.b16 %v418
        %v1552 = vunpack.c.l.b16 %v419
        %v1553 = vunpack.c.h.b16 %v419
        %v1554 = vunpack.c.l.b16 %v420
        %v1555 = vunpack.c.h.b16 %v420
        %v1556 = vunpack.c.l.b16 %v421
        %v1557 = vunpack.c.h.b16 %v421
        %v1558 = vunpack.c.l.b16 %v422
        %v1559 = vunpack.c.h.b16 %v422
        %v1560 = vunpack.c.l.b16 %v423
        %v1561 = vunpack.c.h.b16 %v423
        %v1562 = vunpack.c.l.b16 %v424
        %v1563 = vunpack.c.h.b16 %v424
        %v1564 = vunpack.c.l.b16 %v425
        %v1565 = vunpack.c.h.b16 %v425
        %v1566 = vunpack.c.l.b16 %v426
        %v1567 = vunpack.c.h.b16 %v426
        %v1568 = vunpack.c.l.b16 %v427
        %v1569 = vunpack.c.h.b16 %v427
        %v1570 = vunpack.c.l.b16 %v428
        %v1571 = vunpack.c.h.b16 %v428
        %v1572 = vunpack.c.l.b16 %v429
        %v1573 = vunpack.c.h.b16 %v429
        %v1574 = vunpack.c.l.b16 %v430
        %v1575 = vunpack.c.h.b16 %v430
        %v1576 = vunpack.c.l.b16 %v431
        %v1577 = vunpack.c.h.b16 %v431
        %v1578 = vunpack.c.l.b16 %v432
        %v1579 = vunpack.c.h.b16 %v432
        %v1580 = vunpack.c.l.b16 %v433
        %v1581 = vunpack.c.h.b16 %v433
        %v1582 = vunpack.c.l.b16 %v434
        %v1583 = vunpack.c.h.b16 %v434
        %v1584 = vunpack.c.l.b16 %v435
        %v1585 = vunpack.c.h.b16 %v435
        %v1586 = vunpack.c.l.b16 %v436
        %v1587 = vunpack.c.h.b16 %v436
        %v1588 = vunpack.c.l.b16 %v437
        %v1589 = vunpack.c.h.b16 %v437
        %v1590 = vunpack.c.l.b16 %v438
        %v1591 = vunpack.c.h.b16 %v438
        %v1592 = vunpack.c.l.b16 %v439
        %v1593 = vunpack.c.h.b16 %v439
        %v1594 = vunpack.c.l.b16 %v440
        %v1595 = vunpack.c.h.b16 %v440
        %v1596 = vunpack.c.l.b16 %v441
        %v1597 = vunpack.c.h.b16 %v441
        %v1598 = vunpack.c.l.b16 %v442
        %v1599 = vunpack.c.h.b16 %v442
        %v1600 = vunpack.c.l.b16 %v443
        %v1601 = vunpack.c.h.b16 %v443
        %v1602 = vunpack.c.l.b16 %v444
        %v1603 = vunpack.c.h.b16 %v444
        %v1604 = vunpack.c.l.b16 %v445
        %v1605 = vunpack.c.h.b16 %v445
        %v1606 = vunpack.c.l.b16 %v446
        %v1607 = vunpack.c.h.b16 %v446
        %v1608 = vunpack.c.l.b16 %v447
        %v1609 = vunpack.c.h.b16 %v447
        %v1610 = vunpack.c.l.b16 %v448
        %v1611 = vunpack.c.h.b16 %v448
        %v1612 = vunpack.c.l.b16 %v449
        %v1613 = vunpack.c.h.b16 %v449
        %v1614 = vunpack.c.l.b16 %v450
        %v1615 = vunpack.c.h.b16 %v450
        %v1616 = vunpack.c.l.b16 %v451
        %v1617 = vunpack.c.h.b16 %v451
        %v1618 = vunpack.c.l.b16 %v452
        %v1619 = vunpack.c.h.b16 %v452
        %v1620 = vunpack.c.l.b16 %v453
        %v1621 = vunpack.c.h.b16 %v453
        %v1622 = vunpack.c.l.b16 %v454
        %v1623 = vunpack.c.h.b16 %v454
        %v1624 = vunpack.c.l.b16 %v455
        %v1625 = vunpack.c.h.b16 %v455
        %v1626 = vunpack.c.l.b16 %v456
        %v1627 = vunpack.c.h.b16 %v456
        %v1628 = vunpack.c.l.b16 %v457
        %v1629 = vunpack.c.h.b16 %v457
        %v1630 = vunpack.c.l.b16 %v458
        %v1631 = vunpack.c.h.b16 %v458
        %v1632 = vunpack.c.l.b16 %v459
        %v1633 = vunpack.c.h.b16 %v459
        %v1634 = vunpack.c.l.b16 %v460
        %v1635 = vunpack.c.h.b16 %v460
        %v1636 = vunpack.c.l.b16 %v461
        %v1637 = vunpack.c.h.b16 %v461
        %v1638 = vunpack.c.l.b16 %v462
        %v1639 = vunpack.c.h.b16 %v462
        %v1640 = vunpack.c.l.b16 %v463
        %v1641 = vunpack.c.h.b16 %v463
        %v1642 = vunpack.c.l.b16 %v464
        %v1643 = vunpack.c.h.b16 %v464
        %v1644 = vunpack.c.l.b16 %v465
        %v1645 = vunpack.c.h.b16 %v465
        %v1646 = vunpack.c.l.b16 %v466
        %v1647 = vunpack.c.h.b16 %v466
        %v1648 = vunpack.c.l.b16 %v467
        %v1649 = vunpack.c.h.b16 %v467
        %v1650 = vunpack.c.l.b16 %v468
        %v1651 = vunpack.c.h.b16 %v468
        %v1652 = vunpack.c.l.b16 %v469
        %v1653 = vunpack.c.h.b16 %v469
        %v1654 = vunpack.c.l.b16 %v470
        %v1655 = vunpack.c.h.b16 %v470
        %v1656 = vunpack.c.l.b16 %v471
        %v1657 = vunpack.c.h.b16 %v471
        %v1658 = vunpack.c.l.b16 %v472
        %v1659 = vunpack.c.h.b16 %v472
        %v1660 = vunpack.c.l.b16 %v473
        %v1661 = vunpack.c.h.b16 %v473
        %v1662 = vunpack.c.l.b16 %v474
        %v1663 = vunpack.c.h.b16 %v474
        %v1664 = vunpack.c.l.b16 %v475
        %v1665 = vunpack.c.h.b16 %v475
        %v1666 = vunpack.c.l.b16 %v476
        %v1667 = vunpack.c.h.b16 %v476
        %v1668 = vunpack.c.l.b16 %v477
        %v1669 = vunpack.c.h.b16 %v477
        %v1670 = vunpack.c.l.b16 %v478
        %v1671 = vunpack.c.h.b16 %v478
        %v1672 = vunpack.c.l.b16 %v479
        %v1673 = vunpack.c.h.b16 %v479
        %v1674 = vunpack.c.l.b16 %v480
        %v1675 = vunpack.c.h.b16 %v480
        %v1676 = vunpack.c.l.b16 %v481
        %v1677 = vunpack.c.h.b16 %v481
        %v1678 = vunpack.c.l.b16 %v482
        %v1679 = vunpack.c.h.b16 %v482
        %v1680 = vunpack.c.l.b16 %v483
        %v1681 = vunpack.c.h.b16 %v483
        %v1682 = vunpack.c.l.b16 %v484
        %v1683 = vunpack.c.h.b16 %v484
        %v1684 = vunpack.c.l.b16 %v485
        %v1685 = vunpack.c.h.b16 %v485
        %v1686 = vunpack.c.l.b16 %v486
        %v1687 = vunpack.c.h.b16 %v486
        %v1688 = vunpack.c.l.b16 %v487
        %v1689 = vunpack.c.h.b16 %v487
        %v1690 = vunpack.c.l.b16 %v488
        %v1691 = vunpack.c.h.b16 %v488
        %v1692 = vunpack.c.l.b16 %v489
        %v1693 = vunpack.c.h.b16 %v489
        %v1694 = vunpack.c.l.b16 %v490
        %v1695 = vunpack.c.h.b16 %v490
        %v1696 = vunpack.c.l.b16 %v491
        %v1697 = vunpack.c.h.b16 %v491
        %v1698 = vunpack.c.l.b16 %v492
        %v1699 = vunpack.c.h.b16 %v492
        %v1700 = vunpack.c.l.b16 %v493
        %v1701 = vunpack.c.h.b16 %v493
        %v1702 = vunpack.c.l.b16 %v494
        %v1703 = vunpack.c.h.b16 %v494
        %v1704 = vunpack.c.l.b16 %v495
        %v1705 = vunpack.c.h.b16 %v495
        %v1706 = vunpack.c.l.b16 %v496
        %v1707 = vunpack.c.h.b16 %v496
        %v1708 = vunpack.c.l.b16 %v497
        %v1709 = vunpack.c.h.b16 %v497
        %v1710 = vunpack.c.l.b16 %v498
        %v1711 = vunpack.c.h.b16 %v498
        %v1712 = vunpack.c.l.b16 %v499
        %v1713 = vunpack.c.h.b16 %v499
        %v1714 = vunpack.c.l.b16 %v500
        %v1715 = vunpack.c.h.b16 %v500
        %v1716 = vunpack.c.l.b16 %v501
        %v1717 = vunpack.c.h.b16 %v501
        %v1718 = vunpack.c.l.b16 %v502
        %v1719 = vunpack.c.h.b16 %v502
        %v1720 = vunpack.c.l.b16 %v503
        %v1721 = vunpack.c.h.b16 %v503
        %v1722 = vunpack.c.l.b16 %v504
        %v1723 = vunpack.c.h.b16 %v504
        %v1724 = vunpack.c.l.b16 %v505
        %v1725 = vunpack.c.h.b16 %v505
        %v1726 = vunpack.c.l.b16 %v506
        %v1727 = vunpack.c.h.b16 %v506
        %v1728 = vunpack.c.l.b16 %v507
        %v1729 = vunpack.c.h.b16 %v507
        %v1730 = vunpack.c.l.b16 %v508
        %v1731 = vunpack.c.h.b16 %v508
        %v1732 = vunpack.c.l.b16 %v509
        %v1733 = vunpack.c.h.b16 %v509
        %v1734 = vunpack.c.l.b16 %v510
        %v1735 = vunpack.c.h.b16 %v510
        %v1736 = vunpack.c.l.b16 %v511
        %v1737 = vunpack.c.h.b16 %v511
        %v1738 = vunpack.c.l.b16 %v512
        %v1739 = vunpack.c.h.b16 %v512
        %v1740 = vunpack.c.l.b16 %v513
        %v1741 = vunpack.c.h.b16 %v513
        %v1742 = vunpack.c.l.b16 %v514
        %v1743 = vunpack.c.h.b16 %v514
        %v1744 = vunpack.c.l.b16 %v515
        %v1745 = vunpack.c.h.b16 %v515
        %v1746 = vunpack.c.l.b16 %v516
        %v1747 = vunpack.c.h.b16 %v516
        %v1748 = vunpack.c.l.b16 %v517
        %v1749 = vunpack.c.h.b16 %v517
        %v1750 = vunpack.c.l.b16 %v518
        %v1751 = vunpack.c.h.b16 %v518
        %v1752 = vunpack.c.l.b16 %v519
        %v1753 = vunpack.c.h.b16 %v519
        %v1754 = vunpack.c.l.b16 %v520
        %v1755 = vunpack.c.h.b16 %v520
        %v1756 = vunpack.c.l.b16 %v521
        %v1757 = vunpack.c.h.b16 %v521
        %v1758 = vunpack.c.l.b16 %v522
        %v1759 = vunpack.c.h.b16 %v522
        %v1760 = vunpack.c.l.b16 %v523
        %v1761 = vunpack.c.h.b16 %v523
        %v1762 = vunpack.c.l.b16 %v524
        %v1763 = vunpack.c.h.b16 %v524
        %v1764 = vunpack.c.l.b16 %v525
        %v1765 = vunpack.c.h.b16 %v525
        %v1766 = vunpack.c.l.b16 %v526
        %v1767 = vunpack.c.h.b16 %v526
        %v1768 = vunpack.c.l.b16 %v527
        %v1769 = vunpack.c.h.b16 %v527
        %v1770 = vunpack.c.l.b16 %v528
        %v1771 = vunpack.c.h.b16 %v528
        %v1772 = vunpack.c.l.b16 %v529
        %v1773 = vunpack.c.h.b16 %v529
        %v1774 = vunpack.c.l.b16 %v530
        %v1775 = vunpack.c.h.b16 %v530
        %v1776 = vunpack.c.l.b16 %v531
        %v1777 = vunpack.c.h.b16 %v531
        %v1778 = vunpack.c.l.b16 %v532
        %v1779 = vunpack.c.h.b16 %v532
        %v1780 = vunpack.c.l.b16 %v533
        %v1781 = vunpack.c.h.b16 %v533
        %v1782 = vunpack.c.l.b16 %v534
        %v1783 = vunpack.c.h.b16 %v534
        %v1784 = vunpack.c.l.b16 %v535
        %v1785 = vunpack.c.h.b16 %v535
        %v1786 = vunpack.c.l.b16 %v536
        %v1787 = vunpack.c.h.b16 %v536
        %v1788 = vunpack.c.l.b16 %v537
        %v1789 = vunpack.c.h.b16 %v537
        %v1790 = vunpack.c.l.b16 %v538
        %v1791 = vunpack.c.h.b16 %v538
        %v1792 = vunpack.c.l.b16 %v539
        %v1793 = vunpack.c.h.b16 %v539
        %v1794 = vunpack.c.l.b16 %v540
        %v1795 = vunpack.c.h.b16 %v540
        %v1796 = vunpack.c.l.b16 %v541
        %v1797 = vunpack.c.h.b16 %v541
        %v1798 = vunpack.c.l.b16 %v542
        %v1799 = vunpack.c.h.b16 %v542
        %v1800 = vunpack.c.l.b16 %v543
        %v1801 = vunpack.c.h.b16 %v543
        %v1802 = vunpack.c.l.b16 %v544
        %v1803 = vunpack.c.h.b16 %v544
        %v1804 = vunpack.c.l.b16 %v545
        %v1805 = vunpack.c.h.b16 %v545
        %v1806 = vunpack.c.l.b16 %v546
        %v1807 = vunpack.c.h.b16 %v546
        %v1808 = vunpack.c.l.b16 %v547
        %v1809 = vunpack.c.h.b16 %v547
        %v1810 = vunpack.c.l.b16 %v548
        %v1811 = vunpack.c.h.b16 %v548
        %v1812 = vunpack.c.l.b16 %v549
        %v1813 = vunpack.c.h.b16 %v549
        %v1814 = vunpack.c.l.b16 %v550
        %v1815 = vunpack.c.h.b16 %v550
        %v1816 = vunpack.c.l.b16 %v551
        %v1817 = vunpack.c.h.b16 %v551
        %v1818 = vunpack.c.l.b16 %v552
        %v1819 = vunpack.c.h.b16 %v552
        %v1820 = vunpack.c.l.b16 %v553
        %v1821 = vunpack.c.h.b16 %v553
        %v1822 = vunpack.c.l.b16 %v554
        %v1823 = vunpack.c.h.b16 %v554
        %v1824 = vunpack.c.l.b16 %v555
        %v1825 = vunpack.c.h.b16 %v555
        %v1826 = vunpack.c.l.b16 %v556
        %v1827 = vunpack.c.h.b16 %v556
        %v1828 = vunpack.c.l.b16 %v557
        %v1829 = vunpack.c.h.b16 %v557
        %v1830 = vunpack.c.l.b16 %v558
        %v1831 = vunpack.c.h.b16 %v558
        %v1832 = vunpack.c.l.b16 %v559
        %v1833 = vunpack.c.h.b16 %v559
        %v1834 = vunpack.c.l.b16 %v560
        %v1835 = vunpack.c.h.b16 %v560
        %v1836 = vunpack.c.l.b16 %v561
        %v1837 = vunpack.c.h.b16 %v561
        %v1838 = vunpack.c.l.b16 %v562
        %v1839 = vunpack.c.h.b16 %v562
        %v1840 = vunpack.c.l.b16 %v563
        %v1841 = vunpack.c.h.b16 %v563
        %v1842 = vunpack.c.l.b16 %v564
        %v1843 = vunpack.c.h.b16 %v564
        %v1844 = vunpack.c.l.b16 %v565
        %v1845 = vunpack.c.h.b16 %v565
        %v1846 = vunpack.c.l.b16 %v566
        %v1847 = vunpack.c.h.b16 %v566
        %v1848 = vunpack.c.l.b16 %v567
        %v1849 = vunpack.c.h.b16 %v567
        %v1850 = vunpack.c.l.b16 %v568
        %v1851 = vunpack.c.h.b16 %v568
        %v1852 = vunpack.c.l.b16 %v569
        %v1853 = vunpack.c.h.b16 %v569
        %v1854 = vunpack.c.l.b16 %v570
        %v1855 = vunpack.c.h.b16 %v570
        %v1856 = vunpack.c.l.b16 %v571
        %v1857 = vunpack.c.h.b16 %v571
        %v1858 = vunpack.c.l.b16 %v572
        %v1859 = vunpack.c.h.b16 %v572
        %v1860 = vunpack.c.l.b16 %v573
        %v1861 = vunpack.c.h.b16 %v573
        %v1862 = vunpack.c.l.b16 %v574
        %v1863 = vunpack.c.h.b16 %v574
        %v1864 = vunpack.c.l.b16 %v575
        %v1865 = vunpack.c.h.b16 %v575
        %v1866 = vunpack.c.l.b16 %v576
        %v1867 = vunpack.c.h.b16 %v576
        %v1868 = vunpack.c.l.b16 %v577
        %v1869 = vunpack.c.h.b16 %v577
        %v1870 = vunpack.c.l.b16 %v578
        %v1871 = vunpack.c.h.b16 %v578
        %v1872 = vunpack.c.l.b16 %v579
        %v1873 = vunpack.c.h.b16 %v579
        %v1874 = vunpack.c.l.b16 %v580
        %v1875 = vunpack.c.h.b16 %v580
        %v1876 = vunpack.c.l.b16 %v581
        %v1877 = vunpack.c.h.b16 %v581
        %v1878 = vunpack.c.l.b16 %v582
        %v1879 = vunpack.c.h.b16 %v582
        %v1880 = vunpack.c.l.b16 %v583
        %v1881 = vunpack.c.h.b16 %v583
        %v1882 = vunpack.c.l.b16 %v584
        %v1883 = vunpack.c.h.b16 %v584
        %v1884 = vunpack.c.l.b16 %v585
        %v1885 = vunpack.c.h.b16 %v585
        %v1886 = vunpack.c.l.b16 %v586
        %v1887 = vunpack.c.h.b16 %v586
        %v1888 = vunpack.c.l.b16 %v587
        %v1889 = vunpack.c.h.b16 %v587
        %v1890 = vunpack.c.l.b16 %v588
        %v1891 = vunpack.c.h.b16 %v588
        %v1892 = vunpack.c.l.b16 %v589
        %v1893 = vunpack.c.h.b16 %v589
        %v1894 = vunpack.c.l.b16 %v590
        %v1895 = vunpack.c.h.b16 %v590
        %v1896 = vunpack.c.l.b16 %v591
        %v1897 = vunpack.c.h.b16 %v591
        %v1898 = vunpack.c.l.b16 %v592
        %v1899 = vunpack.c.h.b16 %v592
        %v1900 = vunpack.c.l.b16 %v593
        %v1901 = vunpack.c.h.b16 %v593
        %v1902 = vunpack.c.l.b16 %v594
        %v1903 = vunpack.c.h.b16 %v594
        %v1904 = vunpack.c.l.b16 %v595
        %v1905 = vunpack.c.h.b16 %v595
        %v1906 = vunpack.c.l.b16 %v596
        %v1907 = vunpack.c.h.b16 %v596
        %v1908 = vunpack.c.l.b16 %v597
        %v1909 = vunpack.c.h.b16 %v597
        %v1910 = vunpack.c.l.b16 %v598
        %v1911 = vunpack.c.h.b16 %v598
        %v1912 = vunpack.c.l.b16 %v599
        %v1913 = vunpack.c.h.b16 %v599
        %v1914 = vunpack.c.l.b16 %v600
        %v1915 = vunpack.c.h.b16 %v600
        %v1916 = vunpack.c.l.b16 %v601
        %v1917 = vunpack.c.h.b16 %v601
        %v1918 = vunpack.c.l.b16 %v602
        %v1919 = vunpack.c.h.b16 %v602
        %v1920 = vunpack.c.l.b16 %v603
        %v1921 = vunpack.c.h.b16 %v603
        %v1922 = vunpack.c.l.b16 %v604
        %v1923 = vunpack.c.h.b16 %v604
        %v1924 = vunpack.c.l.b16 %v605
        %v1925 = vunpack.c.h.b16 %v605
        %v1926 = vunpack.c.l.b16 %v606
        %v1927 = vunpack.c.h.b16 %v606
        %v1928 = vunpack.c.l.b16 %v607
        %v1929 = vunpack.c.h.b16 %v607
        %v1930 = vunpack.c.l.b16 %v608
        %v1931 = vunpack.c.h.b16 %v608
        %v1932 = vunpack.c.l.b16 %v609
        %v1933 = vunpack.c.h.b16 %v609
        %v1934 = vunpack.c.l.b16 %v610
        %v1935 = vunpack.c.h.b16 %v610
        %v1936 = vunpack.c.l.b16 %v611
        %v1937 = vunpack.c.h.b16 %v611
        %v1938 = vunpack.c.l.b16 %v612
        %v1939 = vunpack.c.h.b16 %v612
        %v1940 = vunpack.c.l.b16 %v613
        %v1941 = vunpack.c.h.b16 %v613
        %v1942 = vunpack.c.l.b16 %v614
        %v1943 = vunpack.c.h.b16 %v614
        %v1944 = vunpack.c.l.b16 %v615
        %v1945 = vunpack.c.h.b16 %v615
        %v1946 = vunpack.c.l.b16 %v616
        %v1947 = vunpack.c.h.b16 %v616
        %v1948 = vunpack.c.l.b16 %v617
        %v1949 = vunpack.c.h.b16 %v617
        %v1950 = vunpack.c.l.b16 %v618
        %v1951 = vunpack.c.h.b16 %v618
        %v1952 = vunpack.c.l.b16 %v619
        %v1953 = vunpack.c.h.b16 %v619
        %v1954 = vunpack.c.l.b16 %v620
        %v1955 = vunpack.c.h.b16 %v620
        %v1956 = vunpack.c.l.b16 %v621
        %v1957 = vunpack.c.h.b16 %v621
        %v1958 = vunpack.c.l.b16 %v622
        %v1959 = vunpack.c.h.b16 %v622
        %v1960 = vunpack.c.l.b16 %v623
        %v1961 = vunpack.c.h.b16 %v623
        %v1962 = vunpack.c.l.b16 %v624
        %v1963 = vunpack.c.h.b16 %v624
        %v1964 = vunpack.c.l.b16 %v625
        %v1965 = vunpack.c.h.b16 %v625
        %v1966 = vunpack.c.l.b16 %v626
        %v1967 = vunpack.c.h.b16 %v626
        %v1968 = vunpack.c.l.b16 %v627
        %v1969 = vunpack.c.h.b16 %v627
        %v1970 = vunpack.c.l.b16 %v628
        %v1971 = vunpack.c.h.b16 %v628
        %v1972 = vunpack.c.l.b16 %v629
        %v1973 = vunpack.c.h.b16 %v629
        %v1974 = vunpack.c.l.b16 %v630
        %v1975 = vunpack.c.h.b16 %v630
        %v1976 = vunpack.c.l.b16 %v631
        %v1977 = vunpack.c.h.b16 %v631
        %v1978 = vunpack.c.l.b16 %v632
        %v1979 = vunpack.c.h.b16 %v632
        %v1980 = vunpack.c.l.b16 %v633
        %v1981 = vunpack.c.h.b16 %v633
        %v1982 = vunpack.c.l.b16 %v634
        %v1983 = vunpack.c.h.b16 %v634
        %v1984 = vunpack.c.l.b16 %v635
        %v1985 = vunpack.c.h.b16 %v635
        %v1986 = vunpack.c.l.b16 %v636
        %v1987 = vunpack.c.h.b16 %v636
        %v1988 = vunpack.c.l.b16 %v637
        %v1989 = vunpack.c.h.b16 %v637
        %v1990 = vunpack.c.l.b16 %v638
        %v1991 = vunpack.c.h.b16 %v638
        %v1992 = vunpack.c.l.b16 %v639
        %v1993 = vunpack.c.h.b16 %v639
        %v1994 = vunpack.c.l.b16 %v640
        %v1995 = vunpack.c.h.b16 %v640
        %v1996 = vunpack.c.l.b16 %v641
        %v1997 = vunpack.c.h.b16 %v641
        %v1998 = vunpack.c.l.b16 %v642
        %v1999 = vunpack.c.h.b16 %v642
        %v2000 = vunpack.c.l.b16 %v643
        %v2001 = vunpack.c.h.b16 %v643
        %v2002 = vunpack.c.l.b16 %v644
        %v2003 = vunpack.c.h.b16 %v644
        %v2004 = vunpack.c.l.b16 %v645
        %v2005 = vunpack.c.h.b16 %v645
        %v2006 = vunpack.c.l.b16 %v646
        %v2007 = vunpack.c.h.b16 %v646
        %v2008 = vunpack.c.l.b16 %v647
        %v2009 = vunpack.c.h.b16 %v647
        %v2010 = vunpack.c.l.b16 %v648
        %v2011 = vunpack.c.h.b16 %v648
        %v2012 = vunpack.c.l.b16 %v649
        %v2013 = vunpack.c.h.b16 %v649
        %v2014 = vunpack.c.l.b16 %v650
        %v2015 = vunpack.c.h.b16 %v650
        %v2016 = vunpack.c.l.b16 %v651
        %v2017 = vunpack.c.h.b16 %v651
        %v2018 = vunpack.c.l.b16 %v652
        %v2019 = vunpack.c.h.b16 %v652
        %v2020 = vunpack.c.l.b16 %v653
        %v2021 = vunpack.c.h.b16 %v653
        %v2022 = vunpack.c.l.b16 %v654
        %v2023 = vunpack.c.h.b16 %v654
        %v2024 = vunpack.c.l.b16 %v655
        %v2025 = vunpack.c.h.b16 %v655
        %v2026 = vunpack.c.l.b16 %v656
        %v2027 = vunpack.c.h.b16 %v656
        %v2028 = vunpack.c.l.b16 %v657
        %v2029 = vunpack.c.h.b16 %v657
        %v2030 = vunpack.c.l.b16 %v658
        %v2031 = vunpack.c.h.b16 %v658
        %v2032 = vunpack.c.l.b16 %v659
        %v2033 = vunpack.c.h.b16 %v659
        %v2034 = vunpack.c.l.b16 %v660
        %v2035 = vunpack.c.h.b16 %v660
        %v2036 = vunpack.c.l.b16 %v661
        %v2037 = vunpack.c.h.b16 %v661
        %v2038 = vunpack.c.l.b16 %v662
        %v2039 = vunpack.c.h.b16 %v662
        %v2040 = vunpack.c.l.b16 %v663
        %v2041 = vunpack.c.h.b16 %v663
        %v2042 = vunpack.c.l.b16 %v664
        %v2043 = vunpack.c.h.b16 %v664
        %v2044 = vunpack.c.l.b16 %v665
        %v2045 = vunpack.c.h.b16 %v665
        %v2046 = vunpack.c.l.b16 %v666
        %v2047 = vunpack.c.h.b16 %v666
        %v2048 = vunpack.c.l.b16 %v667
        %v2049 = vunpack.c.h.b16 %v667
        %v2050 = vunpack.c.l.b16 %v668
        %v2051 = vunpack.c.h.b16 %v668
        %v2052 = vunpack.c.l.b16 %v669
        %v2053 = vunpack.c.h.b16 %v669
        %v2054 = vunpack.c.l.b16 %v670
        %v2055 = vunpack.c.h.b16 %v670
        %v2056 = vunpack.c.l.b16 %v671
        %v2057 = vunpack.c.h.b16 %v671
        %v2058 = vunpack.c.l.b16 %v672
        %v2059 = vunpack.c.h.b16 %v672
        %v2060 = vunpack.c.l.b16 %v673
        %v2061 = vunpack.c.h.b16 %v673
        %v2062 = vunpack.c.l.b16 %v674
        %v2063 = vunpack.c.h.b16 %v674
        %v2064 = vunpack.c.l.b16 %v675
        %v2065 = vunpack.c.h.b16 %v675
        %v2066 = vunpack.c.l.b16 %v676
        %v2067 = vunpack.c.h.b16 %v676
        %v2068 = vunpack.c.l.b16 %v677
        %v2069 = vunpack.c.h.b16 %v677
        %v2070 = vunpack.c.l.b16 %v678
        %v2071 = vunpack.c.h.b16 %v678
        %v2072 = vunpack.c.l.b16 %v679
        %v2073 = vunpack.c.h.b16 %v679
        %v2074 = vunpack.c.l.b16 %v680
        %v2075 = vunpack.c.h.b16 %v680
        %v2076 = vunpack.c.l.b16 %v681
        %v2077 = vunpack.c.h.b16 %v681
        %v2078 = vunpack.c.l.b16 %v682
        %v2079 = vunpack.c.h.b16 %v682
        %v2080 = vunpack.c.l.b16 %v683
        %v2081 = vunpack.c.h.b16 %v683
        %v2082 = vunpack.c.l.b16 %v684
        %v2083 = vunpack.c.h.b16 %v684
        %v2084 = vunpack.c.l.b16 %v685
        %v2085 = vunpack.c.h.b16 %v685
        %v2086 = vunpack.c.l.b16 %v686
        %v2087 = vunpack.c.h.b16 %v686
        %v2088 = vunpack.c.l.b16 %v687
        %v2089 = vunpack.c.h.b16 %v687
        %v2090 = vunpack.c.l.b16 %v688
        %v2091 = vunpack.c.h.b16 %v688
        %v2092 = vunpack.c.l.b16 %v689
        %v2093 = vunpack.c.h.b16 %v689
        %v2094 = vunpack.c.l.b16 %v690
        %v2095 = vunpack.c.h.b16 %v690
        %v2096 = vunpack.c.l.b16 %v691
        %v2097 = vunpack.c.h.b16 %v691
        %v2098 = vunpack.c.l.b16 %v692
        %v2099 = vunpack.c.h.b16 %v692
        %v2100 = vunpack.c.l.b16 %v693
        %v2101 = vunpack.c.h.b16 %v693
        %v2102 = vunpack.c.l.b16 %v694
        %v2103 = vunpack.c.h.b16 %v694
        %v2104 = vunpack.c.l.b16 %v695
        %v2105 = vunpack.c.h.b16 %v695
        %v2106 = vunpack.c.l.b16 %v696
        %v2107 = vunpack.c.h.b16 %v696
        %v2108 = vunpack.c.l.b16 %v697
        %v2109 = vunpack.c.h.b16 %v697
        %v2110 = vunpack.c.l.b16 %v698
        %v2111 = vunpack.c.h.b16 %v698
        %v2112 = vunpack.c.l.b16 %v699
        %v2113 = vunpack.c.h.b16 %v699
        %v2114 = vunpack.c.l.b16 %v700
        %v2115 = vunpack.c.h.b16 %v700
        %v2116 = vunpack.c.l.b16 %v701
        %v2117 = vunpack.c.h.b16 %v701
        %v2118 = vunpack.c.l.b16 %v702
        %v2119 = vunpack.c.h.b16 %v702
        %v2120 = vunpack.c.l.b16 %v703
        %v2121 = vunpack.c.h.b16 %v703
        %v2122 = vunpack.c.l.b16 %v704
        %v2123 = vunpack.c.h.b16 %v704
        %v2124 = vunpack.c.l.b16 %v705
        %v2125 = vunpack.c.h.b16 %v705
        %v2126 = vunpack.c.l.b16 %v706
        %v2127 = vunpack.c.h.b16 %v706
        %v2128 = vunpack.c.l.b16 %v707
        %v2129 = vunpack.c.h.b16 %v707
        %v2130 = vunpack.c.l.b16 %v708
        %v2131 = vunpack.c.h.b16 %v708
        %v2132 = vunpack.c.l.b16 %v709
        %v2133 = vunpack.c.h.b16 %v709
        %v2134 = vunpack.c.l.b16 %v710
        %v2135 = vunpack.c.h.b16 %v710
        %v2136 = vunpack.c.l.b16 %v711
        %v2137 = vunpack.c.h.b16 %v711
        %v2138 = vunpack.c.l.b16 %v712
        %v2139 = vunpack.c.h.b16 %v712
        %v2140 = vunpack.c.l.b16 %v713
        %v2141 = vunpack.c.h.b16 %v713
        %v2142 = vunpack.c.l.b16 %v714
        %v2143 = vunpack.c.h.b16 %v714
        %v2144 = vunpack.c.l.b16 %v715
        %v2145 = vunpack.c.h.b16 %v715
        %v2146 = vunpack.c.l.b16 %v716
        %v2147 = vunpack.c.h.b16 %v716
        %v2148 = vunpack.c.l.b16 %v717
        %v2149 = vunpack.c.h.b16 %v717
        %v2150 = vunpack.c.l.b16 %v718
        %v2151 = vunpack.c.h.b16 %v718
        %v2152 = vunpack.c.l.b16 %v719
        %v2153 = vunpack.c.h.b16 %v719
        %v2154 = vunpack.c.l.b16 %v720
        %v2155 = vunpack.c.h.b16 %v720
        %v2156 = vunpack.c.l.b16 %v721
        %v2157 = vunpack.c.h.b16 %v721
        %v2158 = vunpack.c.l.b16 %v722
        %v2159 = vunpack.c.h.b16 %v722
        %v2160 = vunpack.c.l.b16 %v723
        %v2161 = vunpack.c.h.b16 %v723
        %v2162 = vunpack.c.l.b16 %v724
        %v2163 = vunpack.c.h.b16 %v724
        %v2164 = vunpack.c.l.b16 %v725
        %v2165 = vunpack.c.h.b16 %v725
        %v2166 = vunpack.c.l.b16 %v726
        %v2167 = vunpack.c.h.b16 %v726
        %v2168 = vunpack.c.l.b16 %v727
        %v2169 = vunpack.c.h.b16 %v727
        %v2170 = vunpack.c.l.b16 %v728
        %v2171 = vunpack.c.h.b16 %v728
        %v2172 = vunpack.c.l.b16 %v729
        %v2173 = vunpack.c.h.b16 %v729
        %v2174 = vunpack.c.l.b16 %v730
        %v2175 = vunpack.c.h.b16 %v730
        %v2176 = vunpack.c.l.b16 %v731
        %v2177 = vunpack.c.h.b16 %v731
        %v2178 = vunpack.c.l.b16 %v732
        %v2179 = vunpack.c.h.b16 %v732
        %v2180 = vunpack.c.l.b16 %v733
        %v2181 = vunpack.c.h.b16 %v733
        %v2182 = vunpack.c.l.b16 %v734
        %v2183 = vunpack.c.h.b16 %v734
        %v2184 = vunpack.c.l.b16 %v735
        %v2185 = vunpack.c.h.b16 %v735
        %v2186 = vunpack.c.l.b16 %v736
        %v2187 = vunpack.c.h.b16 %v736
        %v2188 = vunpack.c.l.b16 %v737
        %v2189 = vunpack.c.h.b16 %v737
        %v2190 = vunpack.c.l.b16 %v738
        %v2191 = vunpack.c.h.b16 %v738
        %v2192 = vunpack.c.l.b16 %v739
        %v2193 = vunpack.c.h.b16 %v739
        %v2194 = vunpack.c.l.b16 %v740
        %v2195 = vunpack.c.h.b16 %v740
        %v2196 = vunpack.c.l.b16 %v741
        %v2197 = vunpack.c.h.b16 %v741
        %v2198 = vunpack.c.l.b16 %v742
        %v2199 = vunpack.c.h.b16 %v742
        %v2200 = vunpack.c.l.b16 %v743
        %v2201 = vunpack.c.h.b16 %v743
        %v2202 = vunpack.c.l.b16 %v744
        %v2203 = vunpack.c.h.b16 %v744
        %v2204 = vunpack.c.l.b16 %v745
        %v2205 = vunpack.c.h.b16 %v745
        %v2206 = vunpack.c.l.b16 %v746
        %v2207 = vunpack.c.h.b16 %v746
        %v2208 = vunpack.c.l.b16 %v747
        %v2209 = vunpack.c.h.b16 %v747
        %v2210 = vunpack.c.l.b16 %v748
        %v2211 = vunpack.c.h.b16 %v748
        %v2212 = vunpack.c.l.b16 %v749
        %v2213 = vunpack.c.h.b16 %v749
        %v2214 = vunpack.c.l.b16 %v750
        %v2215 = vunpack.c.h.b16 %v750
        %v2216 = vunpack.c.l.b16 %v751
        %v2217 = vunpack.c.h.b16 %v751
        %v2218 = vunpack.c.l.b16 %v752
        %v2219 = vunpack.c.h.b16 %v752
        %v2220 = vunpack.c.l.b16 %v753
        %v2221 = vunpack.c.h.b16 %v753
        %v2222 = vunpack.c.l.b16 %v754
        %v2223 = vunpack.c.h.b16 %v754
        %v2224 = vunpack.c.l.b16 %v755
        %v2225 = vunpack.c.h.b16 %v755
        %v2226 = vunpack.c.l.b16 %v756
        %v2227 = vunpack.c.h.b16 %v756
        %v2228 = vunpack.c.l.b16 %v757
        %v2229 = vunpack.c.h.b16 %v757
        %v2230 = vunpack.c.l.b16 %v758
        %v2231 = vunpack.c.h.b16 %v758
        %v2232 = vunpack.c.l.b16 %v759
        %v2233 = vunpack.c.h.b16 %v759
        %v2234 = vunpack.c.l.b16 %v760
        %v2235 = vunpack.c.h.b16 %v760
        %v2236 = vunpack.c.l.b16 %v761
        %v2237 = vunpack.c.h.b16 %v761
        %v2238 = vunpack.c.l.b16 %v762
        %v2239 = vunpack.c.h.b16 %v762
        %v2240 = vunpack.c.l.b16 %v763
        %v2241 = vunpack.c.h.b16 %v763
        %v2242 = vunpack.c.l.b16 %v764
        %v2243 = vunpack.c.h.b16 %v764
        %v2244 = vunpack.c.l.b16 %v765
        %v2245 = vunpack.c.h.b16 %v765
        %v2246 = vunpack.c.l.b16 %v766
        %v2247 = vunpack.c.h.b16 %v766
        %v2248 = vunpack.c.l.b16 %v767
        %v2249 = vunpack.c.h.b16 %v767
        %v2250 = vunpack.c.l.b16 %v768
        %v2251 = vunpack.c.h.b16 %v768
        %v2252 = vunpack.c.l.b16 %v769
        %v2253 = vunpack.c.h.b16 %v769
        %v2254 = vunpack.c.l.b16 %v770
        %v2255 = vunpack.c.h.b16 %v770
        %v2256 = vunpack.c.l.b16 %v771
        %v2257 = vunpack.c.h.b16 %v771
        %v2258 = vunpack.c.l.b16 %v772
        %v2259 = vunpack.c.h.b16 %v772
        %v2260 = vunpack.c.l.b16 %v773
        %v2261 = vunpack.c.h.b16 %v773
        %v2262 = vunpack.c.l.b16 %v774
        %v2263 = vunpack.c.h.b16 %v774
        %v2264 = vunpack.c.l.b16 %v775
        %v2265 = vunpack.c.h.b16 %v775
        %v2266 = vunpack.c.l.b16 %v776
        %v2267 = vunpack.c.h.b16 %v776
        %v2268 = vunpack.c.l.b16 %v777
        %v2269 = vunpack.c.h.b16 %v777
        %v2270 = vunpack.c.l.b16 %v778
        %v2271 = vunpack.c.h.b16 %v778
        %v2272 = vunpack.c.l.b16 %v779
        %v2273 = vunpack.c.h.b16 %v779
        %v2274 = vunpack.c.l.b16 %v780
        %v2275 = vunpack.c.h.b16 %v780
        %v2276 = vunpack.c.l.b16 %v781
        %v2277 = vunpack.c.h.b16 %v781
        %v2278 = vunpack.c.l.b16 %v782
        %v2279 = vunpack.c.h.b16 %v782
        %v2280 = vunpack.c.l.b16 %v783
        %v2281 = vunpack.c.h.b16 %v783
        %v2282 = vunpack.c.l.b16 %v784
        %v2283 = vunpack.c.h.b16 %v784
        %v2284 = vunpack.c.l.b16 %v785
        %v2285 = vunpack.c.h.b16 %v785
        %v2286 = vunpack.c.l.b16 %v786
        %v2287 = vunpack.c.h.b16 %v786
        %v2288 = vunpack.c.l.b16 %v787
        %v2289 = vunpack.c.h.b16 %v787
        %v2290 = vunpack.c.l.b16 %v788
        %v2291 = vunpack.c.h.b16 %v788
        %v2292 = vunpack.c.l.b16 %v789
        %v2293 = vunpack.c.h.b16 %v789
        %v2294 = vunpack.c.l.b16 %v790
        %v2295 = vunpack.c.h.b16 %v790
        %v2296 = vunpack.c.l.b16 %v791
        %v2297 = vunpack.c.h.b16 %v791
        %v2298 = vunpack.c.l.b16 %v792
        %v2299 = vunpack.c.h.b16 %v792
        %v2300 = vunpack.c.l.b16 %v793
        %v2301 = vunpack.c.h.b16 %v793
        %v2302 = vunpack.c.l.b16 %v794
        %v2303 = vunpack.c.h.b16 %v794
        %v2304 = vunpack.c.l.b16 %v795
        %v2305 = vunpack.c.h.b16 %v795
        %v2306 = vunpack.c.l.b16 %v796
        %v2307 = vunpack.c.h.b16 %v796
        %v2308 = vunpack.c.l.b16 %v797
        %v2309 = vunpack.c.h.b16 %v797
        %v2310 = vunpack.c.l.b16 %v798
        %v2311 = vunpack.c.h.b16 %v798
        %v2312 = vunpack.c.l.b16 %v799
        %v2313 = vunpack.c.h.b16 %v799
        %v2314 = vunpack.c.l.b16 %v800
        %v2315 = vunpack.c.h.b16 %v800
        %v2316 = vunpack.c.l.b16 %v801
        %v2317 = vunpack.c.h.b16 %v801
        %v2318 = vunpack.c.l.b16 %v802
        %v2319 = vunpack.c.h.b16 %v802
        %v2320 = vunpack.c.l.b16 %v803
        %v2321 = vunpack.c.h.b16 %v803
        %v2322 = vunpack.c.l.b16 %v804
        %v2323 = vunpack.c.h.b16 %v804
        %v2324 = vunpack.c.l.b16 %v805
        %v2325 = vunpack.c.h.b16 %v805
        %v2326 = vunpack.c.l.b16 %v806
        %v2327 = vunpack.c.h.b16 %v806
        %v2328 = vunpack.c.l.b16 %v807
        %v2329 = vunpack.c.h.b16 %v807
        %v2330 = vunpack.c.l.b16 %v808
        %v2331 = vunpack.c.h.b16 %v808
        %v2332 = vunpack.c.l.b16 %v809
        %v2333 = vunpack.c.h.b16 %v809
        %v2334 = vunpack.c.l.b16 %v810
        %v2335 = vunpack.c.h.b16 %v810
        %v2336 = vunpack.c.l.b16 %v811
        %v2337 = vunpack.c.h.b16 %v811
        %v2338 = vunpack.c.l.b16 %v812
        %v2339 = vunpack.c.h.b16 %v812
        %v2340 = vunpack.c.l.b16 %v813
        %v2341 = vunpack.c.h.b16 %v813
        %v2342 = vunpack.c.l.b16 %v814
        %v2343 = vunpack.c.h.b16 %v814
        %v2344 = vunpack.c.l.b16 %v815
        %v2345 = vunpack.c.h.b16 %v815
        %v2346 = vunpack.c.l.b16 %v816
        %v2347 = vunpack.c.h.b16 %v816
        %v2348 = vunpack.c.l.b16 %v817
        %v2349 = vunpack.c.h.b16 %v817
        %v2350 = vunpack.c.l.b16 %v818
        %v2351 = vunpack.c.h.b16 %v818
        %v2352 = vunpack.c.l.b16 %v819
        %v2353 = vunpack.c.h.b16 %v819
        %v2354 = vunpack.c.l.b16 %v820
        %v2355 = vunpack.c.h.b16 %v820
        %v2356 = vunpack.c.l.b16 %v821
        %v2357 = vunpack.c.h.b16 %v821
        %v2358 = vunpack.c.l.b16 %v822
        %v2359 = vunpack.c.h.b16 %v822
        %v2360 = vunpack.c.l.b16 %v823
        %v2361 = vunpack.c.h.b16 %v823
        %v2362 = vunpack.c.l.b16 %v824
        %v2363 = vunpack.c.h.b16 %v824
        %v2364 = vunpack.c.l.b16 %v825
        %v2365 = vunpack.c.h.b16 %v825
        %v2366 = vunpack.c.l.b16 %v826
        %v2367 = vunpack.c.h.b16 %v826
        %v2368 = vunpack.c.l.b16 %v827
        %v2369 = vunpack.c.h.b16 %v827
        %v2370 = vunpack.c.l.b16 %v828
        %v2371 = vunpack.c.h.b16 %v828
        %v2372 = vunpack.c.l.b16 %v829
        %v2373 = vunpack.c.h.b16 %v829
        %v2374 = vunpack.c.l.b16 %v830
        %v2375 = vunpack.c.h.b16 %v830
        %v2376 = vunpack.c.l.b16 %v831
        %v2377 = vunpack.c.h.b16 %v831
        %v2378 = vunpack.c.l.b16 %v832
        %v2379 = vunpack.c.h.b16 %v832
        %v2380 = vunpack.c.l.b16 %v833
        %v2381 = vunpack.c.h.b16 %v833
        %v2382 = vunpack.c.l.b16 %v834
        %v2383 = vunpack.c.h.b16 %v834
        %v2384 = vunpack.c.l.b16 %v835
        %v2385 = vunpack.c.h.b16 %v835
        %v2386 = vunpack.c.l.b16 %v836
        %v2387 = vunpack.c.h.b16 %v836
        %v2388 = vunpack.c.l.b16 %v837
        %v2389 = vunpack.c.h.b16 %v837
        %v2390 = vunpack.c.l.b16 %v838
        %v2391 = vunpack.c.h.b16 %v838
        %v2392 = vunpack.c.l.b16 %v839
        %v2393 = vunpack.c.h.b16 %v839
        %v2394 = vunpack.c.l.b16 %v840
        %v2395 = vunpack.c.h.b16 %v840
        %v2396 = vunpack.c.l.b16 %v841
        %v2397 = vunpack.c.h.b16 %v841
        %v2398 = vunpack.c.l.b16 %v842
        %v2399 = vunpack.c.h.b16 %v842
        %v2400 = vunpack.c.l.b16 %v843
        %v2401 = vunpack.c.h.b16 %v843
        %v2402 = vunpack.c.l.b16 %v844
        %v2403 = vunpack.c.h.b16 %v844
        %v2404 = vunpack.c.l.b16 %v845
        %v2405 = vunpack.c.h.b16 %v845
        %v2406 = vunpack.c.l.b16 %v846
        %v2407 = vunpack.c.h.b16 %v846
        %v2408 = vunpack.c.l.b16 %v847
        %v2409 = vunpack.c.h.b16 %v847
        %v2410 = vunpack.c.l.b16 %v848
        %v2411 = vunpack.c.h.b16 %v848
        %v2412 = vunpack.c.l.b16 %v849
        %v2413 = vunpack.c.h.b16 %v849
        %v2414 = vunpack.c.l.b16 %v850
        %v2415 = vunpack.c.h.b16 %v850
        %v2416 = vunpack.c.l.b16 %v851
        %v2417 = vunpack.c.h.b16 %v851
        %v2418 = vunpack.c.l.b16 %v852
        %v2419 = vunpack.c.h.b16 %v852
        %v2420 = vunpack.c.l.b16 %v853
        %v2421 = vunpack.c.h.b16 %v853
        %v2422 = vpack.c.b16 %v1406, %v1398
        %v2423 = vpack.c.b16 %v1407, %v1399
        %v2424 = vpack.c.b16 %v1408, %v1400
        %v2425 = vpack.c.b16 %v1409, %v1401
        %v2426 = vpack.c.b16 %v1410, %v1402
        %v2427 = vpack.c.b16 %v1411, %v1403
        %v2428 = vpack.c.b16 %v1412, %v1404
        %v2429 = vpack.c.b16 %v1413, %v1405
        %v2430 = vpack.c.b16 %v1422, %v1414
        %v2431 = vpack.c.b16 %v1423, %v1415
        %v2432 = vpack.c.b16 %v1424, %v1416
        %v2433 = vpack.c.b16 %v1425, %v1417
        %v2434 = vpack.c.b16 %v1426, %v1418
        %v2435 = vpack.c.b16 %v1427, %v1419
        %v2436 = vpack.c.b16 %v1428, %v1420
        %v2437 = vpack.c.b16 %v1429, %v1421
        %v2438 = vpack.c.b16 %v1438, %v1430
        %v2439 = vpack.c.b16 %v1439, %v1431
        %v2440 = vpack.c.b16 %v1440, %v1432
        %v2441 = vpack.c.b16 %v1441, %v1433
        %v2442 = vpack.c.b16 %v1442, %v1434
        %v2443 = vpack.c.b16 %v1443, %v1435
        %v2444 = vpack.c.b16 %v1444, %v1436
        %v2445 = vpack.c.b16 %v1445, %v1437
        %v2446 = vpack.c.b16 %v1454, %v1446
        %v2447 = vpack.c.b16 %v1455, %v1447
        %v2448 = vpack.c.b16 %v1456, %v1448
        %v2449 = vpack.c.b16 %v1457, %v1449
        %v2450 = vpack.c.b16 %v1458, %v1450
        %v2451 = vpack.c.b16 %v1459, %v1451
        %v2452 = vpack.c.b16 %v1460, %v1452
        %v2453 = vpack.c.b16 %v1461, %v1453
        %v2454 = vpack.c.b16 %v1470, %v1462
        %v2455 = vpack.c.b16 %v1471, %v1463
        %v2456 = vpack.c.b16 %v1472, %v1464
        %v2457 = vpack.c.b16 %v1473, %v1465
        %v2458 = vpack.c.b16 %v1474, %v1466
        %v2459 = vpack.c.b16 %v1475, %v1467
        %v2460 = vpack.c.b16 %v1476, %v1468
        %v2461 = vpack.c.b16 %v1477, %v1469
        %v2462 = vpack.c.b16 %v1486, %v1478
        %v2463 = vpack.c.b16 %v1487, %v1479
        %v2464 = vpack.c.b16 %v1488, %v1480
        %v2465 = vpack.c.b16 %v1489, %v1481
        %v2466 = vpack.c.b16 %v1490, %v1482
        %v2467 = vpack.c.b16 %v1491, %v1483
        %v2468 = vpack.c.b16 %v1492, %v1484
        %v2469 = vpack.c.b16 %v1493, %v1485
        %v2470 = vpack.c.b16 %v1502, %v1494
        %v2471 = vpack.c.b16 %v1503, %v1495
        %v2472 = vpack.c.b16 %v1504, %v1496
        %v2473 = vpack.c.b16 %v1505, %v1497
        %v2474 = vpack.c.b16 %v1506, %v1498
        %v2475 = vpack.c.b16 %v1507, %v1499
        %v2476 = vpack.c.b16 %v1508, %v1500
        %v2477 = vpack.c.b16 %v1509, %v1501
        %v2478 = vpack.c.b16 %v1518, %v1510
        %v2479 = vpack.c.b16 %v1519, %v1511
        %v2480 = vpack.c.b16 %v1520, %v1512
        %v2481 = vpack.c.b16 %v1521, %v1513
        %v2482 = vpack.c.b16 %v1522, %v1514
        %v2483 = vpack.c.b16 %v1523, %v1515
        %v2484 = vpack.c.b16 %v1524, %v1516
        %v2485 = vpack.c.b16 %v1525, %v1517
        %v2486 = vpack.c.b16 %v1534, %v1526
        %v2487 = vpack.c.b16 %v1535, %v1527
        %v2488 = vpack.c.b16 %v1536, %v1528
        %v2489 = vpack.c.b16 %v1537, %v1529
        %v2490 = vpack.c.b16 %v1538, %v1530
        %v2491 = vpack.c.b16 %v1539, %v1531
        %v2492 = vpack.c.b16 %v1540, %v1532
        %v2493 = vpack.c.b16 %v1541, %v1533
        %v2494 = vpack.c.b16 %v1550, %v1542
        %v2495 = vpack.c.b16 %v1551, %v1543
        %v2496 = vpack.c.b16 %v1552, %v1544
        %v2497 = vpack.c.b16 %v1553, %v1545
        %v2498 = vpack.c.b16 %v1554, %v1546
        %v2499 = vpack.c.b16 %v1555, %v1547
        %v2500 = vpack.c.b16 %v1556, %v1548
        %v2501 = vpack.c.b16 %v1557, %v1549
        %v2502 = vpack.c.b16 %v1566, %v1558
        %v2503 = vpack.c.b16 %v1567, %v1559
        %v2504 = vpack.c.b16 %v1568, %v1560
        %v2505 = vpack.c.b16 %v1569, %v1561
        %v2506 = vpack.c.b16 %v1570, %v1562
        %v2507 = vpack.c.b16 %v1571, %v1563
        %v2508 = vpack.c.b16 %v1572, %v1564
        %v2509 = vpack.c.b16 %v1573, %v1565
        %v2510 = vpack.c.b16 %v1582, %v1574
        %v2511 = vpack.c.b16 %v1583, %v1575
        %v2512 = vpack.c.b16 %v1584, %v1576
        %v2513 = vpack.c.b16 %v1585, %v1577
        %v2514 = vpack.c.b16 %v1586, %v1578
        %v2515 = vpack.c.b16 %v1587, %v1579
        %v2516 = vpack.c.b16 %v1588, %v1580
        %v2517 = vpack.c.b16 %v1589, %v1581
        %v2518 = vpack.c.b16 %v1598, %v1590
        %v2519 = vpack.c.b16 %v1599, %v1591
        %v2520 = vpack.c.b16 %v1600, %v1592
        %v2521 = vpack.c.b16 %v1601, %v1593
        %v2522 = vpack.c.b16 %v1602, %v1594
        %v2523 = vpack.c.b16 %v1603, %v1595
        %v2524 = vpack.c.b16 %v1604, %v1596
        %v2525 = vpack.c.b16 %v1605, %v1597
        %v2526 = vpack.c.b16 %v1614, %v1606
        %v2527 = vpack.c.b16 %v1615, %v1607
        %v2528 = vpack.c.b16 %v1616, %v1608
        %v2529 = vpack.c.b16 %v1617, %v1609
        %v2530 = vpack.c.b16 %v1618, %v1610
        %v2531 = vpack.c.b16 %v1619, %v1611
        %v2532 = vpack.c.b16 %v1620, %v1612
        %v2533 = vpack.c.b16 %v1621, %v1613
        %v2534 = vpack.c.b16 %v1630, %v1622
        %v2535 = vpack.c.b16 %v1631, %v1623
        %v2536 = vpack.c.b16 %v1632, %v1624
        %v2537 = vpack.c.b16 %v1633, %v1625
        %v2538 = vpack.c.b16 %v1634, %v1626
        %v2539 = vpack.c.b16 %v1635, %v1627
        %v2540 = vpack.c.b16 %v1636, %v1628
        %v2541 = vpack.c.b16 %v1637, %v1629
        %v2542 = vpack.c.b16 %v1646, %v1638
        %v2543 = vpack.c.b16 %v1647, %v1639
        %v2544 = vpack.c.b16 %v1648, %v1640
        %v2545 = vpack.c.b16 %v1649, %v1641
        %v2546 = vpack.c.b16 %v1650, %v1642
        %v2547 = vpack.c.b16 %v1651, %v1643
        %v2548 = vpack.c.b16 %v1652, %v1644
        %v2549 = vpack.c.b16 %v1653, %v1645
        %v2550 = vpack.c.b16 %v1662, %v1654
        %v2551 = vpack.c.b16 %v1663, %v1655
        %v2552 = vpack.c.b16 %v1664, %v1656
        %v2553 = vpack.c.b16 %v1665, %v1657
        %v2554 = vpack.c.b16 %v1666, %v1658
        %v2555 = vpack.c.b16 %v1667, %v1659
        %v2556 = vpack.c.b16 %v1668, %v1660
        %v2557 = vpack.c.b16 %v1669, %v1661
        %v2558 = vpack.c.b16 %v1678, %v1670
        %v2559 = vpack.c.b16 %v1679, %v1671
        %v2560 = vpack.c.b16 %v1680, %v1672
        %v2561 = vpack.c.b16 %v1681, %v1673
        %v2562 = vpack.c.b16 %v1682, %v1674
        %v2563 = vpack.c.b16 %v1683, %v1675
        %v2564 = vpack.c.b16 %v1684, %v1676
        %v2565 = vpack.c.b16 %v1685, %v1677
        %v2566 = vpack.c.b16 %v1694, %v1686
        %v2567 = vpack.c.b16 %v1695, %v1687
        %v2568 = vpack.c.b16 %v1696, %v1688
        %v2569 = vpack.c.b16 %v1697, %v1689
        %v2570 = vpack.c.b16 %v1698, %v1690
        %v2571 = vpack.c.b16 %v1699, %v1691
        %v2572 = vpack.c.b16 %v1700, %v1692
        %v2573 = vpack.c.b16 %v1701, %v1693
        %v2574 = vpack.c.b16 %v1710, %v1702
        %v2575 = vpack.c.b16 %v1711, %v1703
        %v2576 = vpack.c.b16 %v1712, %v1704
        %v2577 = vpack.c.b16 %v1713, %v1705
        %v2578 = vpack.c.b16 %v1714, %v1706
        %v2579 = vpack.c.b16 %v1715, %v1707
        %v2580 = vpack.c.b16 %v1716, %v1708
        %v2581 = vpack.c.b16 %v1717, %v1709
        %v2582 = vpack.c.b16 %v1726, %v1718
        %v2583 = vpack.c.b16 %v1727, %v1719
        %v2584 = vpack.c.b16 %v1728, %v1720
        %v2585 = vpack.c.b16 %v1729, %v1721
        %v2586 = vpack.c.b16 %v1730, %v1722
        %v2587 = vpack.c.b16 %v1731, %v1723
        %v2588 = vpack.c.b16 %v1732, %v1724
        %v2589 = vpack.c.b16 %v1733, %v1725
        %v2590 = vpack.c.b16 %v1742, %v1734
        %v2591 = vpack.c.b16 %v1743, %v1735
        %v2592 = vpack.c.b16 %v1744, %v1736
        %v2593 = vpack.c.b16 %v1745, %v1737
        %v2594 = vpack.c.b16 %v1746, %v1738
        %v2595 = vpack.c.b16 %v1747, %v1739
        %v2596 = vpack.c.b16 %v1748, %v1740
        %v2597 = vpack.c.b16 %v1749, %v1741
        %v2598 = vpack.c.b16 %v1758, %v1750
        %v2599 = vpack.c.b16 %v1759, %v1751
        %v2600 = vpack.c.b16 %v1760, %v1752
        %v2601 = vpack.c.b16 %v1761, %v1753
        %v2602 = vpack.c.b16 %v1762, %v1754
        %v2603 = vpack.c.b16 %v1763, %v1755
        %v2604 = vpack.c.b16 %v1764, %v1756
        %v2605 = vpack.c.b16 %v1765, %v1757
        %v2606 = vpack.c.b16 %v1774, %v1766
        %v2607 = vpack.c.b16 %v1775, %v1767
        %v2608 = vpack.c.b16 %v1776, %v1768
        %v2609 = vpack.c.b16 %v1777, %v1769
        %v2610 = vpack.c.b16 %v1778, %v1770
        %v2611 = vpack.c.b16 %v1779, %v1771
        %v2612 = vpack.c.b16 %v1780, %v1772
        %v2613 = vpack.c.b16 %v1781, %v1773
        %v2614 = vpack.c.b16 %v1790, %v1782
        %v2615 = vpack.c.b16 %v1791, %v1783
        %v2616 = vpack.c.b16 %v1792, %v1784
        %v2617 = vpack.c.b16 %v1793, %v1785
        %v2618 = vpack.c.b16 %v1794, %v1786
        %v2619 = vpack.c.b16 %v1795, %v1787
        %v2620 = vpack.c.b16 %v1796, %v1788
        %v2621 = vpack.c.b16 %v1797, %v1789
        %v2622 = vpack.c.b16 %v1806, %v1798
        %v2623 = vpack.c.b16 %v1807, %v1799
        %v2624 = vpack.c.b16 %v1808, %v1800
        %v2625 = vpack.c.b16 %v1809, %v1801
        %v2626 = vpack.c.b16 %v1810, %v1802
        %v2627 = vpack.c.b16 %v1811, %v1803
        %v2628 = vpack.c.b16 %v1812, %v1804
        %v2629 = vpack.c.b16 %v1813, %v1805
        %v2630 = vpack.c.b16 %v1822, %v1814
        %v2631 = vpack.c.b16 %v1823, %v1815
        %v2632 = vpack.c.b16 %v1824, %v1816
        %v2633 = vpack.c.b16 %v1825, %v1817
        %v2634 = vpack.c.b16 %v1826, %v1818
        %v2635 = vpack.c.b16 %v1827, %v1819
        %v2636 = vpack.c.b16 %v1828, %v1820
        %v2637 = vpack.c.b16 %v1829, %v1821
        %v2638 = vpack.c.b16 %v1838, %v1830
        %v2639 = vpack.c.b16 %v1839, %v1831
        %v2640 = vpack.c.b16 %v1840, %v1832
        %v2641 = vpack.c.b16 %v1841, %v1833
        %v2642 = vpack.c.b16 %v1842, %v1834
        %v2643 = vpack.c.b16 %v1843, %v1835
        %v2644 = vpack.c.b16 %v1844, %v1836
        %v2645 = vpack.c.b16 %v1845, %v1837
        %v2646 = vpack.c.b16 %v1854, %v1846
        %v2647 = vpack.c.b16 %v1855, %v1847
        %v2648 = vpack.c.b16 %v1856, %v1848
        %v2649 = vpack.c.b16 %v1857, %v1849
        %v2650 = vpack.c.b16 %v1858, %v1850
        %v2651 = vpack.c.b16 %v1859, %v1851
        %v2652 = vpack.c.b16 %v1860, %v1852
        %v2653 = vpack.c.b16 %v1861, %v1853
        %v2654 = vpack.c.b16 %v1870, %v1862
        %v2655 = vpack.c.b16 %v1871, %v1863
        %v2656 = vpack.c.b16 %v1872, %v1864
        %v2657 = vpack.c.b16 %v1873, %v1865
        %v2658 = vpack.c.b16 %v1874, %v1866
        %v2659 = vpack.c.b16 %v1875, %v1867
        %v2660 = vpack.c.b16 %v1876, %v1868
        %v2661 = vpack.c.b16 %v1877, %v1869
        %v2662 = vpack.c.b16 %v1886, %v1878
        %v2663 = vpack.c.b16 %v1887, %v1879
        %v2664 = vpack.c.b16 %v1888, %v1880
        %v2665 = vpack.c.b16 %v1889, %v1881
        %v2666 = vpack.c.b16 %v1890, %v1882
        %v2667 = vpack.c.b16 %v1891, %v1883
        %v2668 = vpack.c.b16 %v1892, %v1884
        %v2669 = vpack.c.b16 %v1893, %v1885
        %v2670 = vpack.c.b16 %v1902, %v1894
        %v2671 = vpack.c.b16 %v1903, %v1895
        %v2672 = vpack.c.b16 %v1904, %v1896
        %v2673 = vpack.c.b16 %v1905, %v1897
        %v2674 = vpack.c.b16 %v1906, %v1898
        %v2675 = vpack.c.b16 %v1907, %v1899
        %v2676 = vpack.c.b16 %v1908, %v1900
        %v2677 = vpack.c.b16 %v1909, %v1901
        %v2678 = vpack.c.b16 %v1918, %v1910
        %v2679 = vpack.c.b16 %v1919, %v1911
        %v2680 = vpack.c.b16 %v1920, %v1912
        %v2681 = vpack.c.b16 %v1921, %v1913
        %v2682 = vpack.c.b16 %v1922, %v1914
        %v2683 = vpack.c.b16 %v1923, %v1915
        %v2684 = vpack.c.b16 %v1924, %v1916
        %v2685 = vpack.c.b16 %v1925, %v1917
        %v2686 = vpack.c.b16 %v1934, %v1926
        %v2687 = vpack.c.b16 %v1935, %v1927
        %v2688 = vpack.c.b16 %v1936, %v1928
        %v2689 = vpack.c.b16 %v1937, %v1929
        %v2690 = vpack.c.b16 %v1938, %v1930
        %v2691 = vpack.c.b16 %v1939, %v1931
        %v2692 = vpack.c.b16 %v1940, %v1932
        %v2693 = vpack.c.b16 %v1941, %v1933
        %v2694 = vpack.c.b16 %v1950, %v1942
        %v2695 = vpack.c.b16 %v1951, %v1943
        %v2696 = vpack.c.b16 %v1952, %v1944
        %v2697 = vpack.c.b16 %v1953, %v1945
        %v2698 = vpack.c.b16 %v1954, %v1946
        %v2699 = vpack.c.b16 %v1955, %v1947
        %v2700 = vpack.c.b16 %v1956, %v1948
        %v2701 = vpack.c.b16 %v1957, %v1949
        %v2702 = vpack.c.b16 %v1966, %v1958
        %v2703 = vpack.c.b16 %v1967, %v1959
        %v2704 = vpack.c.b16 %v1968, %v1960
        %v2705 = vpack.c.b16 %v1969, %v1961
        %v2706 = vpack.c.b16 %v1970, %v1962
        %v2707 = vpack.c.b16 %v1971, %v1963
        %v2708 = vpack.c.b16 %v1972, %v1964
        %v2709 = vpack.c.b16 %v1973, %v1965
        %v2710 = vpack.c.b16 %v1982, %v1974
        %v2711 = vpack.c.b16 %v1983, %v1975
        %v2712 = vpack.c.b16 %v1984, %v1976
        %v2713 = vpack.c.b16 %v1985, %v1977
        %v2714 = vpack.c.b16 %v1986, %v1978
        %v2715 = vpack.c.b16 %v1987, %v1979
        %v2716 = vpack.c.b16 %v1988, %v1980
        %v2717 = vpack.c.b16 %v1989, %v1981
        %v2718 = vpack.c.b16 %v1998, %v1990
        %v2719 = vpack.c.b16 %v1999, %v1991
        %v2720 = vpack.c.b16 %v2000, %v1992
        %v2721 = vpack.c.b16 %v2001, %v1993
        %v2722 = vpack.c.b16 %v2002, %v1994
        %v2723 = vpack.c.b16 %v2003, %v1995
        %v2724 = vpack.c.b16 %v2004, %v1996
        %v2725 = vpack.c.b16 %v2005, %v1997
        %v2726 = vpack.c.b16 %v2014, %v2006
        %v2727 = vpack.c.b16 %v2015, %v2007
        %v2728 = vpack.c.b16 %v2016, %v2008
        %v2729 = vpack.c.b16 %v2017, %v2009
        %v2730 = vpack.c.b16 %v2018, %v2010
        %v2731 = vpack.c.b16 %v2019, %v2011
        %v2732 = vpack.c.b16 %v2020, %v2012
        %v2733 = vpack.c.b16 %v2021, %v2013
        %v2734 = vpack.c.b16 %v2030, %v2022
        %v2735 = vpack.c.b16 %v2031, %v2023
        %v2736 = vpack.c.b16 %v2032, %v2024
        %v2737 = vpack.c.b16 %v2033, %v2025
        %v2738 = vpack.c.b16 %v2034, %v2026
        %v2739 = vpack.c.b16 %v2035, %v2027
        %v2740 = vpack.c.b16 %v2036, %v2028
        %v2741 = vpack.c.b16 %v2037, %v2029
        %v2742 = vpack.c.b16 %v2046, %v2038
        %v2743 = vpack.c.b16 %v2047, %v2039
        %v2744 = vpack.c.b16 %v2048, %v2040
        %v2745 = vpack.c.b16 %v2049, %v2041
        %v2746 = vpack.c.b16 %v2050, %v2042
        %v2747 = vpack.c.b16 %v2051, %v2043
        %v2748 = vpack.c.b16 %v2052, %v2044
        %v2749 = vpack.c.b16 %v2053, %v2045
        %v2750 = vpack.c.b16 %v2062, %v2054
        %v2751 = vpack.c.b16 %v2063, %v2055
        %v2752 = vpack.c.b16 %v2064, %v2056
        %v2753 = vpack.c.b16 %v2065, %v2057
        %v2754 = vpack.c.b16 %v2066, %v2058
        %v2755 = vpack.c.b16 %v2067, %v2059
        %v2756 = vpack.c.b16 %v2068, %v2060
        %v2757 = vpack.c.b16 %v2069, %v2061
        %v2758 = vpack.c.b16 %v2078, %v2070
        %v2759 = vpack.c.b16 %v2079, %v2071
        %v2760 = vpack.c.b16 %v2080, %v2072
        %v2761 = vpack.c.b16 %v2081, %v2073
        %v2762 = vpack.c.b16 %v2082, %v2074
        %v2763 = vpack.c.b16 %v2083, %v2075
        %v2764 = vpack.c.b16 %v2084, %v2076
        %v2765 = vpack.c.b16 %v2085, %v2077
        %v2766 = vpack.c.b16 %v2094, %v2086
        %v2767 = vpack.c.b16 %v2095, %v2087
        %v2768 = vpack.c.b16 %v2096, %v2088
        %v2769 = vpack.c.b16 %v2097, %v2089
        %v2770 = vpack.c.b16 %v2098, %v2090
        %v2771 = vpack.c.b16 %v2099, %v2091
        %v2772 = vpack.c.b16 %v2100, %v2092
        %v2773 = vpack.c.b16 %v2101, %v2093
        %v2774 = vpack.c.b16 %v2110, %v2102
        %v2775 = vpack.c.b16 %v2111, %v2103
        %v2776 = vpack.c.b16 %v2112, %v2104
        %v2777 = vpack.c.b16 %v2113, %v2105
        %v2778 = vpack.c.b16 %v2114, %v2106
        %v2779 = vpack.c.b16 %v2115, %v2107
        %v2780 = vpack.c.b16 %v2116, %v2108
        %v2781 = vpack.c.b16 %v2117, %v2109
        %v2782 = vpack.c.b16 %v2126, %v2118
        %v2783 = vpack.c.b16 %v2127, %v2119
        %v2784 = vpack.c.b16 %v2128, %v2120
        %v2785 = vpack.c.b16 %v2129, %v2121
        %v2786 = vpack.c.b16 %v2130, %v2122
        %v2787 = vpack.c.b16 %v2131, %v2123
        %v2788 = vpack.c.b16 %v2132, %v2124
        %v2789 = vpack.c.b16 %v2133, %v2125
        %v2790 = vpack.c.b16 %v2142, %v2134
        %v2791 = vpack.c.b16 %v2143, %v2135
        %v2792 = vpack.c.b16 %v2144, %v2136
        %v2793 = vpack.c.b16 %v2145, %v2137
        %v2794 = vpack.c.b16 %v2146, %v2138
        %v2795 = vpack.c.b16 %v2147, %v2139
        %v2796 = vpack.c.b16 %v2148, %v2140
        %v2797 = vpack.c.b16 %v2149, %v2141
        %v2798 = vpack.c.b16 %v2158, %v2150
        %v2799 = vpack.c.b16 %v2159, %v2151
        %v2800 = vpack.c.b16 %v2160, %v2152
        %v2801 = vpack.c.b16 %v2161, %v2153
        %v2802 = vpack.c.b16 %v2162, %v2154
        %v2803 = vpack.c.b16 %v2163, %v2155
        %v2804 = vpack.c.b16 %v2164, %v2156
        %v2805 = vpack.c.b16 %v2165, %v2157
        %v2806 = vpack.c.b16 %v2174, %v2166
        %v2807 = vpack.c.b16 %v2175, %v2167
        %v2808 = vpack.c.b16 %v2176, %v2168
        %v2809 = vpack.c.b16 %v2177, %v2169
        %v2810 = vpack.c.b16 %v2178, %v2170
        %v2811 = vpack.c.b16 %v2179, %v2171
        %v2812 = vpack.c.b16 %v2180, %v2172
        %v2813 = vpack.c.b16 %v2181, %v2173
        %v2814 = vpack.c.b16 %v2190, %v2182
        %v2815 = vpack.c.b16 %v2191, %v2183
        %v2816 = vpack.c.b16 %v2192, %v2184
        %v2817 = vpack.c.b16 %v2193, %v2185
        %v2818 = vpack.c.b16 %v2194, %v2186
        %v2819 = vpack.c.b16 %v2195, %v2187
        %v2820 = vpack.c.b16 %v2196, %v2188
        %v2821 = vpack.c.b16 %v2197, %v2189
        %v2822 = vpack.c.b16 %v2206, %v2198
        %v2823 = vpack.c.b16 %v2207, %v2199
        %v2824 = vpack.c.b16 %v2208, %v2200
        %v2825 = vpack.c.b16 %v2209, %v2201
        %v2826 = vpack.c.b16 %v2210, %v2202
        %v2827 = vpack.c.b16 %v2211, %v2203
        %v2828 = vpack.c.b16 %v2212, %v2204
        %v2829 = vpack.c.b16 %v2213, %v2205
        %v2830 = vpack.c.b16 %v2222, %v2214
        %v2831 = vpack.c.b16 %v2223, %v2215
        %v2832 = vpack.c.b16 %v2224, %v2216
        %v2833 = vpack.c.b16 %v2225, %v2217
        %v2834 = vpack.c.b16 %v2226, %v2218
        %v2835 = vpack.c.b16 %v2227, %v2219
        %v2836 = vpack.c.b16 %v2228, %v2220
        %v2837 = vpack.c.b16 %v2229, %v2221
        %v2838 = vpack.c.b16 %v2238, %v2230
        %v2839 = vpack.c.b16 %v2239, %v2231
        %v2840 = vpack.c.b16 %v2240, %v2232
        %v2841 = vpack.c.b16 %v2241, %v2233
        %v2842 = vpack.c.b16 %v2242, %v2234
        %v2843 = vpack.c.b16 %v2243, %v2235
        %v2844 = vpack.c.b16 %v2244, %v2236
        %v2845 = vpack.c.b16 %v2245, %v2237
        %v2846 = vpack.c.b16 %v2254, %v2246
        %v2847 = vpack.c.b16 %v2255, %v2247
        %v2848 = vpack.c.b16 %v2256, %v2248
        %v2849 = vpack.c.b16 %v2257, %v2249
        %v2850 = vpack.c.b16 %v2258, %v2250
        %v2851 = vpack.c.b16 %v2259, %v2251
        %v2852 = vpack.c.b16 %v2260, %v2252
        %v2853 = vpack.c.b16 %v2261, %v2253
        %v2854 = vpack.c.b16 %v2270, %v2262
        %v2855 = vpack.c.b16 %v2271, %v2263
        %v2856 = vpack.c.b16 %v2272, %v2264
        %v2857 = vpack.c.b16 %v2273, %v2265
        %v2858 = vpack.c.b16 %v2274, %v2266
        %v2859 = vpack.c.b16 %v2275, %v2267
        %v2860 = vpack.c.b16 %v2276, %v2268
        %v2861 = vpack.c.b16 %v2277, %v2269
        %v2862 = vpack.c.b16 %v2286, %v2278
        %v2863 = vpack.c.b16 %v2287, %v2279
        %v2864 = vpack.c.b16 %v2288, %v2280
        %v2865 = vpack.c.b16 %v2289, %v2281
        %v2866 = vpack.c.b16 %v2290, %v2282
        %v2867 = vpack.c.b16 %v2291, %v2283
        %v2868 = vpack.c.b16 %v2292, %v2284
        %v2869 = vpack.c.b16 %v2293, %v2285
        %v2870 = vpack.c.b16 %v2302, %v2294
        %v2871 = vpack.c.b16 %v2303, %v2295
        %v2872 = vpack.c.b16 %v2304, %v2296
        %v2873 = vpack.c.b16 %v2305, %v2297
        %v2874 = vpack.c.b16 %v2306, %v2298
        %v2875 = vpack.c.b16 %v2307, %v2299
        %v2876 = vpack.c.b16 %v2308, %v2300
        %v2877 = vpack.c.b16 %v2309, %v2301
        %v2878 = vpack.c.b16 %v2318, %v2310
        %v2879 = vpack.c.b16 %v2319, %v2311
        %v2880 = vpack.c.b16 %v2320, %v2312
        %v2881 = vpack.c.b16 %v2321, %v2313
        %v2882 = vpack.c.b16 %v2322, %v2314
        %v2883 = vpack.c.b16 %v2323, %v2315
        %v2884 = vpack.c.b16 %v2324, %v2316
        %v2885 = vpack.c.b16 %v2325, %v2317
        %v2886 = vpack.c.b16 %v2334, %v2326
        %v2887 = vpack.c.b16 %v2335, %v2327
        %v2888 = vpack.c.b16 %v2336, %v2328
        %v2889 = vpack.c.b16 %v2337, %v2329
        %v2890 = vpack.c.b16 %v2338, %v2330
        %v2891 = vpack.c.b16 %v2339, %v2331
        %v2892 = vpack.c.b16 %v2340, %v2332
        %v2893 = vpack.c.b16 %v2341, %v2333
        %v2894 = vpack.c.b16 %v2350, %v2342
        %v2895 = vpack.c.b16 %v2351, %v2343
        %v2896 = vpack.c.b16 %v2352, %v2344
        %v2897 = vpack.c.b16 %v2353, %v2345
        %v2898 = vpack.c.b16 %v2354, %v2346
        %v2899 = vpack.c.b16 %v2355, %v2347
        %v2900 = vpack.c.b16 %v2356, %v2348
        %v2901 = vpack.c.b16 %v2357, %v2349
        %v2902 = vpack.c.b16 %v2366, %v2358
        %v2903 = vpack.c.b16 %v2367, %v2359
        %v2904 = vpack.c.b16 %v2368, %v2360
        %v2905 = vpack.c.b16 %v2369, %v2361
        %v2906 = vpack.c.b16 %v2370, %v2362
        %v2907 = vpack.c.b16 %v2371, %v2363
        %v2908 = vpack.c.b16 %v2372, %v2364
        %v2909 = vpack.c.b16 %v2373, %v2365
        %v2910 = vpack.c.b16 %v2382, %v2374
        %v2911 = vpack.c.b16 %v2383, %v2375
        %v2912 = vpack.c.b16 %v2384, %v2376
        %v2913 = vpack.c.b16 %v2385, %v2377
        %v2914 = vpack.c.b16 %v2386, %v2378
        %v2915 = vpack.c.b16 %v2387, %v2379
        %v2916 = vpack.c.b16 %v2388, %v2380
        %v2917 = vpack.c.b16 %v2389, %v2381
        %v2918 = vpack.c.b16 %v2398, %v2390
        %v2919 = vpack.c.b16 %v2399, %v2391
        %v2920 = vpack.c.b16 %v2400, %v2392
        %v2921 = vpack.c.b16 %v2401, %v2393
        %v2922 = vpack.c.b16 %v2402, %v2394
        %v2923 = vpack.c.b16 %v2403, %v2395
        %v2924 = vpack.c.b16 %v2404, %v2396
        %v2925 = vpack.c.b16 %v2405, %v2397
        %v2926 = vpack.c.b16 %v2414, %v2406
        %v2927 = vpack.c.b16 %v2415, %v2407
        %v2928 = vpack.c.b16 %v2416, %v2408
        %v2929 = vpack.c.b16 %v2417, %v2409
        %v2930 = vpack.c.b16 %v2418, %v2410
        %v2931 = vpack.c.b16 %v2419, %v2411
        %v2932 = vpack.c.b16 %v2420, %v2412
        %v2933 = vpack.c.b16 %v2421, %v2413
        %3446 = vmatprep.subr.bf16.mxu0 %v2423
        %3447 = vmatpush1.bf16.msra.mxu0 %v2422
        %3448 = vmatprep.subr.bf16.mxu0 %v2431
        %3449 = vmatpush1.bf16.msra.mxu0 %v2430
        %3450 = vmatprep.subr.bf16.mxu0 %v2439
        %3451 = vmatpush1.bf16.msra.mxu0 %v2438
        %3452 = vmatprep.subr.bf16.mxu0 %v2447
        %3453 = vmatpush1.bf16.msra.mxu0 %v2446
        %3454 = vmatprep.subr.bf16.mxu0 %v2455
        %3455 = vmatpush1.bf16.msra.mxu0 %v2454
        %3456 = vmatprep.subr.bf16.mxu0 %v2463
        %3457 = vmatpush1.bf16.msra.mxu0 %v2462
        %3458 = vmatprep.subr.bf16.mxu0 %v2471
        %3459 = vmatpush1.bf16.msra.mxu0 %v2470
        %3460 = vmatprep.subr.bf16.mxu0 %v2479
        %3461 = vmatpush1.bf16.msra.mxu0 %v2478
        %3462 = vmatprep.subr.bf16.mxu0 %v2487
        %3463 = vmatpush1.bf16.msra.mxu0 %v2486
        %3464 = vmatprep.subr.bf16.mxu0 %v2495
        %3465 = vmatpush1.bf16.msra.mxu0 %v2494
        %3466 = vmatprep.subr.bf16.mxu0 %v2503
        %3467 = vmatpush1.bf16.msra.mxu0 %v2502
        %3468 = vmatprep.subr.bf16.mxu0 %v2511
        %3469 = vmatpush1.bf16.msra.mxu0 %v2510
        %3470 = vmatprep.subr.bf16.mxu0 %v2519
        %3471 = vmatpush1.bf16.msra.mxu0 %v2518
        %3472 = vmatprep.subr.bf16.mxu0 %v2527
        %3473 = vmatpush1.bf16.msra.mxu0 %v2526
        %3474 = vmatprep.subr.bf16.mxu0 %v2535
        %3475 = vmatpush1.bf16.msra.mxu0 %v2534
        %3476 = vmatprep.subr.bf16.mxu0 %v2543
        %3477 = vmatpush1.bf16.msra.mxu0 %v2542
        %3478 = vmatprep.mubr.bf16.mxu0 %v335
        %3479 = vmatmul.mubr.bf16.gmra.mrb[0].mxu0 %v334
        %v3480 = vpop.f32.mrb[0].mxu0
        %v3481 = vadd.f32 %v857, %v3480
        %v3482 = vpop.f32.mrb[0].mxu0
        %v3483 = vadd.f32 %v861, %v3482
        %v3484 = vpop.f32.mrb[0].mxu0
        %v3485 = vadd.f32 %v857, %v3484
        %v3486 = vpop.f32.mrb[0].mxu0
        %v3487 = vadd.f32 %v861, %v3486
        %3488 = vdwg.mxu0
        %3489 = vmatprep.subr.bf16.mxu0 %v2551
        %3490 = vmatpush1.bf16.msra.mxu0 %v2550
        %3491 = vmatprep.subr.bf16.mxu0 %v2559
        %3492 = vmatpush1.bf16.msra.mxu0 %v2558
        %3493 = vmatprep.subr.bf16.mxu0 %v2567
        %3494 = vmatpush1.bf16.msra.mxu0 %v2566
        %3495 = vmatprep.subr.bf16.mxu0 %v2575
        %3496 = vmatpush1.bf16.msra.mxu0 %v2574
        %3497 = vmatprep.subr.bf16.mxu0 %v2583
        %3498 = vmatpush1.bf16.msra.mxu0 %v2582
        %3499 = vmatprep.subr.bf16.mxu0 %v2591
        %3500 = vmatpush1.bf16.msra.mxu0 %v2590
        %3501 = vmatprep.subr.bf16.mxu0 %v2599
        %3502 = vmatpush1.bf16.msra.mxu0 %v2598
        %3503 = vmatprep.subr.bf16.mxu0 %v2607
        %3504 = vmatpush1.bf16.msra.mxu0 %v2606
        %3505 = vmatprep.subr.bf16.mxu0 %v2615
        %3506 = vmatpush1.bf16.msra.mxu0 %v2614
        %3507 = vmatprep.subr.bf16.mxu0 %v2623
        %3508 = vmatpush1.bf16.msra.mxu0 %v2622
        %3509 = vmatprep.subr.bf16.mxu0 %v2631
        %3510 = vmatpush1.bf16.msra.mxu0 %v2630
        %3511 = vmatprep.subr.bf16.mxu0 %v2639
        %3512 = vmatpush1.bf16.msra.mxu0 %v2638
        %3513 = vmatprep.subr.bf16.mxu0 %v2647
        %3514 = vmatpush1.bf16.msra.mxu0 %v2646
        %3515 = vmatprep.subr.bf16.mxu0 %v2655
        %3516 = vmatpush1.bf16.msra.mxu0 %v2654
        %3517 = vmatprep.subr.bf16.mxu0 %v2663
        %3518 = vmatpush1.bf16.msra.mxu0 %v2662
        %3519 = vmatprep.subr.bf16.mxu0 %v2671
        %3520 = vmatpush1.bf16.msra.mxu0 %v2670
        %3521 = vmatprep.mubr.bf16.mxu0 %v337
        %3522 = vmatmul.mubr.bf16.gmra.mrb[0].mxu0 %v336
        %v3523 = vpop.f32.mrb[0].mxu0
        %v3524 = vadd.f32 %v3481, %v3523
        %v3525 = vpop.f32.mrb[0].mxu0
        %v3526 = vadd.f32 %v3483, %v3525
        %v3527 = vpop.f32.mrb[0].mxu0
        %v3528 = vadd.f32 %v3485, %v3527
        %v3529 = vpop.f32.mrb[0].mxu0
        %v3530 = vadd.f32 %v3487, %v3529
        %3531 = vdwg.mxu0
        %3532 = vmatprep.subr.bf16.mxu0 %v2679
        %3533 = vmatpush1.bf16.msra.mxu0 %v2678
        %3534 = vmatprep.subr.bf16.mxu0 %v2687
        %3535 = vmatpush1.bf16.msra.mxu0 %v2686
        %3536 = vmatprep.subr.bf16.mxu0 %v2695
        %3537 = vmatpush1.bf16.msra.mxu0 %v2694
        %3538 = vmatprep.subr.bf16.mxu0 %v2703
        %3539 = vmatpush1.bf16.msra.mxu0 %v2702
        %3540 = vmatprep.subr.bf16.mxu0 %v2711
        %3541 = vmatpush1.bf16.msra.mxu0 %v2710
        %3542 = vmatprep.subr.bf16.mxu0 %v2719
        %3543 = vmatpush1.bf16.msra.mxu0 %v2718
        %3544 = vmatprep.subr.bf16.mxu0 %v2727
        %3545 = vmatpush1.bf16.msra.mxu0 %v2726
        %3546 = vmatprep.subr.bf16.mxu0 %v2735
        %3547 = vmatpush1.bf16.msra.mxu0 %v2734
        %3548 = vmatprep.subr.bf16.mxu0 %v2743
        %3549 = vmatpush1.bf16.msra.mxu0 %v2742
        %3550 = vmatprep.subr.bf16.mxu0 %v2751
        %3551 = vmatpush1.bf16.msra.mxu0 %v2750
        %3552 = vmatprep.subr.bf16.mxu0 %v2759
        %3553 = vmatpush1.bf16.msra.mxu0 %v2758
        %3554 = vmatprep.subr.bf16.mxu0 %v2767
        %3555 = vmatpush1.bf16.msra.mxu0 %v2766
        %3556 = vmatprep.subr.bf16.mxu0 %v2775
        %3557 = vmatpush1.bf16.msra.mxu0 %v2774
        %3558 = vmatprep.subr.bf16.mxu0 %v2783
        %3559 = vmatpush1.bf16.msra.mxu0 %v2782
        %3560 = vmatprep.subr.bf16.mxu0 %v2791
        %3561 = vmatpush1.bf16.msra.mxu0 %v2790
        %3562 = vmatprep.subr.bf16.mxu0 %v2799
        %3563 = vmatpush1.bf16.msra.mxu0 %v2798
        %3564 = vmatprep.mubr.bf16.mxu0 %v339
        %3565 = vmatmul.mubr.bf16.gmra.mrb[0].mxu0 %v338
        %v3566 = vpop.f32.mrb[0].mxu0
        %v3567 = vadd.f32 %v3524, %v3566
        %v3568 = vpop.f32.mrb[0].mxu0
        %v3569 = vadd.f32 %v3526, %v3568
        %v3570 = vpop.f32.mrb[0].mxu0
        %v3571 = vadd.f32 %v3528, %v3570
        %v3572 = vpop.f32.mrb[0].mxu0
        %v3573 = vadd.f32 %v3530, %v3572
        %3574 = vdwg.mxu0
        %3575 = vmatprep.subr.bf16.mxu0 %v2807
        %3576 = vmatpush1.bf16.msra.mxu0 %v2806
        %3577 = vmatprep.subr.bf16.mxu0 %v2815
        %3578 = vmatpush1.bf16.msra.mxu0 %v2814
        %3579 = vmatprep.subr.bf16.mxu0 %v2823
        %3580 = vmatpush1.bf16.msra.mxu0 %v2822
        %3581 = vmatprep.subr.bf16.mxu0 %v2831
        %3582 = vmatpush1.bf16.msra.mxu0 %v2830
        %3583 = vmatprep.subr.bf16.mxu0 %v2839
        %3584 = vmatpush1.bf16.msra.mxu0 %v2838
        %3585 = vmatprep.subr.bf16.mxu0 %v2847
        %3586 = vmatpush1.bf16.msra.mxu0 %v2846
        %3587 = vmatprep.subr.bf16.mxu0 %v2855
        %3588 = vmatpush1.bf16.msra.mxu0 %v2854
        %3589 = vmatprep.subr.bf16.mxu0 %v2863
        %3590 = vmatpush1.bf16.msra.mxu0 %v2862
        %3591 = vmatprep.subr.bf16.mxu0 %v2871
        %3592 = vmatpush1.bf16.msra.mxu0 %v2870
        %3593 = vmatprep.subr.bf16.mxu0 %v2879
        %3594 = vmatpush1.bf16.msra.mxu0 %v2878
        %3595 = vmatprep.subr.bf16.mxu0 %v2887
        %3596 = vmatpush1.bf16.msra.mxu0 %v2886
        %3597 = vmatprep.subr.bf16.mxu0 %v2895
        %3598 = vmatpush1.bf16.msra.mxu0 %v2894
        %3599 = vmatprep.subr.bf16.mxu0 %v2903
        %3600 = vmatpush1.bf16.msra.mxu0 %v2902
        %3601 = vmatprep.subr.bf16.mxu0 %v2911
        %3602 = vmatpush1.bf16.msra.mxu0 %v2910
        %3603 = vmatprep.subr.bf16.mxu0 %v2919
        %3604 = vmatpush1.bf16.msra.mxu0 %v2918
        %3605 = vmatprep.subr.bf16.mxu0 %v2927
        %3606 = vmatpush1.bf16.msra.mxu0 %v2926
        %3607 = vmatprep.mubr.bf16.mxu0 %v341
        %3608 = vmatmul.mubr.bf16.gmra.mrb[0].mxu0 %v340
        %v3609 = vpop.f32.mrb[0].mxu0
        %v3610 = vadd.f32 %v3567, %v3609
        %v3611 = vpop.f32.mrb[0].mxu0
        %v3612 = vadd.f32 %v3569, %v3611
        %v3613 = vpop.f32.mrb[0].mxu0
        %v3614 = vadd.f32 %v3571, %v3613
        %v3615 = vpop.f32.mrb[0].mxu0
        %v3616 = vadd.f32 %v3573, %v3615
        %3617 = vdwg.mxu0
        %3618 = vmatprep.subr.bf16.mxu0 %v2425
        %3619 = vmatpush1.bf16.msra.mxu0 %v2424
        %3620 = vmatprep.subr.bf16.mxu0 %v2433
        %3621 = vmatpush1.bf16.msra.mxu0 %v2432
        %3622 = vmatprep.subr.bf16.mxu0 %v2441
        %3623 = vmatpush1.bf16.msra.mxu0 %v2440
        %3624 = vmatprep.subr.bf16.mxu0 %v2449
        %3625 = vmatpush1.bf16.msra.mxu0 %v2448
        %3626 = vmatprep.subr.bf16.mxu0 %v2457
        %3627 = vmatpush1.bf16.msra.mxu0 %v2456
        %3628 = vmatprep.subr.bf16.mxu0 %v2465
        %3629 = vmatpush1.bf16.msra.mxu0 %v2464
        %3630 = vmatprep.subr.bf16.mxu0 %v2473
        %3631 = vmatpush1.bf16.msra.mxu0 %v2472
        %3632 = vmatprep.subr.bf16.mxu0 %v2481
        %3633 = vmatpush1.bf16.msra.mxu0 %v2480
        %3634 = vmatprep.subr.bf16.mxu0 %v2489
        %3635 = vmatpush1.bf16.msra.mxu0 %v2488
        %3636 = vmatprep.subr.bf16.mxu0 %v2497
        %3637 = vmatpush1.bf16.msra.mxu0 %v2496
        %3638 = vmatprep.subr.bf16.mxu0 %v2505
        %3639 = vmatpush1.bf16.msra.mxu0 %v2504
        %3640 = vmatprep.subr.bf16.mxu0 %v2513
        %3641 = vmatpush1.bf16.msra.mxu0 %v2512
        %3642 = vmatprep.subr.bf16.mxu0 %v2521
        %3643 = vmatpush1.bf16.msra.mxu0 %v2520
        %3644 = vmatprep.subr.bf16.mxu0 %v2529
        %3645 = vmatpush1.bf16.msra.mxu0 %v2528
        %3646 = vmatprep.subr.bf16.mxu0 %v2537
        %3647 = vmatpush1.bf16.msra.mxu0 %v2536
        %3648 = vmatprep.subr.bf16.mxu0 %v2545
        %3649 = vmatpush1.bf16.msra.mxu0 %v2544
        %3650 = vmatprep.mubr.bf16.mxu0 %v335
        %3651 = vmatmul.mubr.bf16.gmra.mrb[0].mxu0 %v334
        %v3652 = vpop.f32.mrb[0].mxu0
        %v3653 = vadd.f32 %v865, %v3652
        %v3654 = vpop.f32.mrb[0].mxu0
        %v3655 = vadd.f32 %v869, %v3654
        %v3656 = vpop.f32.mrb[0].mxu0
        %v3657 = vadd.f32 %v865, %v3656
        %v3658 = vpop.f32.mrb[0].mxu0
        %v3659 = vadd.f32 %v869, %v3658
        %3660 = vdwg.mxu0
        %3661 = vmatprep.subr.bf16.mxu0 %v2553
        %3662 = vmatpush1.bf16.msra.mxu0 %v2552
        %3663 = vmatprep.subr.bf16.mxu0 %v2561
        %3664 = vmatpush1.bf16.msra.mxu0 %v2560
        %3665 = vmatprep.subr.bf16.mxu0 %v2569
        %3666 = vmatpush1.bf16.msra.mxu0 %v2568
        %3667 = vmatprep.subr.bf16.mxu0 %v2577
        %3668 = vmatpush1.bf16.msra.mxu0 %v2576
        %3669 = vmatprep.subr.bf16.mxu0 %v2585
        %3670 = vmatpush1.bf16.msra.mxu0 %v2584
        %3671 = vmatprep.subr.bf16.mxu0 %v2593
        %3672 = vmatpush1.bf16.msra.mxu0 %v2592
        %3673 = vmatprep.subr.bf16.mxu0 %v2601
        %3674 = vmatpush1.bf16.msra.mxu0 %v2600
        %3675 = vmatprep.subr.bf16.mxu0 %v2609
        %3676 = vmatpush1.bf16.msra.mxu0 %v2608
        %3677 = vmatprep.subr.bf16.mxu0 %v2617
        %3678 = vmatpush1.bf16.msra.mxu0 %v2616
        %3679 = vmatprep.subr.bf16.mxu0 %v2625
        %3680 = vmatpush1.bf16.msra.mxu0 %v2624
        %3681 = vmatprep.subr.bf16.mxu0 %v2633
        %3682 = vmatpush1.bf16.msra.mxu0 %v2632
        %3683 = vmatprep.subr.bf16.mxu0 %v2641
        %3684 = vmatpush1.bf16.msra.mxu0 %v2640
        %3685 = vmatprep.subr.bf16.mxu0 %v2649
        %3686 = vmatpush1.bf16.msra.mxu0 %v2648
        %3687 = vmatprep.subr.bf16.mxu0 %v2657
        %3688 = vmatpush1.bf16.msra.mxu0 %v2656
        %3689 = vmatprep.subr.bf16.mxu0 %v2665
        %3690 = vmatpush1.bf16.msra.mxu0 %v2664
        %3691 = vmatprep.subr.bf16.mxu0 %v2673
        %3692 = vmatpush1.bf16.msra.mxu0 %v2672
        %3693 = vmatprep.mubr.bf16.mxu0 %v337
        %3694 = vmatmul.mubr.bf16.gmra.mrb[0].mxu0 %v336
        %v3695 = vpop.f32.mrb[0].mxu0
        %v3696 = vadd.f32 %v3653, %v3695
        %v3697 = vpop.f32.mrb[0].mxu0
        %v3698 = vadd.f32 %v3655, %v3697
        %v3699 = vpop.f32.mrb[0].mxu0
        %v3700 = vadd.f32 %v3657, %v3699
        %v3701 = vpop.f32.mrb[0].mxu0
        %v3702 = vadd.f32 %v3659, %v3701
        %3703 = vdwg.mxu0
        %3704 = vmatprep.subr.bf16.mxu0 %v2681
        %3705 = vmatpush1.bf16.msra.mxu0 %v2680
        %3706 = vmatprep.subr.bf16.mxu0 %v2689
        %3707 = vmatpush1.bf16.msra.mxu0 %v2688
        %3708 = vmatprep.subr.bf16.mxu0 %v2697
        %3709 = vmatpush1.bf16.msra.mxu0 %v2696
        %3710 = vmatprep.subr.bf16.mxu0 %v2705
        %3711 = vmatpush1.bf16.msra.mxu0 %v2704
        %3712 = vmatprep.subr.bf16.mxu0 %v2713
        %3713 = vmatpush1.bf16.msra.mxu0 %v2712
        %3714 = vmatprep.subr.bf16.mxu0 %v2721
        %3715 = vmatpush1.bf16.msra.mxu0 %v2720
        %3716 = vmatprep.subr.bf16.mxu0 %v2729
        %3717 = vmatpush1.bf16.msra.mxu0 %v2728
        %3718 = vmatprep.subr.bf16.mxu0 %v2737
        %3719 = vmatpush1.bf16.msra.mxu0 %v2736
        %3720 = vmatprep.subr.bf16.mxu0 %v2745
        %3721 = vmatpush1.bf16.msra.mxu0 %v2744
        %3722 = vmatprep.subr.bf16.mxu0 %v2753
        %3723 = vmatpush1.bf16.msra.mxu0 %v2752
        %3724 = vmatprep.subr.bf16.mxu0 %v2761
        %3725 = vmatpush1.bf16.msra.mxu0 %v2760
        %3726 = vmatprep.subr.bf16.mxu0 %v2769
        %3727 = vmatpush1.bf16.msra.mxu0 %v2768
        %3728 = vmatprep.subr.bf16.mxu0 %v2777
        %3729 = vmatpush1.bf16.msra.mxu0 %v2776
        %3730 = vmatprep.subr.bf16.mxu0 %v2785
        %3731 = vmatpush1.bf16.msra.mxu0 %v2784
        %3732 = vmatprep.subr.bf16.mxu0 %v2793
        %3733 = vmatpush1.bf16.msra.mxu0 %v2792
        %3734 = vmatprep.subr.bf16.mxu0 %v2801
        %3735 = vmatpush1.bf16.msra.mxu0 %v2800
        %3736 = vmatprep.mubr.bf16.mxu0 %v339
        %3737 = vmatmul.mubr.bf16.gmra.mrb[0].mxu0 %v338
        %v3738 = vpop.f32.mrb[0].mxu0
        %v3739 = vadd.f32 %v3696, %v3738
        %v3740 = vpop.f32.mrb[0].mxu0
        %v3741 = vadd.f32 %v3698, %v3740
        %v3742 = vpop.f32.mrb[0].mxu0
        %v3743 = vadd.f32 %v3700, %v3742
        %v3744 = vpop.f32.mrb[0].mxu0
        %v3745 = vadd.f32 %v3702, %v3744
        %3746 = vdwg.mxu0
        %3747 = vmatprep.subr.bf16.mxu0 %v2809
        %3748 = vmatpush1.bf16.msra.mxu0 %v2808
        %3749 = vmatprep.subr.bf16.mxu0 %v2817
        %3750 = vmatpush1.bf16.msra.mxu0 %v2816
        %3751 = vmatprep.subr.bf16.mxu0 %v2825
        %3752 = vmatpush1.bf16.msra.mxu0 %v2824
        %3753 = vmatprep.subr.bf16.mxu0 %v2833
        %3754 = vmatpush1.bf16.msra.mxu0 %v2832
        %3755 = vmatprep.subr.bf16.mxu0 %v2841
        %3756 = vmatpush1.bf16.msra.mxu0 %v2840
        %3757 = vmatprep.subr.bf16.mxu0 %v2849
        %3758 = vmatpush1.bf16.msra.mxu0 %v2848
        %3759 = vmatprep.subr.bf16.mxu0 %v2857
        %3760 = vmatpush1.bf16.msra.mxu0 %v2856
        %3761 = vmatprep.subr.bf16.mxu0 %v2865
        %3762 = vmatpush1.bf16.msra.mxu0 %v2864
        %3763 = vmatprep.subr.bf16.mxu0 %v2873
        %3764 = vmatpush1.bf16.msra.mxu0 %v2872
        %3765 = vmatprep.subr.bf16.mxu0 %v2881
        %3766 = vmatpush1.bf16.msra.mxu0 %v2880
        %3767 = vmatprep.subr.bf16.mxu0 %v2889
        %3768 = vmatpush1.bf16.msra.mxu0 %v2888
        %3769 = vmatprep.subr.bf16.mxu0 %v2897
        %3770 = vmatpush1.bf16.msra.mxu0 %v2896
        %3771 = vmatprep.subr.bf16.mxu0 %v2905
        %3772 = vmatpush1.bf16.msra.mxu0 %v2904
        %3773 = vmatprep.subr.bf16.mxu0 %v2913
        %3774 = vmatpush1.bf16.msra.mxu0 %v2912
        %3775 = vmatprep.subr.bf16.mxu0 %v2921
        %3776 = vmatpush1.bf16.msra.mxu0 %v2920
        %3777 = vmatprep.subr.bf16.mxu0 %v2929
        %3778 = vmatpush1.bf16.msra.mxu0 %v2928
        %3779 = vmatprep.mubr.bf16.mxu0 %v341
        %3780 = vmatmul.mubr.bf16.gmra.mrb[0].mxu0 %v340
        %v3781 = vpop.f32.mrb[0].mxu0
        %v3782 = vadd.f32 %v3739, %v3781
        %v3783 = vpop.f32.mrb[0].mxu0
        %v3784 = vadd.f32 %v3741, %v3783
        %v3785 = vpop.f32.mrb[0].mxu0
        %v3786 = vadd.f32 %v3743, %v3785
        %v3787 = vpop.f32.mrb[0].mxu0
        %v3788 = vadd.f32 %v3745, %v3787
        %3789 = vdwg.mxu0
        %3790 = vmatprep.subr.bf16.mxu0 %v2427
        %3791 = vmatpush1.bf16.msra.mxu0 %v2426
        %3792 = vmatprep.subr.bf16.mxu0 %v2435
        %3793 = vmatpush1.bf16.msra.mxu0 %v2434
        %3794 = vmatprep.subr.bf16.mxu0 %v2443
        %3795 = vmatpush1.bf16.msra.mxu0 %v2442
        %3796 = vmatprep.subr.bf16.mxu0 %v2451
        %3797 = vmatpush1.bf16.msra.mxu0 %v2450
        %3798 = vmatprep.subr.bf16.mxu0 %v2459
        %3799 = vmatpush1.bf16.msra.mxu0 %v2458
        %3800 = vmatprep.subr.bf16.mxu0 %v2467
        %3801 = vmatpush1.bf16.msra.mxu0 %v2466
        %3802 = vmatprep.subr.bf16.mxu0 %v2475
        %3803 = vmatpush1.bf16.msra.mxu0 %v2474
        %3804 = vmatprep.subr.bf16.mxu0 %v2483
        %3805 = vmatpush1.bf16.msra.mxu0 %v2482
        %3806 = vmatprep.subr.bf16.mxu0 %v2491
        %3807 = vmatpush1.bf16.msra.mxu0 %v2490
        %3808 = vmatprep.subr.bf16.mxu0 %v2499
        %3809 = vmatpush1.bf16.msra.mxu0 %v2498
        %3810 = vmatprep.subr.bf16.mxu0 %v2507
        %3811 = vmatpush1.bf16.msra.mxu0 %v2506
        %3812 = vmatprep.subr.bf16.mxu0 %v2515
        %3813 = vmatpush1.bf16.msra.mxu0 %v2514
        %3814 = vmatprep.subr.bf16.mxu0 %v2523
        %3815 = vmatpush1.bf16.msra.mxu0 %v2522
        %3816 = vmatprep.subr.bf16.mxu0 %v2531
        %3817 = vmatpush1.bf16.msra.mxu0 %v2530
        %3818 = vmatprep.subr.bf16.mxu0 %v2539
        %3819 = vmatpush1.bf16.msra.mxu0 %v2538
        %3820 = vmatprep.subr.bf16.mxu0 %v2547
        %3821 = vmatpush1.bf16.msra.mxu0 %v2546
        %3822 = vmatprep.mubr.bf16.mxu0 %v335
        %3823 = vmatmul.mubr.bf16.gmra.mrb[0].mxu0 %v334
        %v3824 = vpop.f32.mrb[0].mxu0
        %v3825 = vadd.f32 %v873, %v3824
        %v3826 = vpop.f32.mrb[0].mxu0
        %v3827 = vadd.f32 %v877, %v3826
        %v3828 = vpop.f32.mrb[0].mxu0
        %v3829 = vadd.f32 %v873, %v3828
        %v3830 = vpop.f32.mrb[0].mxu0
        %v3831 = vadd.f32 %v877, %v3830
        %3832 = vdwg.mxu0
        %3833 = vmatprep.subr.bf16.mxu0 %v2555
        %3834 = vmatpush1.bf16.msra.mxu0 %v2554
        %3835 = vmatprep.subr.bf16.mxu0 %v2563
        %3836 = vmatpush1.bf16.msra.mxu0 %v2562
        %3837 = vmatprep.subr.bf16.mxu0 %v2571
        %3838 = vmatpush1.bf16.msra.mxu0 %v2570
        %3839 = vmatprep.subr.bf16.mxu0 %v2579
        %3840 = vmatpush1.bf16.msra.mxu0 %v2578
        %3841 = vmatprep.subr.bf16.mxu0 %v2587
        %3842 = vmatpush1.bf16.msra.mxu0 %v2586
        %3843 = vmatprep.subr.bf16.mxu0 %v2595
        %3844 = vmatpush1.bf16.msra.mxu0 %v2594
        %3845 = vmatprep.subr.bf16.mxu0 %v2603
        %3846 = vmatpush1.bf16.msra.mxu0 %v2602
        %3847 = vmatprep.subr.bf16.mxu0 %v2611
        %3848 = vmatpush1.bf16.msra.mxu0 %v2610
        %3849 = vmatprep.subr.bf16.mxu0 %v2619
        %3850 = vmatpush1.bf16.msra.mxu0 %v2618
        %3851 = vmatprep.subr.bf16.mxu0 %v2627
        %3852 = vmatpush1.bf16.msra.mxu0 %v2626
        %3853 = vmatprep.subr.bf16.mxu0 %v2635
        %3854 = vmatpush1.bf16.msra.mxu0 %v2634
        %3855 = vmatprep.subr.bf16.mxu0 %v2643
        %3856 = vmatpush1.bf16.msra.mxu0 %v2642
        %3857 = vmatprep.subr.bf16.mxu0 %v2651
        %3858 = vmatpush1.bf16.msra.mxu0 %v2650
        %3859 = vmatprep.subr.bf16.mxu0 %v2659
        %3860 = vmatpush1.bf16.msra.mxu0 %v2658
        %3861 = vmatprep.subr.bf16.mxu0 %v2667
        %3862 = vmatpush1.bf16.msra.mxu0 %v2666
        %3863 = vmatprep.subr.bf16.mxu0 %v2675
        %3864 = vmatpush1.bf16.msra.mxu0 %v2674
        %3865 = vmatprep.mubr.bf16.mxu0 %v337
        %3866 = vmatmul.mubr.bf16.gmra.mrb[0].mxu0 %v336
        %v3867 = vpop.f32.mrb[0].mxu0
        %v3868 = vadd.f32 %v3825, %v3867
        %v3869 = vpop.f32.mrb[0].mxu0
        %v3870 = vadd.f32 %v3827, %v3869
        %v3871 = vpop.f32.mrb[0].mxu0
        %v3872 = vadd.f32 %v3829, %v3871
        %v3873 = vpop.f32.mrb[0].mxu0
        %v3874 = vadd.f32 %v3831, %v3873
        %3875 = vdwg.mxu0
        %3876 = vmatprep.subr.bf16.mxu0 %v2683
        %3877 = vmatpush1.bf16.msra.mxu0 %v2682
        %3878 = vmatprep.subr.bf16.mxu0 %v2691
        %3879 = vmatpush1.bf16.msra.mxu0 %v2690
        %3880 = vmatprep.subr.bf16.mxu0 %v2699
        %3881 = vmatpush1.bf16.msra.mxu0 %v2698
        %3882 = vmatprep.subr.bf16.mxu0 %v2707
        %3883 = vmatpush1.bf16.msra.mxu0 %v2706
        %3884 = vmatprep.subr.bf16.mxu0 %v2715
        %3885 = vmatpush1.bf16.msra.mxu0 %v2714
        %3886 = vmatprep.subr.bf16.mxu0 %v2723
        %3887 = vmatpush1.bf16.msra.mxu0 %v2722
        %3888 = vmatprep.subr.bf16.mxu0 %v2731
        %3889 = vmatpush1.bf16.msra.mxu0 %v2730
        %3890 = vmatprep.subr.bf16.mxu0 %v2739
        %3891 = vmatpush1.bf16.msra.mxu0 %v2738
        %3892 = vmatprep.subr.bf16.mxu0 %v2747
        %3893 = vmatpush1.bf16.msra.mxu0 %v2746
        %3894 = vmatprep.subr.bf16.mxu0 %v2755
        %3895 = vmatpush1.bf16.msra.mxu0 %v2754
        %3896 = vmatprep.subr.bf16.mxu0 %v2763
        %3897 = vmatpush1.bf16.msra.mxu0 %v2762
        %3898 = vmatprep.subr.bf16.mxu0 %v2771
        %3899 = vmatpush1.bf16.msra.mxu0 %v2770
        %3900 = vmatprep.subr.bf16.mxu0 %v2779
        %3901 = vmatpush1.bf16.msra.mxu0 %v2778
        %3902 = vmatprep.subr.bf16.mxu0 %v2787
        %3903 = vmatpush1.bf16.msra.mxu0 %v2786
        %3904 = vmatprep.subr.bf16.mxu0 %v2795
        %3905 = vmatpush1.bf16.msra.mxu0 %v2794
        %3906 = vmatprep.subr.bf16.mxu0 %v2803
        %3907 = vmatpush1.bf16.msra.mxu0 %v2802
        %3908 = vmatprep.mubr.bf16.mxu0 %v339
        %3909 = vmatmul.mubr.bf16.gmra.mrb[0].mxu0 %v338
        %v3910 = vpop.f32.mrb[0].mxu0
        %v3911 = vadd.f32 %v3868, %v3910
        %v3912 = vpop.f32.mrb[0].mxu0
        %v3913 = vadd.f32 %v3870, %v3912
        %v3914 = vpop.f32.mrb[0].mxu0
        %v3915 = vadd.f32 %v3872, %v3914
        %v3916 = vpop.f32.mrb[0].mxu0
        %v3917 = vadd.f32 %v3874, %v3916
        %3918 = vdwg.mxu0
        %3919 = vmatprep.subr.bf16.mxu0 %v2811
        %3920 = vmatpush1.bf16.msra.mxu0 %v2810
        %3921 = vmatprep.subr.bf16.mxu0 %v2819
        %3922 = vmatpush1.bf16.msra.mxu0 %v2818
        %3923 = vmatprep.subr.bf16.mxu0 %v2827
        %3924 = vmatpush1.bf16.msra.mxu0 %v2826
        %3925 = vmatprep.subr.bf16.mxu0 %v2835
        %3926 = vmatpush1.bf16.msra.mxu0 %v2834
        %3927 = vmatprep.subr.bf16.mxu0 %v2843
        %3928 = vmatpush1.bf16.msra.mxu0 %v2842
        %3929 = vmatprep.subr.bf16.mxu0 %v2851
        %3930 = vmatpush1.bf16.msra.mxu0 %v2850
        %3931 = vmatprep.subr.bf16.mxu0 %v2859
        %3932 = vmatpush1.bf16.msra.mxu0 %v2858
        %3933 = vmatprep.subr.bf16.mxu0 %v2867
        %3934 = vmatpush1.bf16.msra.mxu0 %v2866
        %3935 = vmatprep.subr.bf16.mxu0 %v2875
        %3936 = vmatpush1.bf16.msra.mxu0 %v2874
        %3937 = vmatprep.subr.bf16.mxu0 %v2883
        %3938 = vmatpush1.bf16.msra.mxu0 %v2882
        %3939 = vmatprep.subr.bf16.mxu0 %v2891
        %3940 = vmatpush1.bf16.msra.mxu0 %v2890
        %3941 = vmatprep.subr.bf16.mxu0 %v2899
        %3942 = vmatpush1.bf16.msra.mxu0 %v2898
        %3943 = vmatprep.subr.bf16.mxu0 %v2907
        %3944 = vmatpush1.bf16.msra.mxu0 %v2906
        %3945 = vmatprep.subr.bf16.mxu0 %v2915
        %3946 = vmatpush1.bf16.msra.mxu0 %v2914
        %3947 = vmatprep.subr.bf16.mxu0 %v2923
        %3948 = vmatpush1.bf16.msra.mxu0 %v2922
        %3949 = vmatprep.subr.bf16.mxu0 %v2931
        %3950 = vmatpush1.bf16.msra.mxu0 %v2930
        %3951 = vmatprep.mubr.bf16.mxu0 %v341
        %3952 = vmatmul.mubr.bf16.gmra.mrb[0].mxu0 %v340
        %v3953 = vpop.f32.mrb[0].mxu0
        %v3954 = vadd.f32 %v3911, %v3953
        %v3955 = vpop.f32.mrb[0].mxu0
        %v3956 = vadd.f32 %v3913, %v3955
        %v3957 = vpop.f32.mrb[0].mxu0
        %v3958 = vadd.f32 %v3915, %v3957
        %v3959 = vpop.f32.mrb[0].mxu0
        %v3960 = vadd.f32 %v3917, %v3959
        %3961 = vdwg.mxu0
        %3962 = vmatprep.subr.bf16.mxu0 %v2429
        %3963 = vmatpush1.bf16.msra.mxu0 %v2428
        %3964 = vmatprep.subr.bf16.mxu0 %v2437
        %3965 = vmatpush1.bf16.msra.mxu0 %v2436
        %3966 = vmatprep.subr.bf16.mxu0 %v2445
        %3967 = vmatpush1.bf16.msra.mxu0 %v2444
        %3968 = vmatprep.subr.bf16.mxu0 %v2453
        %3969 = vmatpush1.bf16.msra.mxu0 %v2452
        %3970 = vmatprep.subr.bf16.mxu0 %v2461
        %3971 = vmatpush1.bf16.msra.mxu0 %v2460
        %3972 = vmatprep.subr.bf16.mxu0 %v2469
        %3973 = vmatpush1.bf16.msra.mxu0 %v2468
        %3974 = vmatprep.subr.bf16.mxu0 %v2477
        %3975 = vmatpush1.bf16.msra.mxu0 %v2476
        %3976 = vmatprep.subr.bf16.mxu0 %v2485
        %3977 = vmatpush1.bf16.msra.mxu0 %v2484
        %3978 = vmatprep.subr.bf16.mxu0 %v2493
        %3979 = vmatpush1.bf16.msra.mxu0 %v2492
        %3980 = vmatprep.subr.bf16.mxu0 %v2501
        %3981 = vmatpush1.bf16.msra.mxu0 %v2500
        %3982 = vmatprep.subr.bf16.mxu0 %v2509
        %3983 = vmatpush1.bf16.msra.mxu0 %v2508
        %3984 = vmatprep.subr.bf16.mxu0 %v2517
        %3985 = vmatpush1.bf16.msra.mxu0 %v2516
        %3986 = vmatprep.subr.bf16.mxu0 %v2525
        %3987 = vmatpush1.bf16.msra.mxu0 %v2524
        %3988 = vmatprep.subr.bf16.mxu0 %v2533
        %3989 = vmatpush1.bf16.msra.mxu0 %v2532
        %3990 = vmatprep.subr.bf16.mxu0 %v2541
        %3991 = vmatpush1.bf16.msra.mxu0 %v2540
        %3992 = vmatprep.subr.bf16.mxu0 %v2549
        %3993 = vmatpush1.bf16.msra.mxu0 %v2548
        %3994 = vmatprep.mubr.bf16.mxu0 %v335
        %3995 = vmatmul.mubr.bf16.gmra.mrb[0].mxu0 %v334
        %v3996 = vpop.f32.mrb[0].mxu0
        %v3997 = vadd.f32 %v881, %v3996
        %v3998 = vpop.f32.mrb[0].mxu0
        %v3999 = vadd.f32 %v885, %v3998
        %v4000 = vpop.f32.mrb[0].mxu0
        %v4001 = vadd.f32 %v881, %v4000
        %v4002 = vpop.f32.mrb[0].mxu0
        %v4003 = vadd.f32 %v885, %v4002
        %4004 = vdwg.mxu0
        %4005 = vmatprep.subr.bf16.mxu0 %v2557
        %4006 = vmatpush1.bf16.msra.mxu0 %v2556
        %4007 = vmatprep.subr.bf16.mxu0 %v2565
        %4008 = vmatpush1.bf16.msra.mxu0 %v2564
        %4009 = vmatprep.subr.bf16.mxu0 %v2573
        %4010 = vmatpush1.bf16.msra.mxu0 %v2572
        %4011 = vmatprep.subr.bf16.mxu0 %v2581
        %4012 = vmatpush1.bf16.msra.mxu0 %v2580
        %4013 = vmatprep.subr.bf16.mxu0 %v2589
        %4014 = vmatpush1.bf16.msra.mxu0 %v2588
        %4015 = vmatprep.subr.bf16.mxu0 %v2597
        %4016 = vmatpush1.bf16.msra.mxu0 %v2596
        %4017 = vmatprep.subr.bf16.mxu0 %v2605
        %4018 = vmatpush1.bf16.msra.mxu0 %v2604
        %4019 = vmatprep.subr.bf16.mxu0 %v2613
        %4020 = vmatpush1.bf16.msra.mxu0 %v2612
        %4021 = vmatprep.subr.bf16.mxu0 %v2621
        %4022 = vmatpush1.bf16.msra.mxu0 %v2620
        %4023 = vmatprep.subr.bf16.mxu0 %v2629
        %4024 = vmatpush1.bf16.msra.mxu0 %v2628
        %4025 = vmatprep.subr.bf16.mxu0 %v2637
        %4026 = vmatpush1.bf16.msra.mxu0 %v2636
        %4027 = vmatprep.subr.bf16.mxu0 %v2645
        %4028 = vmatpush1.bf16.msra.mxu0 %v2644
        %4029 = vmatprep.subr.bf16.mxu0 %v2653
        %4030 = vmatpush1.bf16.msra.mxu0 %v2652
        %4031 = vmatprep.subr.bf16.mxu0 %v2661
        %4032 = vmatpush1.bf16.msra.mxu0 %v2660
        %4033 = vmatprep.subr.bf16.mxu0 %v2669
        %4034 = vmatpush1.bf16.msra.mxu0 %v2668
        %4035 = vmatprep.subr.bf16.mxu0 %v2677
        %4036 = vmatpush1.bf16.msra.mxu0 %v2676
        %4037 = vmatprep.mubr.bf16.mxu0 %v337
        %4038 = vmatmul.mubr.bf16.gmra.mrb[0].mxu0 %v336
        %v4039 = vpop.f32.mrb[0].mxu0
        %v4040 = vadd.f32 %v3997, %v4039
        %v4041 = vpop.f32.mrb[0].mxu0
        %v4042 = vadd.f32 %v3999, %v4041
        %v4043 = vpop.f32.mrb[0].mxu0
        %v4044 = vadd.f32 %v4001, %v4043
        %v4045 = vpop.f32.mrb[0].mxu0
        %v4046 = vadd.f32 %v4003, %v4045
        %4047 = vdwg.mxu0
        %4048 = vmatprep.subr.bf16.mxu0 %v2685
        %4049 = vmatpush1.bf16.msra.mxu0 %v2684
        %4050 = vmatprep.subr.bf16.mxu0 %v2693
        %4051 = vmatpush1.bf16.msra.mxu0 %v2692
        %4052 = vmatprep.subr.bf16.mxu0 %v2701
        %4053 = vmatpush1.bf16.msra.mxu0 %v2700
        %4054 = vmatprep.subr.bf16.mxu0 %v2709
        %4055 = vmatpush1.bf16.msra.mxu0 %v2708
        %4056 = vmatprep.subr.bf16.mxu0 %v2717
        %4057 = vmatpush1.bf16.msra.mxu0 %v2716
        %4058 = vmatprep.subr.bf16.mxu0 %v2725
        %4059 = vmatpush1.bf16.msra.mxu0 %v2724
        %4060 = vmatprep.subr.bf16.mxu0 %v2733
        %4061 = vmatpush1.bf16.msra.mxu0 %v2732
        %4062 = vmatprep.subr.bf16.mxu0 %v2741
        %4063 = vmatpush1.bf16.msra.mxu0 %v2740
        %4064 = vmatprep.subr.bf16.mxu0 %v2749
        %4065 = vmatpush1.bf16.msra.mxu0 %v2748
        %4066 = vmatprep.subr.bf16.mxu0 %v2757
        %4067 = vmatpush1.bf16.msra.mxu0 %v2756
        %4068 = vmatprep.subr.bf16.mxu0 %v2765
        %4069 = vmatpush1.bf16.msra.mxu0 %v2764
        %4070 = vmatprep.subr.bf16.mxu0 %v2773
        %4071 = vmatpush1.bf16.msra.mxu0 %v2772
        %4072 = vmatprep.subr.bf16.mxu0 %v2781
        %4073 = vmatpush1.bf16.msra.mxu0 %v2780
        %4074 = vmatprep.subr.bf16.mxu0 %v2789
        %4075 = vmatpush1.bf16.msra.mxu0 %v2788
        %4076 = vmatprep.subr.bf16.mxu0 %v2797
        %4077 = vmatpush1.bf16.msra.mxu0 %v2796
        %4078 = vmatprep.subr.bf16.mxu0 %v2805
        %4079 = vmatpush1.bf16.msra.mxu0 %v2804
        %4080 = vmatprep.mubr.bf16.mxu0 %v339
        %4081 = vmatmul.mubr.bf16.gmra.mrb[0].mxu0 %v338
        %v4082 = vpop.f32.mrb[0].mxu0
        %v4083 = vadd.f32 %v4040, %v4082
        %v4084 = vpop.f32.mrb[0].mxu0
        %v4085 = vadd.f32 %v4042, %v4084
        %v4086 = vpop.f32.mrb[0].mxu0
        %v4087 = vadd.f32 %v4044, %v4086
        %v4088 = vpop.f32.mrb[0].mxu0
        %v4089 = vadd.f32 %v4046, %v4088
        %4090 = vdwg.mxu0
        %4091 = vmatprep.subr.bf16.mxu0 %v2813
        %4092 = vmatpush1.bf16.msra.mxu0 %v2812
        %4093 = vmatprep.subr.bf16.mxu0 %v2821
        %4094 = vmatpush1.bf16.msra.mxu0 %v2820
        %4095 = vmatprep.subr.bf16.mxu0 %v2829
        %4096 = vmatpush1.bf16.msra.mxu0 %v2828
        %4097 = vmatprep.subr.bf16.mxu0 %v2837
        %4098 = vmatpush1.bf16.msra.mxu0 %v2836
        %4099 = vmatprep.subr.bf16.mxu0 %v2845
        %4100 = vmatpush1.bf16.msra.mxu0 %v2844
        %4101 = vmatprep.subr.bf16.mxu0 %v2853
        %4102 = vmatpush1.bf16.msra.mxu0 %v2852
        %4103 = vmatprep.subr.bf16.mxu0 %v2861
        %4104 = vmatpush1.bf16.msra.mxu0 %v2860
        %4105 = vmatprep.subr.bf16.mxu0 %v2869
        %4106 = vmatpush1.bf16.msra.mxu0 %v2868
        %4107 = vmatprep.subr.bf16.mxu0 %v2877
        %4108 = vmatpush1.bf16.msra.mxu0 %v2876
        %4109 = vmatprep.subr.bf16.mxu0 %v2885
        %4110 = vmatpush1.bf16.msra.mxu0 %v2884
        %4111 = vmatprep.subr.bf16.mxu0 %v2893
        %4112 = vmatpush1.bf16.msra.mxu0 %v2892
        %4113 = vmatprep.subr.bf16.mxu0 %v2901
        %4114 = vmatpush1.bf16.msra.mxu0 %v2900
        %4115 = vmatprep.subr.bf16.mxu0 %v2909
        %4116 = vmatpush1.bf16.msra.mxu0 %v2908
        %4117 = vmatprep.subr.bf16.mxu0 %v2917
        %4118 = vmatpush1.bf16.msra.mxu0 %v2916
        %4119 = vmatprep.subr.bf16.mxu0 %v2925
        %4120 = vmatpush1.bf16.msra.mxu0 %v2924
        %4121 = vmatprep.subr.bf16.mxu0 %v2933
        %4122 = vmatpush1.bf16.msra.mxu0 %v2932
        %4123 = vmatprep.mubr.bf16.mxu0 %v341
        %4124 = vmatmul.mubr.bf16.gmra.mrb[0].mxu0 %v340
        %v4125 = vpop.f32.mrb[0].mxu0
        %v4126 = vadd.f32 %v4083, %v4125
        %v4127 = vpop.f32.mrb[0].mxu0
        %v4128 = vadd.f32 %v4085, %v4127
        %v4129 = vpop.f32.mrb[0].mxu0
        %v4130 = vadd.f32 %v4087, %v4129
        %v4131 = vpop.f32.mrb[0].mxu0
        %v4132 = vadd.f32 %v4089, %v4131
        %4133 = vdwg.mxu0
        %v4134 = vmax.f32 %v3610, 0.0
        %v4135 = vmax.f32 %v3612, 0.0
        %v4136 = vmax.f32 %v3782, 0.0
        %v4137 = vmax.f32 %v3784, 0.0
        %v4138 = vmax.f32 %v3954, 0.0
        %v4139 = vmax.f32 %v3956, 0.0
        %v4140 = vmax.f32 %v4126, 0.0
        %v4141 = vmax.f32 %v4128, 0.0
        %v4142 = vmax.f32 %v3614, 0.0
        %v4143 = vmax.f32 %v3616, 0.0
        %v4144 = vmax.f32 %v3786, 0.0
        %v4145 = vmax.f32 %v3788, 0.0
        %v4146 = vmax.f32 %v3958, 0.0
        %v4147 = vmax.f32 %v3960, 0.0
        %v4148 = vmax.f32 %v4130, 0.0
        %v4149 = vmax.f32 %v4132, 0.0
        %v4150 = vlaneseq
        %v4151 = vshrl.u32 %v4150, 7
        %v4152 = vsub.s32 3, %v4151
        %v4153 = vrot.slane %v204, %v4152
        %v4154 = vlaneseq
        %v4155 = vshrl.u32 %v4154, 7
        %v4156 = vsub.s32 3, %v4155
        %v4157 = vrot.slane %v205, %v4156
        %v4158 = vlaneseq
        %v4159 = vshrl.u32 %v4158, 7
        %v4160 = vsub.s32 3, %v4159
        %v4161 = vrot.slane %v206, %v4160
        %v4162 = vlaneseq
        %v4163 = vshrl.u32 %v4162, 7
        %v4164 = vsub.s32 3, %v4163
        %v4165 = vrot.slane %v207, %v4164
        %v4166 = vlaneseq
        %v4167 = vshrl.u32 %v4166, 7
        %v4168 = vsub.s32 3, %v4167
        %v4169 = vrot.slane %v208, %v4168
        %v4170 = vlaneseq
        %v4171 = vshrl.u32 %v4170, 7
        %v4172 = vsub.s32 3, %v4171
        %v4173 = vrot.slane %v209, %v4172
        %v4174 = vlaneseq
        %v4175 = vshrl.u32 %v4174, 7
        %v4176 = vsub.s32 3, %v4175
        %v4177 = vrot.slane %v210, %v4176
        %v4178 = vlaneseq
        %v4179 = vshrl.u32 %v4178, 7
        %v4180 = vsub.s32 3, %v4179
        %v4181 = vrot.slane %v211, %v4180
        %v4182 = vmul.f32 %v4134, %v4153
        %v4183 = vmul.f32 %v4135, %v4157
        %v4184 = vmul.f32 %v4136, %v4161
        %v4185 = vmul.f32 %v4137, %v4165
        %v4186 = vmul.f32 %v4138, %v4169
        %v4187 = vmul.f32 %v4139, %v4173
        %v4188 = vmul.f32 %v4140, %v4177
        %v4189 = vmul.f32 %v4141, %v4181
        %v4190 = vmul.f32 %v4142, %v4153
        %v4191 = vmul.f32 %v4143, %v4157
        %v4192 = vmul.f32 %v4144, %v4161
        %v4193 = vmul.f32 %v4145, %v4165
        %v4194 = vmul.f32 %v4146, %v4169
        %v4195 = vmul.f32 %v4147, %v4173
        %v4196 = vmul.f32 %v4148, %v4177
        %v4197 = vmul.f32 %v4149, %v4181
        %v4198 = vadd.f32 %v4182, %v4183
        %v4199 = vadd.f32 %v4198, %v4184
        %v4200 = vadd.f32 %v4199, %v4185
        %v4201 = vadd.f32 %v4200, %v4186
        %v4202 = vadd.f32 %v4201, %v4187
        %v4203 = vadd.f32 %v4202, %v4188
        %v4204 = vadd.f32 %v4203, %v4189
        %4205 = vadd.xlane.f32.xlu0 %v4204
        %v4206 = vpop.xlane.xlu0 %4205
        %v4207 = vadd.f32 %v4190, %v4191
        %v4208 = vadd.f32 %v4207, %v4192
        %v4209 = vadd.f32 %v4208, %v4193
        %v4210 = vadd.f32 %v4209, %v4194
        %v4211 = vadd.f32 %v4210, %v4195
        %v4212 = vadd.f32 %v4211, %v4196
        %v4213 = vadd.f32 %v4212, %v4197
        %4214 = vadd.xlane.f32.xlu0 %v4213
        %v4215 = vpop.xlane.xlu0 %4214
        %v4216 = vlaneseq
        %v4217 = vshrl.u32 %v4216, 7
        %v4218 = vsub.s32 5, %v4217
        %v4219 = vrot.slane %v204, %v4218
        %v4220 = vadd.f32 %v4206, %v4219
        %v4221 = vadd.f32 %v4215, %v4219
        %v4222 = vsub.f32 1.0, %v202
        %v4223 = vsub.f32 1.0, %v203
        %v4224 = vadd.f32 %v4220, %v4222
        %v4225 = vadd.f32 %v4221, %v4223
        %v4226 = vlaneseq
        %v4227 = vshrl.u32 %v4226, 7
        %v4228 = vsub.s32 4, %v4227
        %v4229 = vrot.slane %v204, %v4228
        %v4230 = vlaneseq
        %v4231 = vshrl.u32 %v4230, 7
        %v4232 = vsub.s32 4, %v4231
        %v4233 = vrot.slane %v205, %v4232
        %v4234 = vlaneseq
        %v4235 = vshrl.u32 %v4234, 7
        %v4236 = vsub.s32 4, %v4235
        %v4237 = vrot.slane %v206, %v4236
        %v4238 = vlaneseq
        %v4239 = vshrl.u32 %v4238, 7
        %v4240 = vsub.s32 4, %v4239
        %v4241 = vrot.slane %v207, %v4240
        %v4242 = vlaneseq
        %v4243 = vshrl.u32 %v4242, 7
        %v4244 = vsub.s32 4, %v4243
        %v4245 = vrot.slane %v208, %v4244
        %v4246 = vlaneseq
        %v4247 = vshrl.u32 %v4246, 7
        %v4248 = vsub.s32 4, %v4247
        %v4249 = vrot.slane %v209, %v4248
        %v4250 = vlaneseq
        %v4251 = vshrl.u32 %v4250, 7
        %v4252 = vsub.s32 4, %v4251
        %v4253 = vrot.slane %v210, %v4252
        %v4254 = vlaneseq
        %v4255 = vshrl.u32 %v4254, 7
        %v4256 = vsub.s32 4, %v4255
        %v4257 = vrot.slane %v211, %v4256
        %v4258 = vmul.f32 %v4134, %v4229
        %v4259 = vmul.f32 %v4135, %v4233
        %v4260 = vmul.f32 %v4136, %v4237
        %v4261 = vmul.f32 %v4137, %v4241
        %v4262 = vmul.f32 %v4138, %v4245
        %v4263 = vmul.f32 %v4139, %v4249
        %v4264 = vmul.f32 %v4140, %v4253
        %v4265 = vmul.f32 %v4141, %v4257
        %v4266 = vmul.f32 %v4142, %v4229
        %v4267 = vmul.f32 %v4143, %v4233
        %v4268 = vmul.f32 %v4144, %v4237
        %v4269 = vmul.f32 %v4145, %v4241
        %v4270 = vmul.f32 %v4146, %v4245
        %v4271 = vmul.f32 %v4147, %v4249
        %v4272 = vmul.f32 %v4148, %v4253
        %v4273 = vmul.f32 %v4149, %v4257
        %v4274 = vadd.f32 %v4258, %v4259
        %v4275 = vadd.f32 %v4274, %v4260
        %v4276 = vadd.f32 %v4275, %v4261
        %v4277 = vadd.f32 %v4276, %v4262
        %v4278 = vadd.f32 %v4277, %v4263
        %v4279 = vadd.f32 %v4278, %v4264
        %v4280 = vadd.f32 %v4279, %v4265
        %4281 = vadd.xlane.f32.xlu0 %v4280
        %v4282 = vpop.xlane.xlu0 %4281
        %v4283 = vadd.f32 %v4266, %v4267
        %v4284 = vadd.f32 %v4283, %v4268
        %v4285 = vadd.f32 %v4284, %v4269
        %v4286 = vadd.f32 %v4285, %v4270
        %v4287 = vadd.f32 %v4286, %v4271
        %v4288 = vadd.f32 %v4287, %v4272
        %v4289 = vadd.f32 %v4288, %v4273
        %4290 = vadd.xlane.f32.xlu0 %v4289
        %v4291 = vpop.xlane.xlu0 %4290
        %v4292 = vadd.f32 %v4282, %v4219
        %v4293 = vadd.f32 %v4291, %v4219
        %4294 = vrot.lane.b32.xlu0 %v202, 1
        %v4295 = vpop.permute.xlu0 %4294
        %4296 = vrot.lane.b32.xlu0 %v203, 1
        %v4297 = vpop.permute.xlu0 %4296
        %v4300 = vadd.f32 %v4292, %v4295
        %v4301 = vadd.f32 %v4293, %v4297
        %vm4302 = vcmask 7168
        %v4303 = vsel %vm4302, %v4224, %v4300
        %v4304 = vsel %vm4302, %v4225, %v4301
        %v4305 = vmax.f32 %v4303, 0.0
        %v4306 = vmax.f32 %v4304, 0.0
        %v4307 = vmin.f32 %v4305, 1.0
        %v4308 = vmin.f32 %v4306, 1.0
        %vm4309 = vcmask 15360
        %4310 = vst.msk [vmem:[%s200] sm:$0xff] %vm4309, %v4307
        %4311 = vst.msk [vmem:[%s200 + $0x8] sm:$0xff] %vm4309, %v4308
        %s4312 = smul.u32 2, %s16
        %p4313 = scmp.lt.s32.totalorder %s4312, 5
        %s4314 = scalar_select %p4313, %s4312, 5
        %s4315 = smul.addr %s4314, 8
        %s4316 = scalar_lea.vmem %s3, %s4315
        // Predicated region
        $region41: #{correction_forward.1} parent=31 // pred_check
          %p4317 = pneg %p102
        $region42: #{correction_forward.1} parent=31 // pred_check_branch
          %4319 = sbr.rel (%p4317) target = $region44
        $region43: #{correction_forward.1} parent=31 // pred_region
          %s4320 = smul.u32 2, %s16
        $region44: #{correction_forward.1} parent=31 // pred_fallthru
          _
      $region32: #{correction_forward.1} parent=5 // pred_fallthru
        _
      %p4321 = scmp.le.s32.totalorder 2, %s11
      // Predicated region
      $region45: #{correction_forward.1} parent=5 // pred_check
        %p4322 = pneg %p4321
      $region46: #{correction_forward.1} parent=5 // pred_check_branch
        %4324 = sbr.rel (%p4322) target = $region48
      $region47: #{correction_forward.1} parent=5 // pred_region
        %s4325 = ssub.s32 %s11, 2
        // Predicated region
        $region49: #{correction_forward.1} parent=47 // pred_check
          %p4326 = pneg %p108
        $region50: #{correction_forward.1} parent=47 // pred_check_branch
          %4328 = sbr.rel (%p4326) target = $region52
        $region51: #{correction_forward.1} parent=47 // pred_region
          %s4329 = smul.u32 2, %s17
          %p4330 = scmp.lt.s32.totalorder %s4329, 5
          %s4331 = scalar_select %p4330, %s4329, 5
          %s4332 = smul.addr %s4331, 8
          %s4333 = scalar_lea.vmem %s3, %s4332
        $region52: #{correction_forward.1} parent=47 // pred_fallthru
          _
      $region48: #{correction_forward.1} parent=5 // pred_fallthru
        _
    $region6: #{correction_forward.1} parent=1 // loop_footer
      %s15 = sadd.s32 1, %s11
    $region7: #{correction_forward.1} parent=1 // loop_footer_branch
      %10 = sbr.rel target = $region3
    $region8: #{correction_forward.1} parent=1 // loop_exit
      _
    %4334 = vsyncpa [#allocation3], 1
    %s4335 = scalar_lea.sflag [#allocation3], 1
    %4336 = vsyncpa %s4335, 1
    %4337 = vsyncpa [#allocation5], 1

</llo_original>
